<compile_context>
chip_gen: v5e
topology: v5e:2x2
jax: 0.10.0
libtpu: 0.0.40
codegen_flags: <defaults>
</compile_context>

<pallas_src>
import functools

import jax
import jax.numpy as jnp
import numpy as np
from jax.experimental import pallas as pl
from jax.experimental.pallas import tpu as pltpu


def _round_up(v, m):
    return (v + m - 1) // m * m


def _pad_to(a, shape, fill=0.0):
    pads = [(0, t - s) for s, t in zip(a.shape, shape)]
    return jnp.pad(a, pads, constant_values=fill)


# ---------------------------------------------------------------------------
# Kernel 1: edge stage.  grid = (num_edge_tiles,)   ("arbitrary": aggr accum)
#   v     = ReLU(x[src] @ W1 + edge_attr @ (We@W1) + (be@W1 + b1)) * bases
#   aggr += onehot(dst) @ v        (accumulated in the revisited output block)
# ---------------------------------------------------------------------------
def edge_kernel(dst_ref, xs_ref, ea_ref, bases_ref, w1_ref, wew1_ref, b1e_ref,
                aggr_ref):
    f32 = jnp.float32
    t = pl.program_id(0)

    @pl.when(t == 0)
    def _init():
        aggr_ref[...] = jnp.zeros_like(aggr_ref)

    # fused pre_ffn(x[src] + edge_encoder(edge_attr)) -- bf16 MXU, f32 accumulate
    pre = (jnp.dot(xs_ref[...], w1_ref[...], preferred_element_type=f32)
           + jnp.dot(ea_ref[...], wew1_ref[...], preferred_element_type=f32)
           + b1e_ref[...])
    v = jnp.maximum(pre, 0.0) * bases_ref[...].astype(f32)   # f32 VPU epilogue

    # segment-sum over dst: per-tile bf16 one-hot (0/1 exact) on the MXU.
    # Padded edges have bases == 0 so they contribute exactly zero rows.
    n_rows = aggr_ref.shape[0]
    tile_e = dst_ref.shape[1]
    node_iota = jax.lax.broadcasted_iota(jnp.int32, (n_rows, tile_e), 0)
    onehot = (dst_ref[...] == node_iota).astype(jnp.bfloat16)  # compare+convert
    aggr_ref[...] += jnp.dot(onehot, v.astype(jnp.bfloat16),
                             preferred_element_type=f32)


# ---------------------------------------------------------------------------
# Kernel 2: node stage.  grid = (num_node_tiles,)   ("arbitrary": xtx accum)
#   y0  = aggr + ReLU(x @ W2 + b2)
#   xtx = (sum_tiles y0^T y0 - (sum y0)^T (sum y0) / N) / N   (finalized once)
#   y   = ReLU(ReLU(y0 @ W3 + b3) @ W4 + b4) * bn_scale + bn_shift
# ---------------------------------------------------------------------------
def node_kernel(aggr_ref, x_ref, w2_ref, b2_ref, w3_ref, b3_ref, w4_ref, b4_ref,
                scale_ref, shift_ref,
                y_ref, xtx_ref, raw_ref, csum_ref, *, n_nodes, n_valid, tile_n):
    f32 = jnp.float32
    i = pl.program_id(0)

    @pl.when(i == 0)
    def _init():
        raw_ref[...] = jnp.zeros_like(raw_ref)
        csum_ref[...] = jnp.zeros_like(csum_ref)

    h2 = jnp.maximum(
        jnp.dot(x_ref[...], w2_ref[...], preferred_element_type=f32)
        + b2_ref[...], 0.0)
    y0 = aggr_ref[...] + h2                                  # [tile_n, HEp] f32

    # mask padded node rows out of the covariance statistics.
    row = jax.lax.broadcasted_iota(jnp.int32, (tile_n, 1), 0) + i * tile_n
    y0m = jnp.where(row < n_valid, y0, 0.0)

    # covariance partials: raw += y0^T @ y0 ; csum holds 8 sublane partial sums.
    raw_ref[...] += jax.lax.dot_general(
        y0m, y0m, (((0,), (0,)), ((), ())), preferred_element_type=f32)
    hep = csum_ref.shape[1]
    csum_ref[...] += jnp.sum(y0m.reshape(tile_n // 8, 8, hep), axis=0)

    # ffn: Linear + ReLU + Linear + ReLU + folded BatchNorm1d (eval mode).
    h3 = jnp.maximum(
        jnp.dot(y0.astype(jnp.bfloat16), w3_ref[...],
                preferred_element_type=f32) + b3_ref[...], 0.0)
    h4 = jnp.maximum(
        jnp.dot(h3.astype(jnp.bfloat16), w4_ref[...],
                preferred_element_type=f32) + b4_ref[...], 0.0)
    y_ref[...] = (h4 * scale_ref[...] + shift_ref[...]).astype(y_ref.dtype)

    @pl.when(i == pl.num_programs(0) - 1)
    def _finalize():
        colsum = jnp.sum(csum_ref[...], axis=0, keepdims=True)      # [1, HEp]
        row0 = jax.lax.broadcasted_iota(jnp.int32, (8, hep), 0) == 0
        colsum8 = jnp.where(row0, colsum, 0.0)                       # [8, HEp]
        mean_outer = jax.lax.dot_general(
            colsum8, colsum8, (((0,), (0,)), ((), ())),
            preferred_element_type=f32) / n_nodes
        xtx_ref[...] = (raw_ref[...] - mean_outer) / n_nodes


# ---------------------------------------------------------------------------
# Wrapper: parameter folding, lane padding (layout plumbing) and the two calls.
# ---------------------------------------------------------------------------
def conv_forward(x, edge_attr, src, dst, bases, p, *, tile_e=512, tile_n=128):
    # tile_n=128 / tile_e=512 keep the MXU full on v5e; prefer 256-row tiles on
    # v6e / v7x (2x256x256 MXU) if VMEM allows.
    f32, bf16 = jnp.float32, jnp.bfloat16
    assert tile_n % 8 == 0 and tile_e % 128 == 0
    N, H = x.shape
    E = edge_attr.shape[0]
    HE = p["W1"].shape[1]
    Hp = _round_up(H, 128)
    HEp = _round_up(HE, 128)
    Ep = _round_up(E, tile_e)
    Np = _round_up(N, tile_n)

    # ---- parameter folding + lane padding (f32, done once in the wrapper) ----
    wew1 = p["We"] @ p["W1"]                               # [7, HE]
    b1e = p["be"] @ p["W1"] + p["b1"]                      # [1, HE]
    bn_scale = p["gamma"] * jax.lax.rsqrt(p["rvar"] + 1e-5)
    bn_shift = p["beta"] - p["rmean"] * bn_scale

    w1 = _pad_to(p["W1"], (Hp, HEp)).astype(bf16)
    wew1 = _pad_to(wew1, (7, HEp)).astype(bf16)
    b1e = _pad_to(b1e, (1, HEp))
    w2 = _pad_to(p["W2"], (Hp, HEp)).astype(bf16)
    b2 = _pad_to(p["b2"], (1, HEp))
    w3 = _pad_to(p["W3"], (HEp, HEp)).astype(bf16)
    b3 = _pad_to(p["b3"], (1, HEp))
    w4 = _pad_to(p["W4"], (HEp, Hp)).astype(bf16)
    b4 = _pad_to(p["b4"], (1, Hp))
    bn_scale = _pad_to(bn_scale, (1, Hp))
    bn_shift = _pad_to(bn_shift, (1, Hp))

    xp = _pad_to(x, (Np, Hp))
    xp_b = xp.astype(bf16)

    # gather x[src] once with an XLA gather (no O(E*N*H) one-hot gather matmul).
    x_src = _pad_to(jnp.take(xp, src, axis=0), (Ep, Hp)).astype(bf16)
    ea = _pad_to(edge_attr, (Ep, 7)).astype(bf16)
    bases_p = _pad_to(bases, (Ep, HEp)).astype(bf16)       # dominant HBM stream
    # padded edges have bases == 0 so their dst value is irrelevant; keep N.
    dst_row = jnp.full((1, Ep), N, jnp.int32).at[0, :E].set(dst.astype(jnp.int32))

    vmem_limit = 32 * 1024 * 1024   # ample here; keep <= ~48 MB on v7x (64 MiB/TC)

    # ---- stage 1: edge aggregation -----------------------------------------
    aggr = pl.pallas_call(
        edge_kernel,
        grid=(Ep // tile_e,),
        in_specs=[
            pl.BlockSpec((1, tile_e), lambda t: (0, t)),       # dst (lane-dense)
            pl.BlockSpec((tile_e, Hp), lambda t: (t, 0)),      # x[src] tile (bf16)
            pl.BlockSpec((tile_e, 7), lambda t: (t, 0)),       # edge_attr tile (bf16)
            pl.BlockSpec((tile_e, HEp), lambda t: (t, 0)),     # bases tile (bf16)
            pl.BlockSpec((Hp, HEp), lambda t: (0, 0)),         # W1 (resident)
            pl.BlockSpec((7, HEp), lambda t: (0, 0)),          # We @ W1
            pl.BlockSpec((1, HEp), lambda t: (0, 0)),          # be @ W1 + b1
        ],
        out_specs=pl.BlockSpec((Np, HEp), lambda t: (0, 0)),   # accumulator
        out_shape=jax.ShapeDtypeStruct((Np, HEp), f32),
        compiler_params=pltpu.CompilerParams(
            dimension_semantics=("arbitrary",),
            vmem_limit_bytes=vmem_limit),
    )(dst_row, x_src, ea, bases_p, w1, wew1, b1e)

    # ---- stage 2: node-side ffn + covariance --------------------------------
    y_pad, xtx_pad = pl.pallas_call(
        functools.partial(node_kernel, n_nodes=float(N), n_valid=N,
                          tile_n=tile_n),
        grid=(Np // tile_n,),
        in_specs=[
            pl.BlockSpec((tile_n, HEp), lambda i: (i, 0)),     # aggr tile
            pl.BlockSpec((tile_n, Hp), lambda i: (i, 0)),      # x tile (bf16)
            pl.BlockSpec((Hp, HEp), lambda i: (0, 0)),         # W2
            pl.BlockSpec((1, HEp), lambda i: (0, 0)),          # b2
            pl.BlockSpec((HEp, HEp), lambda i: (0, 0)),        # W3
            pl.BlockSpec((1, HEp), lambda i: (0, 0)),          # b3
            pl.BlockSpec((HEp, Hp), lambda i: (0, 0)),         # W4
            pl.BlockSpec((1, Hp), lambda i: (0, 0)),           # b4
            pl.BlockSpec((1, Hp), lambda i: (0, 0)),           # folded BN scale
            pl.BlockSpec((1, Hp), lambda i: (0, 0)),           # folded BN shift
        ],
        out_specs=(pl.BlockSpec((tile_n, Hp), lambda i: (i, 0)),
                   pl.BlockSpec((HEp, HEp), lambda i: (0, 0))),
        out_shape=(jax.ShapeDtypeStruct((Np, Hp), bf16),       # bf16 y stream
                   jax.ShapeDtypeStruct((HEp, HEp), f32)),
        scratch_shapes=[pltpu.VMEM((HEp, HEp), f32),           # sum y0^T y0
                        pltpu.VMEM((8, HEp), f32)],            # column-sum partials
        compiler_params=pltpu.CompilerParams(
            dimension_semantics=("arbitrary",),   # xtx accumulates across tiles
            vmem_limit_bytes=vmem_limit),
    )(aggr, xp_b, w2, b2, w3, b3, w4, b4, bn_scale, bn_shift)

    return y_pad[:N, :H].astype(f32), xtx_pad[:HE, :HE]


# ---------------------------------------------------------------------------
# Pure-JAX f32 reference of the module forward.
# ---------------------------------------------------------------------------
def reference(x, edge_attr, src, dst, bases, p):
    e = edge_attr @ p["We"] + p["be"]
    pos_e = x[src] + e
    v = jax.nn.relu(pos_e @ p["W1"] + p["b1"]) * bases
    aggr = jax.ops.segment_sum(v, dst, num_segments=x.shape[0])
    y0 = aggr + jax.nn.relu(x @ p["W2"] + p["b2"])
    yc = y0 - y0.mean(0, keepdims=True)
    xtx = yc.T @ yc / y0.shape[0]
    h = jax.nn.relu(y0 @ p["W3"] + p["b3"])
    h = jax.nn.relu(h @ p["W4"] + p["b4"])
    y = (h - p["rmean"]) / jnp.sqrt(p["rvar"] + 1e-5) * p["gamma"] + p["beta"]
    return y, xtx


if __name__ == "__main__":
    H, EXP = 32, 2
    HE = H * EXP
    N, E = 200, 600     # -> 2 node tiles (tile_n=128, padded) and 2 edge tiles

    key = jax.random.PRNGKey(0)
    ks = jax.random.split(key, 16)

    x = jax.random.normal(ks[0], (N, H), jnp.float32)
    edge_attr = jax.random.normal(ks[1], (E, 7), jnp.float32)
    bases = jax.random.normal(ks[2], (E, HE), jnp.float32)
    src = jax.random.randint(ks[3], (E,), 0, N, jnp.int32)
    dst = jax.random.randint(ks[4], (E,), 0, N, jnp.int32)

    s = 0.05
    params = {
        "We": s * jax.random.normal(ks[5], (7, H), jnp.float32),
        "be": s * jax.random.normal(ks[6], (1, H), jnp.float32),
        "W1": s * jax.random.normal(ks[7], (H, HE), jnp.float32),
        "b1": s * jax.random.normal(ks[8], (1, HE), jnp.float32),
        "W2": s * jax.random.normal(ks[9], (H, HE), jnp.float32),
        "b2": s * jax.random.normal(ks[10], (1, HE), jnp.float32),
        "W3": s * jax.random.normal(ks[11], (HE, HE), jnp.float32),
        "b3": s * jax.random.normal(ks[12], (1, HE), jnp.float32),
        "W4": s * jax.random.normal(ks[13], (HE, H), jnp.float32),
        "b4": s * jax.random.normal(ks[14], (1, H), jnp.float32),
        "gamma": jnp.ones((1, H), jnp.float32),
        "beta": jnp.zeros((1, H), jnp.float32),
        "rmean": jnp.zeros((1, H), jnp.float32),
        "rvar": jnp.ones((1, H), jnp.float32),
    }

    y, xtx = jax.jit(conv_forward)(x, edge_attr, src, dst, bases, params)
    jax.block_until_ready((y, xtx))

    y_ref, xtx_ref = reference(x, edge_attr, src, dst, bases, params)
    # bf16 MXU inputs / bf16 bases / bf16 y stream (per perf review) => slightly
    # relaxed tolerance vs the f32 reference.
    np.testing.assert_allclose(np.asarray(y), np.asarray(y_ref),
                               rtol=2e-2, atol=3e-2)
    np.testing.assert_allclose(np.asarray(xtx), np.asarray(xtx_ref),
                               rtol=2e-2, atol=3e-2)

    print("KERNEL_OK")
</pallas_src>

<mosaic_0001>
module attributes {stable_mosaic.version = 11 : i64} {
  func.func @edge_kernel(%arg0: i32, %arg1: memref<1x512xi32, #tpu.memory_space<vmem>>, %arg2: memref<512x128xbf16, #tpu.memory_space<vmem>>, %arg3: memref<512x7xbf16, #tpu.memory_space<vmem>>, %arg4: memref<512x128xbf16, #tpu.memory_space<vmem>>, %arg5: memref<128x128xbf16, #tpu.memory_space<vmem>>, %arg6: memref<7x128xbf16, #tpu.memory_space<vmem>>, %arg7: memref<1x128xf32, #tpu.memory_space<vmem>>, %arg8: memref<256x128xf32, #tpu.memory_space<vmem>>) attributes {dimension_semantics = [#tpu.dimension_semantics<arbitrary>], iteration_bounds = array<i64: 2>, scalar_prefetch = 0 : i64, scratch_operands = 0 : i64, tpu.core_type = #tpu.core_type<tc>, window_params = [{transform_indices = @transform_0, window_bounds = array<i64: 1, 512>}, {transform_indices = @transform_1, window_bounds = array<i64: 512, 128>}, {transform_indices = @transform_2, window_bounds = array<i64: 512, 7>}, {transform_indices = @transform_3, window_bounds = array<i64: 512, 128>}, {pipeline_mode = #tpu.pipeline_mode<synchronous>, transform_indices = @transform_4, window_bounds = array<i64: 128, 128>}, {pipeline_mode = #tpu.pipeline_mode<synchronous>, transform_indices = @transform_5, window_bounds = array<i64: 7, 128>}, {pipeline_mode = #tpu.pipeline_mode<synchronous>, transform_indices = @transform_6, window_bounds = array<i64: 1, 128>}, {pipeline_mode = #tpu.pipeline_mode<synchronous>, transform_indices = @transform_7, window_bounds = array<i64: 256, 128>}]} {
    %c0_i32 = arith.constant 0 : i32
    %0 = arith.cmpi eq, %arg0, %c0_i32 : i32
    %1 = arith.extui %0 : i1 to i32
    %c0_i32_0 = arith.constant 0 : i32
    %2 = arith.cmpi ne, %1, %c0_i32_0 : i32
    scf.if %2 {
      %cst_21 = arith.constant 0.000000e+00 : f32
      %30 = vector.broadcast %cst_21 : f32 to vector<256x128xf32>
      %c0_22 = arith.constant 0 : index
      %c0_23 = arith.constant 0 : index
      %31 = vector.load %arg8[%c0_22, %c0_23] : memref<256x128xf32, #tpu.memory_space<vmem>>, vector<256x128xf32>
      tpu.vector_store %arg8[%c0_22, %c0_23], %30 {strides = array<i32>} : memref<256x128xf32, #tpu.memory_space<vmem>>, vector<256x128xf32>,
    } else {
    }
    %c0 = arith.constant 0 : index
    %c0_1 = arith.constant 0 : index
    %3 = vector.load %arg2[%c0, %c0_1] : memref<512x128xbf16, #tpu.memory_space<vmem>>, vector<512x128xbf16>
    %c0_2 = arith.constant 0 : index
    %c0_3 = arith.constant 0 : index
    %4 = vector.load %arg5[%c0_2, %c0_3] : memref<128x128xbf16, #tpu.memory_space<vmem>>, vector<128x128xbf16>
    %cst = arith.constant dense<0.000000e+00> : vector<512x128xf32>
    %5 = tpu.matmul %3, %4, %cst {dimension_numbers = #tpu.dot_dimension_numbers<[1], [0], [0], [1], [0, 0, 1, 1], [], []>} : vector<512x128xbf16>, vector<128x128xbf16>, vector<512x128xf32> -> vector<512x128xf32>
    %c0_4 = arith.constant 0 : index
    %c0_5 = arith.constant 0 : index
    %6 = vector.load %arg3[%c0_4, %c0_5] : memref<512x7xbf16, #tpu.memory_space<vmem>>, vector<512x7xbf16>
    %c0_6 = arith.constant 0 : index
    %c0_7 = arith.constant 0 : index
    %7 = vector.load %arg6[%c0_6, %c0_7] : memref<7x128xbf16, #tpu.memory_space<vmem>>, vector<7x128xbf16>
    %cst_8 = arith.constant dense<0.000000e+00> : vector<512x128xf32>
    %8 = tpu.matmul %6, %7, %cst_8 {dimension_numbers = #tpu.dot_dimension_numbers<[1], [0], [0], [1], [0, 0, 1, 1], [], []>} : vector<512x7xbf16>, vector<7x128xbf16>, vector<512x128xf32> -> vector<512x128xf32>
    %9 = arith.addf %5, %8 : vector<512x128xf32>
    %c0_9 = arith.constant 0 : index
    %c0_10 = arith.constant 0 : index
    %10 = vector.load %arg7[%c0_9, %c0_10] : memref<1x128xf32, #tpu.memory_space<vmem>>, vector<1x128xf32>
    %11 = vector.broadcast %10 : vector<1x128xf32> to vector<512x128xf32>
    %12 = arith.addf %9, %11 : vector<512x128xf32>
    %cst_11 = arith.constant 0.000000e+00 : f32
    %13 = vector.broadcast %cst_11 : f32 to vector<512x128xf32>
    %14 = arith.maximumf %12, %13 : vector<512x128xf32>
    %c0_12 = arith.constant 0 : index
    %c0_13 = arith.constant 0 : index
    %15 = vector.load %arg4[%c0_12, %c0_13] : memref<512x128xbf16, #tpu.memory_space<vmem>>, vector<512x128xbf16>
    %16 = arith.extf %15 : vector<512x128xbf16> to vector<512x128xf32>
    %17 = arith.mulf %14, %16 : vector<512x128xf32>
    %18 = tpu.iota {dimensions = array<i32: 0>} : vector<256x512xi32>
    %c0_14 = arith.constant 0 : index
    %c0_15 = arith.constant 0 : index
    %19 = vector.load %arg1[%c0_14, %c0_15] : memref<1x512xi32, #tpu.memory_space<vmem>>, vector<1x512xi32>
    %20 = vector.broadcast %19 : vector<1x512xi32> to vector<256x512xi32>
    %21 = arith.cmpi eq, %20, %18 : vector<256x512xi32>
    %22 = arith.extui %21 : vector<256x512xi1> to vector<256x512xi32>
    %23 = arith.sitofp %22 : vector<256x512xi32> to vector<256x512xf32>
    %24 = arith.truncf %23 : vector<256x512xf32> to vector<256x512xbf16>
    %c0_16 = arith.constant 0 : index
    %c0_17 = arith.constant 0 : index
    %25 = vector.load %arg8[%c0_16, %c0_17] : memref<256x128xf32, #tpu.memory_space<vmem>>, vector<256x128xf32>
    %26 = arith.truncf %17 : vector<512x128xf32> to vector<512x128xbf16>
    %cst_18 = arith.constant dense<0.000000e+00> : vector<256x128xf32>
    %27 = tpu.matmul %24, %26, %cst_18 {dimension_numbers = #tpu.dot_dimension_numbers<[1], [0], [0], [1], [0, 0, 1, 1], [], []>} : vector<256x512xbf16>, vector<512x128xbf16>, vector<256x128xf32> -> vector<256x128xf32>
    %28 = arith.addf %25, %27 : vector<256x128xf32>
    %c0_19 = arith.constant 0 : index
    %c0_20 = arith.constant 0 : index
    %29 = vector.load %arg8[%c0_19, %c0_20] : memref<256x128xf32, #tpu.memory_space<vmem>>, vector<256x128xf32>
    tpu.vector_store %arg8[%c0_19, %c0_20], %28 {strides = array<i32>} : memref<256x128xf32, #tpu.memory_space<vmem>>, vector<256x128xf32>,
    return
  }
  func.func @transform_0(%arg0: i32) -> (i32, i32) {
    %c0_i32 = arith.constant 0 : i32
    %c0_i32_0 = arith.constant 0 : i32
    return %c0_i32, %arg0 : i32, i32
  }
  func.func @transform_1(%arg0: i32) -> (i32, i32) {
    %c0_i32 = arith.constant 0 : i32
    %c0_i32_0 = arith.constant 0 : i32
    return %arg0, %c0_i32 : i32, i32
  }
  func.func @transform_2(%arg0: i32) -> (i32, i32) {
    %c0_i32 = arith.constant 0 : i32
    %c0_i32_0 = arith.constant 0 : i32
    return %arg0, %c0_i32 : i32, i32
  }
  func.func @transform_3(%arg0: i32) -> (i32, i32) {
    %c0_i32 = arith.constant 0 : i32
    %c0_i32_0 = arith.constant 0 : i32
    return %arg0, %c0_i32 : i32, i32
  }
  func.func @transform_4(%arg0: i32) -> (i32, i32) {
    %c0_i32 = arith.constant 0 : i32
    %c0_i32_0 = arith.constant 0 : i32
    %c0_i32_1 = arith.constant 0 : i32
    return %c0_i32, %c0_i32_0 : i32, i32
  }
  func.func @transform_5(%arg0: i32) -> (i32, i32) {
    %c0_i32 = arith.constant 0 : i32
    %c0_i32_0 = arith.constant 0 : i32
    %c0_i32_1 = arith.constant 0 : i32
    return %c0_i32, %c0_i32_0 : i32, i32
  }
  func.func @transform_6(%arg0: i32) -> (i32, i32) {
    %c0_i32 = arith.constant 0 : i32
    %c0_i32_0 = arith.constant 0 : i32
    %c0_i32_1 = arith.constant 0 : i32
    return %c0_i32, %c0_i32_0 : i32, i32
  }
  func.func @transform_7(%arg0: i32) -> (i32, i32) {
    %c0_i32 = arith.constant 0 : i32
    %c0_i32_0 = arith.constant 0 : i32
    %c0_i32_1 = arith.constant 0 : i32
    return %c0_i32, %c0_i32_0 : i32, i32
  }
}

module attributes {stable_mosaic.version = 11 : i64} {
  func.func @node_kernel(%arg0: i32, %arg1: memref<128x128xf32, #tpu.memory_space<vmem>>, %arg2: memref<128x128xbf16, #tpu.memory_space<vmem>>, %arg3: memref<128x128xbf16, #tpu.memory_space<vmem>>, %arg4: memref<1x128xf32, #tpu.memory_space<vmem>>, %arg5: memref<128x128xbf16, #tpu.memory_space<vmem>>, %arg6: memref<1x128xf32, #tpu.memory_space<vmem>>, %arg7: memref<128x128xbf16, #tpu.memory_space<vmem>>, %arg8: memref<1x128xf32, #tpu.memory_space<vmem>>, %arg9: memref<1x128xf32, #tpu.memory_space<vmem>>, %arg10: memref<1x128xf32, #tpu.memory_space<vmem>>, %arg11: memref<128x128xbf16, #tpu.memory_space<vmem>>, %arg12: memref<128x128xf32, #tpu.memory_space<vmem>>, %arg13: memref<128x128xf32, #tpu.memory_space<vmem>>, %arg14: memref<8x128xf32, #tpu.memory_space<vmem>>) attributes {dimension_semantics = [#tpu.dimension_semantics<arbitrary>], iteration_bounds = array<i64: 2>, scalar_prefetch = 0 : i64, scratch_operands = 2 : i64, tpu.core_type = #tpu.core_type<tc>, window_params = [{transform_indices = @transform_0, window_bounds = array<i64: 128, 128>}, {transform_indices = @transform_1, window_bounds = array<i64: 128, 128>}, {pipeline_mode = #tpu.pipeline_mode<synchronous>, transform_indices = @transform_2, window_bounds = array<i64: 128, 128>}, {pipeline_mode = #tpu.pipeline_mode<synchronous>, transform_indices = @transform_3, window_bounds = array<i64: 1, 128>}, {pipeline_mode = #tpu.pipeline_mode<synchronous>, transform_indices = @transform_4, window_bounds = array<i64: 128, 128>}, {pipeline_mode = #tpu.pipeline_mode<synchronous>, transform_indices = @transform_5, window_bounds = array<i64: 1, 128>}, {pipeline_mode = #tpu.pipeline_mode<synchronous>, transform_indices = @transform_6, window_bounds = array<i64: 128, 128>}, {pipeline_mode = #tpu.pipeline_mode<synchronous>, transform_indices = @transform_7, window_bounds = array<i64: 1, 128>}, {pipeline_mode = #tpu.pipeline_mode<synchronous>, transform_indices = @transform_8, window_bounds = array<i64: 1, 128>}, {pipeline_mode = #tpu.pipeline_mode<synchronous>, transform_indices = @transform_9, window_bounds = array<i64: 1, 128>}, {transform_indices = @transform_10, window_bounds = array<i64: 128, 128>}, {pipeline_mode = #tpu.pipeline_mode<synchronous>, transform_indices = @transform_11, window_bounds = array<i64: 128, 128>}]} {
    %c0_i32 = arith.constant 0 : i32
    %0 = arith.cmpi eq, %arg0, %c0_i32 : i32
    %1 = arith.extui %0 : i1 to i32
    %c0_i32_0 = arith.constant 0 : i32
    %2 = arith.cmpi ne, %1, %c0_i32_0 : i32
    scf.if %2 {
      %cst_39 = arith.constant 0.000000e+00 : f32
      %59 = vector.broadcast %cst_39 : f32 to vector<128x128xf32>
      %c0_40 = arith.constant 0 : index
      %c0_41 = arith.constant 0 : index
      %60 = vector.load %arg13[%c0_40, %c0_41] : memref<128x128xf32, #tpu.memory_space<vmem>>, vector<128x128xf32>
      tpu.vector_store %arg13[%c0_40, %c0_41], %59 {strides = array<i32>} : memref<128x128xf32, #tpu.memory_space<vmem>>, vector<128x128xf32>,
      %cst_42 = arith.constant 0.000000e+00 : f32
      %61 = vector.broadcast %cst_42 : f32 to vector<8x128xf32>
      %c0_43 = arith.constant 0 : index
      %c0_44 = arith.constant 0 : index
      %62 = vector.load %arg14[%c0_43, %c0_44] : memref<8x128xf32, #tpu.memory_space<vmem>>, vector<8x128xf32>
      tpu.vector_store %arg14[%c0_43, %c0_44], %61 {strides = array<i32>} : memref<8x128xf32, #tpu.memory_space<vmem>>, vector<8x128xf32>,
    } else {
    }
    %c0 = arith.constant 0 : index
    %c0_1 = arith.constant 0 : index
    %3 = vector.load %arg2[%c0, %c0_1] : memref<128x128xbf16, #tpu.memory_space<vmem>>, vector<128x128xbf16>
    %c0_2 = arith.constant 0 : index
    %c0_3 = arith.constant 0 : index
    %4 = vector.load %arg3[%c0_2, %c0_3] : memref<128x128xbf16, #tpu.memory_space<vmem>>, vector<128x128xbf16>
    %cst = arith.constant dense<0.000000e+00> : vector<128x128xf32>
    %5 = tpu.matmul %3, %4, %cst {dimension_numbers = #tpu.dot_dimension_numbers<[1], [0], [0], [1], [0, 0, 1, 1], [], []>} : vector<128x128xbf16>, vector<128x128xbf16>, vector<128x128xf32> -> vector<128x128xf32>
    %c0_4 = arith.constant 0 : index
    %c0_5 = arith.constant 0 : index
    %6 = vector.load %arg4[%c0_4, %c0_5] : memref<1x128xf32, #tpu.memory_space<vmem>>, vector<1x128xf32>
    %7 = vector.broadcast %6 : vector<1x128xf32> to vector<128x128xf32>
    %8 = arith.addf %5, %7 : vector<128x128xf32>
    %cst_6 = arith.constant 0.000000e+00 : f32
    %9 = vector.broadcast %cst_6 : f32 to vector<128x128xf32>
    %10 = arith.maximumf %8, %9 : vector<128x128xf32>
    %c0_7 = arith.constant 0 : index
    %c0_8 = arith.constant 0 : index
    %11 = vector.load %arg1[%c0_7, %c0_8] : memref<128x128xf32, #tpu.memory_space<vmem>>, vector<128x128xf32>
    %12 = arith.addf %11, %10 : vector<128x128xf32>
    %13 = tpu.iota {dimensions = array<i32: 0>} : vector<128x1xi32>
    %c128_i32 = arith.constant 128 : i32
    %14 = arith.muli %arg0, %c128_i32 : i32
    %15 = vector.broadcast %14 : i32 to vector<128x1xi32>
    %16 = arith.addi %13, %15 : vector<128x1xi32>
    %c200_i32 = arith.constant 200 : i32
    %17 = vector.broadcast %c200_i32 : i32 to vector<128x1xi32>
    %18 = arith.cmpi slt, %16, %17 : vector<128x1xi32>
    %cst_9 = arith.constant 0.000000e+00 : f32
    %19 = vector.shape_cast %18 : vector<128x1xi1> to vector<128x1xi1>
    %20 = vector.broadcast %19 : vector<128x1xi1> to vector<128x128xi1>
    %21 = vector.broadcast %cst_9 : f32 to vector<128x128xf32>
    %22 = arith.select %20, %12, %21 : vector<128x128xi1>, vector<128x128xf32>
    %c0_10 = arith.constant 0 : index
    %c0_11 = arith.constant 0 : index
    %23 = vector.load %arg13[%c0_10, %c0_11] : memref<128x128xf32, #tpu.memory_space<vmem>>, vector<128x128xf32>
    %cst_12 = arith.constant dense<0.000000e+00> : vector<128x128xf32>
    %24 = tpu.matmul %22, %22, %cst_12 {dimension_numbers = #tpu.dot_dimension_numbers<[0], [0], [1], [1], [0, 1, 1, 1], [], []>} : vector<128x128xf32>, vector<128x128xf32>, vector<128x128xf32> -> vector<128x128xf32>
    %25 = arith.addf %23, %24 : vector<128x128xf32>
    %c0_13 = arith.constant 0 : index
    %c0_14 = arith.constant 0 : index
    %26 = vector.load %arg13[%c0_13, %c0_14] : memref<128x128xf32, #tpu.memory_space<vmem>>, vector<128x128xf32>
    tpu.vector_store %arg13[%c0_13, %c0_14], %25 {strides = array<i32>} : memref<128x128xf32, #tpu.memory_space<vmem>>, vector<128x128xf32>,
    %c0_15 = arith.constant 0 : index
    %c0_16 = arith.constant 0 : index
    %27 = vector.load %arg14[%c0_15, %c0_16] : memref<8x128xf32, #tpu.memory_space<vmem>>, vector<8x128xf32>
    %28 = vector.shape_cast %22 : vector<128x128xf32> to vector<16x8x128xf32>
    %cst_17 = arith.constant dense<0.000000e+00> : vector<8x128xf32>
    %29 = vector.multi_reduction <add>, %28, %cst_17 [0] : vector<16x8x128xf32> to vector<8x128xf32>
    %30 = arith.addf %27, %29 : vector<8x128xf32>
    %c0_18 = arith.constant 0 : index
    %c0_19 = arith.constant 0 : index
    %31 = vector.load %arg14[%c0_18, %c0_19] : memref<8x128xf32, #tpu.memory_space<vmem>>, vector<8x128xf32>
    tpu.vector_store %arg14[%c0_18, %c0_19], %30 {strides = array<i32>} : memref<8x128xf32, #tpu.memory_space<vmem>>, vector<8x128xf32>,
    %32 = arith.truncf %12 : vector<128x128xf32> to vector<128x128xbf16>
    %c0_20 = arith.constant 0 : index
    %c0_21 = arith.constant 0 : index
    %33 = vector.load %arg5[%c0_20, %c0_21] : memref<128x128xbf16, #tpu.memory_space<vmem>>, vector<128x128xbf16>
    %cst_22 = arith.constant dense<0.000000e+00> : vector<128x128xf32>
    %34 = tpu.matmul %32, %33, %cst_22 {dimension_numbers = #tpu.dot_dimension_numbers<[1], [0], [0], [1], [0, 0, 1, 1], [], []>} : vector<128x128xbf16>, vector<128x128xbf16>, vector<128x128xf32> -> vector<128x128xf32>
    %c0_23 = arith.constant 0 : index
    %c0_24 = arith.constant 0 : index
    %35 = vector.load %arg6[%c0_23, %c0_24] : memref<1x128xf32, #tpu.memory_space<vmem>>, vector<1x128xf32>
    %36 = vector.broadcast %35 : vector<1x128xf32> to vector<128x128xf32>
    %37 = arith.addf %34, %36 : vector<128x128xf32>
    %cst_25 = arith.constant 0.000000e+00 : f32
    %38 = vector.broadcast %cst_25 : f32 to vector<128x128xf32>
    %39 = arith.maximumf %37, %38 : vector<128x128xf32>
    %40 = arith.truncf %39 : vector<128x128xf32> to vector<128x128xbf16>
    %c0_26 = arith.constant 0 : index
    %c0_27 = arith.constant 0 : index
    %41 = vector.load %arg7[%c0_26, %c0_27] : memref<128x128xbf16, #tpu.memory_space<vmem>>, vector<128x128xbf16>
    %cst_28 = arith.constant dense<0.000000e+00> : vector<128x128xf32>
    %42 = tpu.matmul %40, %41, %cst_28 {dimension_numbers = #tpu.dot_dimension_numbers<[1], [0], [0], [1], [0, 0, 1, 1], [], []>} : vector<128x128xbf16>, vector<128x128xbf16>, vector<128x128xf32> -> vector<128x128xf32>
    %c0_29 = arith.constant 0 : index
    %c0_30 = arith.constant 0 : index
    %43 = vector.load %arg8[%c0_29, %c0_30] : memref<1x128xf32, #tpu.memory_space<vmem>>, vector<1x128xf32>
    %44 = vector.broadcast %43 : vector<1x128xf32> to vector<128x128xf32>
    %45 = arith.addf %42, %44 : vector<128x128xf32>
    %cst_31 = arith.constant 0.000000e+00 : f32
    %46 = vector.broadcast %cst_31 : f32 to vector<128x128xf32>
    %47 = arith.maximumf %45, %46 : vector<128x128xf32>
    %c0_32 = arith.constant 0 : index
    %c0_33 = arith.constant 0 : index
    %48 = vector.load %arg9[%c0_32, %c0_33] : memref<1x128xf32, #tpu.memory_space<vmem>>, vector<1x128xf32>
    %49 = vector.broadcast %48 : vector<1x128xf32> to vector<128x128xf32>
    %50 = arith.mulf %47, %49 : vector<128x128xf32>
    %c0_34 = arith.constant 0 : index
    %c0_35 = arith.constant 0 : index
    %51 = vector.load %arg10[%c0_34, %c0_35] : memref<1x128xf32, #tpu.memory_space<vmem>>, vector<1x128xf32>
    %52 = vector.broadcast %51 : vector<1x128xf32> to vector<128x128xf32>
    %53 = arith.addf %50, %52 : vector<128x128xf32>
    %54 = arith.truncf %53 : vector<128x128xf32> to vector<128x128xbf16>
    %c0_36 = arith.constant 0 : index
    %c0_37 = arith.constant 0 : index
    %55 = vector.load %arg11[%c0_36, %c0_37] : memref<128x128xbf16, #tpu.memory_space<vmem>>, vector<128x128xbf16>
    tpu.vector_store %arg11[%c0_36, %c0_37], %54 {strides = array<i32>} : memref<128x128xbf16, #tpu.memory_space<vmem>>, vector<128x128xbf16>,
    %c1_i32 = arith.constant 1 : i32
    %56 = arith.cmpi eq, %arg0, %c1_i32 : i32
    %57 = arith.extui %56 : i1 to i32
    %c0_i32_38 = arith.constant 0 : i32
    %58 = arith.cmpi ne, %57, %c0_i32_38 : i32
    scf.if %58 {
      %c0_39 = arith.constant 0 : index
      %c0_40 = arith.constant 0 : index
      %59 = vector.load %arg14[%c0_39, %c0_40] : memref<8x128xf32, #tpu.memory_space<vmem>>, vector<8x128xf32>
      %cst_41 = arith.constant dense<0.000000e+00> : vector<128xf32>
      %60 = vector.multi_reduction <add>, %59, %cst_41 [0] : vector<8x128xf32> to vector<128xf32>
      %61 = vector.shape_cast %60 : vector<128xf32> to vector<1x128xf32>
      %62 = tpu.iota {dimensions = array<i32: 0>} : vector<8x128xi32>
      %c0_i32_42 = arith.constant 0 : i32
      %63 = vector.broadcast %c0_i32_42 : i32 to vector<8x128xi32>
      %64 = arith.cmpi eq, %62, %63 : vector<8x128xi32>
      %cst_43 = arith.constant 0.000000e+00 : f32
      %65 = vector.shape_cast %61 : vector<1x128xf32> to vector<1x128xf32>
      %66 = vector.broadcast %65 : vector<1x128xf32> to vector<8x128xf32>
      %67 = vector.broadcast %cst_43 : f32 to vector<8x128xf32>
      %68 = arith.select %64, %66, %67 : vector<8x128xi1>, vector<8x128xf32>
      %cst_44 = arith.constant dense<0.000000e+00> : vector<128x128xf32>
      %69 = tpu.matmul %68, %68, %cst_44 {dimension_numbers = #tpu.dot_dimension_numbers<[0], [0], [1], [1], [0, 1, 1, 1], [], []>} : vector<8x128xf32>, vector<8x128xf32>, vector<128x128xf32> -> vector<128x128xf32>
      %cst_45 = arith.constant 2.000000e+02 : f32
      %70 = vector.broadcast %cst_45 : f32 to vector<128x128xf32>
      %71 = arith.divf %69, %70 : vector<128x128xf32>
      %c0_46 = arith.constant 0 : index
      %c0_47 = arith.constant 0 : index
      %72 = vector.load %arg13[%c0_46, %c0_47] : memref<128x128xf32, #tpu.memory_space<vmem>>, vector<128x128xf32>
      %73 = arith.subf %72, %71 : vector<128x128xf32>
      %cst_48 = arith.constant 2.000000e+02 : f32
      %74 = vector.broadcast %cst_48 : f32 to vector<128x128xf32>
      %75 = arith.divf %73, %74 : vector<128x128xf32>
      %c0_49 = arith.constant 0 : index
      %c0_50 = arith.constant 0 : index
      %76 = vector.load %arg12[%c0_49, %c0_50] : memref<128x128xf32, #tpu.memory_space<vmem>>, vector<128x128xf32>
      tpu.vector_store %arg12[%c0_49, %c0_50], %75 {strides = array<i32>} : memref<128x128xf32, #tpu.memory_space<vmem>>, vector<128x128xf32>,
    } else {
    }
    return
  }
  func.func @transform_0(%arg0: i32) -> (i32, i32) {
    %c0_i32 = arith.constant 0 : i32
    %c0_i32_0 = arith.constant 0 : i32
    return %arg0, %c0_i32 : i32, i32
  }
  func.func @transform_1(%arg0: i32) -> (i32, i32) {
    %c0_i32 = arith.constant 0 : i32
    %c0_i32_0 = arith.constant 0 : i32
    return %arg0, %c0_i32 : i32, i32
  }
  func.func @transform_2(%arg0: i32) -> (i32, i32) {
    %c0_i32 = arith.constant 0 : i32
    %c0_i32_0 = arith.constant 0 : i32
    %c0_i32_1 = arith.constant 0 : i32
    return %c0_i32, %c0_i32_0 : i32, i32
  }
  func.func @transform_3(%arg0: i32) -> (i32, i32) {
    %c0_i32 = arith.constant 0 : i32
    %c0_i32_0 = arith.constant 0 : i32
    %c0_i32_1 = arith.constant 0 : i32
    return %c0_i32, %c0_i32_0 : i32, i32
  }
  func.func @transform_4(%arg0: i32) -> (i32, i32) {
    %c0_i32 = arith.constant 0 : i32
    %c0_i32_0 = arith.constant 0 : i32
    %c0_i32_1 = arith.constant 0 : i32
    return %c0_i32, %c0_i32_0 : i32, i32
  }
  func.func @transform_5(%arg0: i32) -> (i32, i32) {
    %c0_i32 = arith.constant 0 : i32
    %c0_i32_0 = arith.constant 0 : i32
    %c0_i32_1 = arith.constant 0 : i32
    return %c0_i32, %c0_i32_0 : i32, i32
  }
  func.func @transform_6(%arg0: i32) -> (i32, i32) {
    %c0_i32 = arith.constant 0 : i32
    %c0_i32_0 = arith.constant 0 : i32
    %c0_i32_1 = arith.constant 0 : i32
    return %c0_i32, %c0_i32_0 : i32, i32
  }
  func.func @transform_7(%arg0: i32) -> (i32, i32) {
    %c0_i32 = arith.constant 0 : i32
    %c0_i32_0 = arith.constant 0 : i32
    %c0_i32_1 = arith.constant 0 : i32
    return %c0_i32, %c0_i32_0 : i32, i32
  }
  func.func @transform_8(%arg0: i32) -> (i32, i32) {
    %c0_i32 = arith.constant 0 : i32
    %c0_i32_0 = arith.constant 0 : i32
    %c0_i32_1 = arith.constant 0 : i32
    return %c0_i32, %c0_i32_0 : i32, i32
  }
  func.func @transform_9(%arg0: i32) -> (i32, i32) {
    %c0_i32 = arith.constant 0 : i32
    %c0_i32_0 = arith.constant 0 : i32
    %c0_i32_1 = arith.constant 0 : i32
    return %c0_i32, %c0_i32_0 : i32, i32
  }
  func.func @transform_10(%arg0: i32) -> (i32, i32) {
    %c0_i32 = arith.constant 0 : i32
    %c0_i32_0 = arith.constant 0 : i32
    return %arg0, %c0_i32 : i32, i32
  }
  func.func @transform_11(%arg0: i32) -> (i32, i32) {
    %c0_i32 = arith.constant 0 : i32
    %c0_i32_0 = arith.constant 0 : i32
    %c0_i32_1 = arith.constant 0 : i32
    return %c0_i32, %c0_i32_0 : i32, i32
  }
}

</mosaic_0001>

<llo_original>
// kernel: conv_forward.3
$region0: #{conv_forward.3}
  #allocation0 [shape = 'u32[]', space=smem, size = 0x4, offset = 0x4, fixed_abs, tag = 'smem constant byte address 0x4 - core index']
  #allocation1 [shape = 'u32[72,128]{1,0:T(1,128)}', space=vmem, size = 0x9000, scoped, tag = 'internal scratch']
  #allocation2 [shape = 'f32[128,128]{1,0:T(8,128)}', space=vmem, size = 0x10000, scoped, tag = 'scratch operand']
  #allocation3 [shape = 'f32[8,128]{1,0:T(8,128)}', space=vmem, size = 0x1000, scoped, tag = 'scratch operand']
  %s0 = inlined_call_operand.vmem [shape: f32[256,128], index: 0, kind: input, shape index: {}]
  %s1 = inlined_call_operand.vmem [shape: bf16[256,128], index: 1, kind: input, shape index: {}]
  %s2 = inlined_call_operand.vmem [shape: bf16[128,128], index: 2, kind: input, shape index: {}]
  %s3 = inlined_call_operand.vmem [shape: f32[1,128], index: 3, kind: input, shape index: {}]
  %s4 = inlined_call_operand.vmem [shape: bf16[128,128], index: 4, kind: input, shape index: {}]
  %s5 = inlined_call_operand.vmem [shape: f32[1,128], index: 5, kind: input, shape index: {}]
  %s6 = inlined_call_operand.vmem [shape: bf16[128,128], index: 6, kind: input, shape index: {}]
  %s7 = inlined_call_operand.vmem [shape: f32[1,128], index: 7, kind: input, shape index: {}]
  %s8 = inlined_call_operand.vmem [shape: f32[1,128], index: 8, kind: input, shape index: {}]
  %s9 = inlined_call_operand.vmem [shape: f32[1,128], index: 9, kind: input, shape index: {}]
  %s10 = inlined_call_operand.vmem [shape: bf16[256,128], index: 10, kind: output, shape index: {0}]
  %s11 = inlined_call_operand.vmem [shape: f32[128,128], index: 11, kind: output, shape index: {1}]
  %12 = xla_tuple %s10, %s11
  %s13 = sld [smem:[#allocation0]]
  $region89: #{conv_forward.3} parent=0
    _
  %s15 = ssub.s32 1, %s13
  %s16 = scalar_select 0, %s15, %s13
  loop: start=0, step=1, limit=4
  $region2: #{conv_forward.3} parent=0 // loop_pre_header
    _
  $region3: #{conv_forward.3} parent=0 // loop_header
    %s18 = sphi 0, %s22
    %p19 = scmp.ge.s32.totalorder %s18, 4
    %s28 = sphi 0, %s30
    %s31 = sphi 0, %s28
    %s32 = sphi 0, %s31
    %s48 = sphi 0, %s32
    %s54 = sphi 0, %s56
    %s57 = sphi 0, %s54
    %s58 = sphi 0, %s57
    %s74 = sphi 0, %s58
    %s78 = sphi 0, %s78
    %s80 = sphi 0, %s78
    %s81 = sphi 0, %s80
    %s95 = sphi 0, %s81
    %s99 = sphi 0, %s99
    %s101 = sphi 0, %s99
    %s102 = sphi 0, %s101
    %s116 = sphi 0, %s102
    %s120 = sphi 0, %s120
    %s122 = sphi 0, %s120
    %s123 = sphi 0, %s122
    %s137 = sphi 0, %s123
    %s141 = sphi 0, %s141
    %s143 = sphi 0, %s141
    %s144 = sphi 0, %s143
    %s158 = sphi 0, %s144
    %s162 = sphi 0, %s162
    %s164 = sphi 0, %s162
    %s165 = sphi 0, %s164
    %s179 = sphi 0, %s165
    %s183 = sphi 0, %s183
    %s185 = sphi 0, %s183
    %s186 = sphi 0, %s185
    %s200 = sphi 0, %s186
    %s204 = sphi 0, %s204
    %s206 = sphi 0, %s204
    %s207 = sphi 0, %s206
    %s221 = sphi 0, %s207
    %s225 = sphi 0, %s225
    %s227 = sphi 0, %s225
    %s228 = sphi 0, %s227
    %s242 = sphi 0, %s228
    %s248 = sphi 0, %s250
    %s251 = sphi 0, %s248
    %s252 = sphi 0, %s251
    %s268 = sphi 0, %s252
    %s272 = sphi 0, %s272
    %s274 = sphi 0, %s272
    %s275 = sphi 0, %s274
    %s289 = sphi 0, %s275
  $region4: #{conv_forward.3} parent=0 // loop_header_branch
    %21 = sbr.rel (%p19) target = $region8
  $region5: #{conv_forward.3} parent=0 // loop_body
    %s23 = ssub.s32 %s18, 1
    %s24 = ssub.s32 %s18, 2
    %s25 = sadd.s32 %s18, 1
    %s26 = ssub.s32 %s18, %s25
    %p27 = scmp.eq.s32.totalorder %s26, 0
    %s29 = sadd.s32 %s28, 1
    %s30 = scalar_select %p27, %s28, %s29
    %p33 = pneg %p27
    %p34 = scmp.eq.s32.totalorder %s18, 1
    %p35 = por %p33, %p34
    %p36 = scmp.ne.s32.totalorder %s28, %s31
    %p37 = scmp.eq.s32.totalorder %s18, 0
    %p38 = por %p36, %p37
    %p39 = scmp.ne.s32.totalorder %s28, %s31
    %p40 = scmp.eq.s32.totalorder %s23, 1
    %p41 = por %p39, %p40
    %p42 = scmp.ne.s32.totalorder %s31, %s32
    %p43 = scmp.eq.s32.totalorder %s23, 0
    %p44 = por %p42, %p43
    %p45 = scmp.ne.s32.totalorder %s31, %s32
    %p46 = scmp.eq.s32.totalorder %s24, 1
    %p47 = por %p45, %p46
    %p49 = scmp.ne.s32.totalorder %s32, %s48
    %p50 = scmp.eq.s32.totalorder %s24, 0
    %p51 = por %p49, %p50
    %s52 = ssub.s32 %s18, %s25
    %p53 = scmp.eq.s32.totalorder %s52, 0
    %s55 = sadd.s32 %s54, 1
    %s56 = scalar_select %p53, %s54, %s55
    %p59 = pneg %p53
    %p60 = scmp.eq.s32.totalorder %s18, 1
    %p61 = por %p59, %p60
    %p62 = scmp.ne.s32.totalorder %s54, %s57
    %p63 = scmp.eq.s32.totalorder %s18, 0
    %p64 = por %p62, %p63
    %p65 = scmp.ne.s32.totalorder %s54, %s57
    %p66 = scmp.eq.s32.totalorder %s23, 1
    %p67 = por %p65, %p66
    %p68 = scmp.ne.s32.totalorder %s57, %s58
    %p69 = scmp.eq.s32.totalorder %s23, 0
    %p70 = por %p68, %p69
    %p71 = scmp.ne.s32.totalorder %s57, %s58
    %p72 = scmp.eq.s32.totalorder %s24, 1
    %p73 = por %p71, %p72
    %p75 = scmp.ne.s32.totalorder %s58, %s74
    %p76 = scmp.eq.s32.totalorder %s24, 0
    %p77 = por %p75, %p76
    %s79 = sadd.s32 %s78, 1
    %p82 = scmp.eq.s32.totalorder %s18, 1
    %p83 = scmp.ne.s32.totalorder %s78, %s80
    %p84 = scmp.eq.s32.totalorder %s18, 0
    %p85 = por %p83, %p84
    %p86 = scmp.ne.s32.totalorder %s78, %s80
    %p87 = scmp.eq.s32.totalorder %s23, 1
    %p88 = por %p86, %p87
    %p89 = scmp.ne.s32.totalorder %s80, %s81
    %p90 = scmp.eq.s32.totalorder %s23, 0
    %p91 = por %p89, %p90
    %p92 = scmp.ne.s32.totalorder %s80, %s81
    %p93 = scmp.eq.s32.totalorder %s24, 1
    %p94 = por %p92, %p93
    %p96 = scmp.ne.s32.totalorder %s81, %s95
    %p97 = scmp.eq.s32.totalorder %s24, 0
    %p98 = por %p96, %p97
    %s100 = sadd.s32 %s99, 1
    %p103 = scmp.eq.s32.totalorder %s18, 1
    %p104 = scmp.ne.s32.totalorder %s99, %s101
    %p105 = scmp.eq.s32.totalorder %s18, 0
    %p106 = por %p104, %p105
    %p107 = scmp.ne.s32.totalorder %s99, %s101
    %p108 = scmp.eq.s32.totalorder %s23, 1
    %p109 = por %p107, %p108
    %p110 = scmp.ne.s32.totalorder %s101, %s102
    %p111 = scmp.eq.s32.totalorder %s23, 0
    %p112 = por %p110, %p111
    %p113 = scmp.ne.s32.totalorder %s101, %s102
    %p114 = scmp.eq.s32.totalorder %s24, 1
    %p115 = por %p113, %p114
    %p117 = scmp.ne.s32.totalorder %s102, %s116
    %p118 = scmp.eq.s32.totalorder %s24, 0
    %p119 = por %p117, %p118
    %s121 = sadd.s32 %s120, 1
    %p124 = scmp.eq.s32.totalorder %s18, 1
    %p125 = scmp.ne.s32.totalorder %s120, %s122
    %p126 = scmp.eq.s32.totalorder %s18, 0
    %p127 = por %p125, %p126
    %p128 = scmp.ne.s32.totalorder %s120, %s122
    %p129 = scmp.eq.s32.totalorder %s23, 1
    %p130 = por %p128, %p129
    %p131 = scmp.ne.s32.totalorder %s122, %s123
    %p132 = scmp.eq.s32.totalorder %s23, 0
    %p133 = por %p131, %p132
    %p134 = scmp.ne.s32.totalorder %s122, %s123
    %p135 = scmp.eq.s32.totalorder %s24, 1
    %p136 = por %p134, %p135
    %p138 = scmp.ne.s32.totalorder %s123, %s137
    %p139 = scmp.eq.s32.totalorder %s24, 0
    %p140 = por %p138, %p139
    %s142 = sadd.s32 %s141, 1
    %p145 = scmp.eq.s32.totalorder %s18, 1
    %p146 = scmp.ne.s32.totalorder %s141, %s143
    %p147 = scmp.eq.s32.totalorder %s18, 0
    %p148 = por %p146, %p147
    %p149 = scmp.ne.s32.totalorder %s141, %s143
    %p150 = scmp.eq.s32.totalorder %s23, 1
    %p151 = por %p149, %p150
    %p152 = scmp.ne.s32.totalorder %s143, %s144
    %p153 = scmp.eq.s32.totalorder %s23, 0
    %p154 = por %p152, %p153
    %p155 = scmp.ne.s32.totalorder %s143, %s144
    %p156 = scmp.eq.s32.totalorder %s24, 1
    %p157 = por %p155, %p156
    %p159 = scmp.ne.s32.totalorder %s144, %s158
    %p160 = scmp.eq.s32.totalorder %s24, 0
    %p161 = por %p159, %p160
    %s163 = sadd.s32 %s162, 1
    %p166 = scmp.eq.s32.totalorder %s18, 1
    %p167 = scmp.ne.s32.totalorder %s162, %s164
    %p168 = scmp.eq.s32.totalorder %s18, 0
    %p169 = por %p167, %p168
    %p170 = scmp.ne.s32.totalorder %s162, %s164
    %p171 = scmp.eq.s32.totalorder %s23, 1
    %p172 = por %p170, %p171
    %p173 = scmp.ne.s32.totalorder %s164, %s165
    %p174 = scmp.eq.s32.totalorder %s23, 0
    %p175 = por %p173, %p174
    %p176 = scmp.ne.s32.totalorder %s164, %s165
    %p177 = scmp.eq.s32.totalorder %s24, 1
    %p178 = por %p176, %p177
    %p180 = scmp.ne.s32.totalorder %s165, %s179
    %p181 = scmp.eq.s32.totalorder %s24, 0
    %p182 = por %p180, %p181
    %s184 = sadd.s32 %s183, 1
    %p187 = scmp.eq.s32.totalorder %s18, 1
    %p188 = scmp.ne.s32.totalorder %s183, %s185
    %p189 = scmp.eq.s32.totalorder %s18, 0
    %p190 = por %p188, %p189
    %p191 = scmp.ne.s32.totalorder %s183, %s185
    %p192 = scmp.eq.s32.totalorder %s23, 1
    %p193 = por %p191, %p192
    %p194 = scmp.ne.s32.totalorder %s185, %s186
    %p195 = scmp.eq.s32.totalorder %s23, 0
    %p196 = por %p194, %p195
    %p197 = scmp.ne.s32.totalorder %s185, %s186
    %p198 = scmp.eq.s32.totalorder %s24, 1
    %p199 = por %p197, %p198
    %p201 = scmp.ne.s32.totalorder %s186, %s200
    %p202 = scmp.eq.s32.totalorder %s24, 0
    %p203 = por %p201, %p202
    %s205 = sadd.s32 %s204, 1
    %p208 = scmp.eq.s32.totalorder %s18, 1
    %p209 = scmp.ne.s32.totalorder %s204, %s206
    %p210 = scmp.eq.s32.totalorder %s18, 0
    %p211 = por %p209, %p210
    %p212 = scmp.ne.s32.totalorder %s204, %s206
    %p213 = scmp.eq.s32.totalorder %s23, 1
    %p214 = por %p212, %p213
    %p215 = scmp.ne.s32.totalorder %s206, %s207
    %p216 = scmp.eq.s32.totalorder %s23, 0
    %p217 = por %p215, %p216
    %p218 = scmp.ne.s32.totalorder %s206, %s207
    %p219 = scmp.eq.s32.totalorder %s24, 1
    %p220 = por %p218, %p219
    %p222 = scmp.ne.s32.totalorder %s207, %s221
    %p223 = scmp.eq.s32.totalorder %s24, 0
    %p224 = por %p222, %p223
    %s226 = sadd.s32 %s225, 1
    %p229 = scmp.eq.s32.totalorder %s18, 1
    %p230 = scmp.ne.s32.totalorder %s225, %s227
    %p231 = scmp.eq.s32.totalorder %s18, 0
    %p232 = por %p230, %p231
    %p233 = scmp.ne.s32.totalorder %s225, %s227
    %p234 = scmp.eq.s32.totalorder %s23, 1
    %p235 = por %p233, %p234
    %p236 = scmp.ne.s32.totalorder %s227, %s228
    %p237 = scmp.eq.s32.totalorder %s23, 0
    %p238 = por %p236, %p237
    %p239 = scmp.ne.s32.totalorder %s227, %s228
    %p240 = scmp.eq.s32.totalorder %s24, 1
    %p241 = por %p239, %p240
    %p243 = scmp.ne.s32.totalorder %s228, %s242
    %p244 = scmp.eq.s32.totalorder %s24, 0
    %p245 = por %p243, %p244
    %s246 = ssub.s32 %s18, %s25
    %p247 = scmp.eq.s32.totalorder %s246, 0
    %s249 = sadd.s32 %s248, 1
    %s250 = scalar_select %p247, %s248, %s249
    %p253 = pneg %p247
    %p254 = scmp.eq.s32.totalorder %s18, 1
    %p255 = por %p253, %p254
    %p256 = scmp.ne.s32.totalorder %s248, %s251
    %p257 = scmp.eq.s32.totalorder %s18, 0
    %p258 = por %p256, %p257
    %p259 = scmp.ne.s32.totalorder %s248, %s251
    %p260 = scmp.eq.s32.totalorder %s23, 1
    %p261 = por %p259, %p260
    %p262 = scmp.ne.s32.totalorder %s251, %s252
    %p263 = scmp.eq.s32.totalorder %s23, 0
    %p264 = por %p262, %p263
    %p265 = scmp.ne.s32.totalorder %s251, %s252
    %p266 = scmp.eq.s32.totalorder %s24, 1
    %p267 = por %p265, %p266
    %p269 = scmp.ne.s32.totalorder %s252, %s268
    %p270 = scmp.eq.s32.totalorder %s24, 0
    %p271 = por %p269, %p270
    %s273 = sadd.s32 %s272, 1
    %p276 = scmp.eq.s32.totalorder %s18, 1
    %p277 = scmp.ne.s32.totalorder %s272, %s274
    %p278 = scmp.eq.s32.totalorder %s18, 0
    %p279 = por %p277, %p278
    %p280 = scmp.ne.s32.totalorder %s272, %s274
    %p281 = scmp.eq.s32.totalorder %s23, 1
    %p282 = por %p280, %p281
    %p283 = scmp.ne.s32.totalorder %s274, %s275
    %p284 = scmp.eq.s32.totalorder %s23, 0
    %p285 = por %p283, %p284
    %p286 = scmp.ne.s32.totalorder %s274, %s275
    %p287 = scmp.eq.s32.totalorder %s24, 1
    %p288 = por %p286, %p287
    %p290 = scmp.ne.s32.totalorder %s275, %s289
    %p291 = scmp.eq.s32.totalorder %s24, 0
    %p292 = por %p290, %p291
    %p293 = scmp.le.s32.totalorder 1, %s18
    %p294 = scmp.lt.s32.totalorder %s18, 3
    %p295 = pnand %p293, %p294
    %p296 = pneg %p295
    // Predicated region
    $region9: #{conv_forward.3} parent=5 // pred_check
      _
    $region10: #{conv_forward.3} parent=5 // pred_check_branch
      %298 = sbr.rel (%p295) target = $region12
    $region11: #{conv_forward.3} parent=5 // pred_region
      %s299 = ssub.s32 %s18, 1
      // Predicated region
      $region13: #{conv_forward.3} parent=11 // pred_check
        %p300 = pneg %p91
      $region14: #{conv_forward.3} parent=11 // pred_check_branch
        %302 = sbr.rel (%p300) target = $region16
      $region15: #{conv_forward.3} parent=11 // pred_region
        _
      $region16: #{conv_forward.3} parent=11 // pred_fallthru
        _
      // Predicated region
      $region17: #{conv_forward.3} parent=11 // pred_check
        %p303 = pneg %p112
      $region18: #{conv_forward.3} parent=11 // pred_check_branch
        %305 = sbr.rel (%p303) target = $region20
      $region19: #{conv_forward.3} parent=11 // pred_region
        _
      $region20: #{conv_forward.3} parent=11 // pred_fallthru
        _
      // Predicated region
      $region21: #{conv_forward.3} parent=11 // pred_check
        %p306 = pneg %p133
      $region22: #{conv_forward.3} parent=11 // pred_check_branch
        %308 = sbr.rel (%p306) target = $region24
      $region23: #{conv_forward.3} parent=11 // pred_region
        _
      $region24: #{conv_forward.3} parent=11 // pred_fallthru
        _
      // Predicated region
      $region25: #{conv_forward.3} parent=11 // pred_check
        %p309 = pneg %p154
      $region26: #{conv_forward.3} parent=11 // pred_check_branch
        %311 = sbr.rel (%p309) target = $region28
      $region27: #{conv_forward.3} parent=11 // pred_region
        _
      $region28: #{conv_forward.3} parent=11 // pred_fallthru
        _
      // Predicated region
      $region29: #{conv_forward.3} parent=11 // pred_check
        %p312 = pneg %p175
      $region30: #{conv_forward.3} parent=11 // pred_check_branch
        %314 = sbr.rel (%p312) target = $region32
      $region31: #{conv_forward.3} parent=11 // pred_region
        _
      $region32: #{conv_forward.3} parent=11 // pred_fallthru
        _
      // Predicated region
      $region33: #{conv_forward.3} parent=11 // pred_check
        %p315 = pneg %p196
      $region34: #{conv_forward.3} parent=11 // pred_check_branch
        %317 = sbr.rel (%p315) target = $region36
      $region35: #{conv_forward.3} parent=11 // pred_region
        _
      $region36: #{conv_forward.3} parent=11 // pred_fallthru
        _
      // Predicated region
      $region37: #{conv_forward.3} parent=11 // pred_check
        %p318 = pneg %p217
      $region38: #{conv_forward.3} parent=11 // pred_check_branch
        %320 = sbr.rel (%p318) target = $region40
      $region39: #{conv_forward.3} parent=11 // pred_region
        _
      $region40: #{conv_forward.3} parent=11 // pred_fallthru
        _
      // Predicated region
      $region41: #{conv_forward.3} parent=11 // pred_check
        %p321 = pneg %p238
      $region42: #{conv_forward.3} parent=11 // pred_check_branch
        %323 = sbr.rel (%p321) target = $region44
      $region43: #{conv_forward.3} parent=11 // pred_region
        _
      $region44: #{conv_forward.3} parent=11 // pred_fallthru
        _
    $region12: #{conv_forward.3} parent=5 // pred_fallthru
      _
    %p324 = scmp.lt.s32.totalorder %s18, 2
    // Predicated region
    $region45: #{conv_forward.3} parent=5 // pred_check
      %p325 = pneg %p324
    $region46: #{conv_forward.3} parent=5 // pred_check_branch
      %327 = sbr.rel (%p325) target = $region48
    $region47: #{conv_forward.3} parent=5 // pred_region
      // Predicated region
      $region49: #{conv_forward.3} parent=47 // pred_check
        %p328 = pneg %p38
      $region50: #{conv_forward.3} parent=47 // pred_check_branch
        %330 = sbr.rel (%p328) target = $region52
      $region51: #{conv_forward.3} parent=47 // pred_region
        %s331 = smul.u32 16, %s18
        %p332 = scmp.lt.s32.totalorder %s331, 31
        %s333 = scalar_select %p332, %s331, 31
        %s334 = smul.addr %s333, 8
        %s335 = scalar_lea.vmem %s0, %s334
        %s336 = smul.u32 16, %s18
      $region52: #{conv_forward.3} parent=47 // pred_fallthru
        _
      // Predicated region
      $region53: #{conv_forward.3} parent=47 // pred_check
        %p337 = pneg %p64
      $region54: #{conv_forward.3} parent=47 // pred_check_branch
        %339 = sbr.rel (%p337) target = $region56
      $region55: #{conv_forward.3} parent=47 // pred_region
        %s340 = smul.u32 16, %s18
        %p341 = scmp.lt.s32.totalorder %s340, 31
        %s342 = scalar_select %p341, %s340, 31
        %s343 = smul.addr %s342, 4
        %s344 = scalar_lea.vmem %s1, %s343
        %s345 = smul.u32 16, %s18
      $region56: #{conv_forward.3} parent=47 // pred_fallthru
        _
    $region48: #{conv_forward.3} parent=5 // pred_fallthru
      _
    %p346 = scmp.le.s32.totalorder 1, %s18
    %p347 = scmp.lt.s32.totalorder %s18, 3
    %p348 = pnand %p346, %p347
    %p349 = pneg %p348
    // Predicated region
    $region57: #{conv_forward.3} parent=5 // pred_check
      _
    $region58: #{conv_forward.3} parent=5 // pred_check_branch
      %351 = sbr.rel (%p348) target = $region60
    $region59: #{conv_forward.3} parent=5 // pred_region
      %s352 = ssub.s32 %s18, 1
      %s353 = smul.u32 16, %s23
      %p354 = scmp.lt.s32.totalorder %s353, 31
      %s355 = scalar_select %p354, %s353, 31
      %s356 = smul.addr %s355, 8
      %s357 = scalar_lea.vmem %s0, %s356
      %p358 = pneg %p44
      %p359 = pneg %p41
      %s360 = smul.u32 16, %s23
      %p361 = scmp.lt.s32.totalorder %s360, 31
      %s362 = scalar_select %p361, %s360, 31
      %s363 = smul.addr %s362, 4
      %s364 = scalar_lea.vmem %s1, %s363
      %p365 = pneg %p70
      %p366 = pneg %p67
      %p367 = pneg %p91
      %p368 = pneg %p88
      %p369 = pneg %p112
      %p370 = pneg %p109
      %p371 = pneg %p133
      %p372 = pneg %p130
      %p373 = pneg %p154
      %p374 = pneg %p151
      %p375 = pneg %p175
      %p376 = pneg %p172
      %p377 = pneg %p196
      %p378 = pneg %p193
      %p379 = pneg %p217
      %p380 = pneg %p214
      %p381 = pneg %p238
      %p382 = pneg %p235
      %p383 = pneg %p264
      %p384 = pneg %p261
      %s385 = smul.u32 16, %s23
      %p386 = scmp.lt.s32.totalorder %s385, 31
      %s387 = scalar_select %p386, %s385, 31
      %s388 = smul.addr %s387, 4
      %s389 = scalar_lea.vmem %s10, %s388
      %p390 = pneg %p285
      %p391 = pneg %p282
      %s392 = smul.u32 16, %s23
      %p393 = scmp.lt.s32.totalorder %s392, 31
      %s394 = scalar_select %p393, %s392, 31
      %s395 = smul.addr %s394, 8
      %s396 = scalar_lea.vmem %s0, %s395
      %s397 = smul.u32 16, %s23
      %s398 = smul.u32 16, %s23
      %p399 = scmp.lt.s32.totalorder %s398, 31
      %s400 = scalar_select %p399, %s398, 31
      %s401 = smul.addr %s400, 4
      %s402 = scalar_lea.vmem %s1, %s401
      %s403 = smul.u32 16, %s23
      %s404 = smul.u32 16, %s23
      %p405 = scmp.lt.s32.totalorder %s404, 31
      %s406 = scalar_select %p405, %s404, 31
      %s407 = smul.addr %s406, 4
      %s408 = scalar_lea.vmem %s10, %s407
      %s409 = smul.u32 16, %s23
      %p410 = scmp.eq.s32.totalorder %s23, 0
      // Predicated region
      $region61: #{conv_forward.3} parent=59 // pred_check
        %p411 = pneg %p410
      $region62: #{conv_forward.3} parent=59 // pred_check_branch
        %413 = sbr.rel (%p411) target = $region64
      $region63: #{conv_forward.3} parent=59 // pred_region
        %414 = vst [vmem:[#allocation2] sm:$0xff] 0.0
        %415 = vst [vmem:[#allocation2 + $0x8] sm:$0xff] 0.0
        %416 = vst [vmem:[#allocation2 + $0x10] sm:$0xff] 0.0
        %417 = vst [vmem:[#allocation2 + $0x18] sm:$0xff] 0.0
        %418 = vst [vmem:[#allocation2 + $0x20] sm:$0xff] 0.0
        %419 = vst [vmem:[#allocation2 + $0x28] sm:$0xff] 0.0
        %420 = vst [vmem:[#allocation2 + $0x30] sm:$0xff] 0.0
        %421 = vst [vmem:[#allocation2 + $0x38] sm:$0xff] 0.0
        %422 = vst [vmem:[#allocation2 + $0x40] sm:$0xff] 0.0
        %423 = vst [vmem:[#allocation2 + $0x48] sm:$0xff] 0.0
        %424 = vst [vmem:[#allocation2 + $0x50] sm:$0xff] 0.0
        %425 = vst [vmem:[#allocation2 + $0x58] sm:$0xff] 0.0
        %426 = vst [vmem:[#allocation2 + $0x60] sm:$0xff] 0.0
        %427 = vst [vmem:[#allocation2 + $0x68] sm:$0xff] 0.0
        %428 = vst [vmem:[#allocation2 + $0x70] sm:$0xff] 0.0
        %429 = vst [vmem:[#allocation2 + $0x78] sm:$0xff] 0.0
        %430 = vst [vmem:[#allocation3] sm:$0xff] 0.0
      $region64: #{conv_forward.3} parent=59 // pred_fallthru
        _
      %v431 = vld [vmem:[%s402] sm:$0xf]
      %v432 = vld [vmem:[%s402 + $0x4] sm:$0xf]
      %v433 = vld [vmem:[%s402 + $0x8] sm:$0xf]
      %v434 = vld [vmem:[%s402 + $0xc] sm:$0xf]
      %v435 = vld [vmem:[%s402 + $0x10] sm:$0xf]
      %v436 = vld [vmem:[%s402 + $0x14] sm:$0xf]
      %v437 = vld [vmem:[%s402 + $0x18] sm:$0xf]
      %v438 = vld [vmem:[%s402 + $0x1c] sm:$0xf]
      %v439 = vld [vmem:[%s402 + $0x20] sm:$0xf]
      %v440 = vld [vmem:[%s402 + $0x24] sm:$0xf]
      %v441 = vld [vmem:[%s402 + $0x28] sm:$0xf]
      %v442 = vld [vmem:[%s402 + $0x2c] sm:$0xf]
      %v443 = vld [vmem:[%s402 + $0x30] sm:$0xf]
      %v444 = vld [vmem:[%s402 + $0x34] sm:$0xf]
      %v445 = vld [vmem:[%s402 + $0x38] sm:$0xf]
      %v446 = vld [vmem:[%s402 + $0x3c] sm:$0xf]
      %v447 = vld [vmem:[%s2] sm:$0xf]
      %v448 = vld [vmem:[%s2 + $0x4] sm:$0xf]
      %v449 = vld [vmem:[%s2 + $0x8] sm:$0xf]
      %v450 = vld [vmem:[%s2 + $0xc] sm:$0xf]
      %v451 = vld [vmem:[%s2 + $0x10] sm:$0xf]
      %v452 = vld [vmem:[%s2 + $0x14] sm:$0xf]
      %v453 = vld [vmem:[%s2 + $0x18] sm:$0xf]
      %v454 = vld [vmem:[%s2 + $0x1c] sm:$0xf]
      %v455 = vld [vmem:[%s2 + $0x20] sm:$0xf]
      %v456 = vld [vmem:[%s2 + $0x24] sm:$0xf]
      %v457 = vld [vmem:[%s2 + $0x28] sm:$0xf]
      %v458 = vld [vmem:[%s2 + $0x2c] sm:$0xf]
      %v459 = vld [vmem:[%s2 + $0x30] sm:$0xf]
      %v460 = vld [vmem:[%s2 + $0x34] sm:$0xf]
      %v461 = vld [vmem:[%s2 + $0x38] sm:$0xf]
      %v462 = vld [vmem:[%s2 + $0x3c] sm:$0xf]
      %v463 = vld [vmem:[%s3] sm:$0x1]
      %v465 = vperm.slane %v463, 0
      %v483 = vunpack.c.l.b16 %v431
      %v484 = vunpack.c.l.b16 %v432
      %v485 = vunpack.c.l.b16 %v433
      %v486 = vunpack.c.l.b16 %v434
      %v487 = vunpack.c.l.b16 %v435
      %v488 = vunpack.c.l.b16 %v436
      %v489 = vunpack.c.l.b16 %v437
      %v490 = vunpack.c.l.b16 %v438
      %v491 = vunpack.c.l.b16 %v439
      %v492 = vunpack.c.l.b16 %v440
      %v493 = vunpack.c.l.b16 %v441
      %v494 = vunpack.c.l.b16 %v442
      %v495 = vunpack.c.l.b16 %v443
      %v496 = vunpack.c.l.b16 %v444
      %v497 = vunpack.c.l.b16 %v445
      %v498 = vunpack.c.l.b16 %v446
      %v499 = vpack.c.b16 %v484, %v483
      %v500 = vpack.c.b16 %v486, %v485
      %v501 = vpack.c.b16 %v488, %v487
      %v502 = vpack.c.b16 %v490, %v489
      %v503 = vpack.c.b16 %v492, %v491
      %v504 = vpack.c.b16 %v494, %v493
      %v505 = vpack.c.b16 %v496, %v495
      %v506 = vpack.c.b16 %v498, %v497
      %v531 = vunpack.c.l.b16 %v447
      %v532 = vunpack.c.l.b16 %v448
      %v533 = vunpack.c.l.b16 %v449
      %v534 = vunpack.c.l.b16 %v450
      %v535 = vunpack.c.l.b16 %v451
      %v536 = vunpack.c.l.b16 %v452
      %v537 = vunpack.c.l.b16 %v453
      %v538 = vunpack.c.l.b16 %v454
      %v539 = vunpack.c.l.b16 %v455
      %v540 = vunpack.c.l.b16 %v456
      %v541 = vunpack.c.l.b16 %v457
      %v542 = vunpack.c.l.b16 %v458
      %v543 = vunpack.c.l.b16 %v459
      %v544 = vunpack.c.l.b16 %v460
      %v545 = vunpack.c.l.b16 %v461
      %v546 = vunpack.c.l.b16 %v462
      %v547 = vpack.c.b16 %v532, %v531
      %v548 = vpack.c.b16 %v534, %v533
      %v549 = vpack.c.b16 %v536, %v535
      %v550 = vpack.c.b16 %v538, %v537
      %v551 = vpack.c.b16 %v540, %v539
      %v552 = vpack.c.b16 %v542, %v541
      %v553 = vpack.c.b16 %v544, %v543
      %v554 = vpack.c.b16 %v546, %v545
      %563 = vmatpush.bf16.msra.mxu0 %v554
      %564 = vmatpush.bf16.msra.mxu0 %v553
      %565 = vmatpush.bf16.msra.mxu0 %v552
      %566 = vmatpush.bf16.msra.mxu0 %v551
      %567 = vmatpush.bf16.msra.mxu0 %v550
      %568 = vmatpush.bf16.msra.mxu0 %v549
      %569 = vmatpush.bf16.msra.mxu0 %v548
      %570 = vmatpush.bf16.msra.mxu0 %v547
      %571 = vmatmul.bf16.gmra.mxu0 %v499
      %v572 = vpop.f32.mrf.mxu0
      %v573 = vadd.f32 %v465, %v572
      %v574 = vpop.f32.mrf.mxu0
      %v575 = vadd.f32 %v465, %v574
      %576 = vmatmul.bf16.gmra.mxu0 %v500
      %v577 = vpop.f32.mrf.mxu0
      %v578 = vadd.f32 %v465, %v577
      %v579 = vpop.f32.mrf.mxu0
      %v580 = vadd.f32 %v465, %v579
      %581 = vmatmul.bf16.gmra.mxu0 %v501
      %v582 = vpop.f32.mrf.mxu0
      %v583 = vadd.f32 %v465, %v582
      %v584 = vpop.f32.mrf.mxu0
      %v585 = vadd.f32 %v465, %v584
      %586 = vmatmul.bf16.gmra.mxu0 %v502
      %v587 = vpop.f32.mrf.mxu0
      %v588 = vadd.f32 %v465, %v587
      %v589 = vpop.f32.mrf.mxu0
      %v590 = vadd.f32 %v465, %v589
      %591 = vmatmul.bf16.gmra.mxu0 %v503
      %v592 = vpop.f32.mrf.mxu0
      %v593 = vadd.f32 %v465, %v592
      %v594 = vpop.f32.mrf.mxu0
      %v595 = vadd.f32 %v465, %v594
      %596 = vmatmul.bf16.gmra.mxu0 %v504
      %v597 = vpop.f32.mrf.mxu0
      %v598 = vadd.f32 %v465, %v597
      %v599 = vpop.f32.mrf.mxu0
      %v600 = vadd.f32 %v465, %v599
      %601 = vmatmul.bf16.gmra.mxu0 %v505
      %v602 = vpop.f32.mrf.mxu0
      %v603 = vadd.f32 %v465, %v602
      %v604 = vpop.f32.mrf.mxu0
      %v605 = vadd.f32 %v465, %v604
      %606 = vmatmul.bf16.gmra.mxu0 %v506
      %v607 = vpop.f32.mrf.mxu0
      %v608 = vadd.f32 %v465, %v607
      %v609 = vpop.f32.mrf.mxu0
      %v610 = vadd.f32 %v465, %v609
      %611 = vdwg.mxu0
      %v612 = vmax.f32 %v573, 0.0
      %v613 = vmax.f32 %v575, 0.0
      %v614 = vmax.f32 %v578, 0.0
      %v615 = vmax.f32 %v580, 0.0
      %v616 = vmax.f32 %v583, 0.0
      %v617 = vmax.f32 %v585, 0.0
      %v618 = vmax.f32 %v588, 0.0
      %v619 = vmax.f32 %v590, 0.0
      %v620 = vmax.f32 %v593, 0.0
      %v621 = vmax.f32 %v595, 0.0
      %v622 = vmax.f32 %v598, 0.0
      %v623 = vmax.f32 %v600, 0.0
      %v624 = vmax.f32 %v603, 0.0
      %v625 = vmax.f32 %v605, 0.0
      %v626 = vmax.f32 %v608, 0.0
      %v627 = vmax.f32 %v610, 0.0
      %v628 = vld [vmem:[%s396] sm:$0xff]
      %v629 = vld [vmem:[%s396 + $0x8] sm:$0xff]
      %v630 = vld [vmem:[%s396 + $0x10] sm:$0xff]
      %v631 = vld [vmem:[%s396 + $0x18] sm:$0xff]
      %v632 = vld [vmem:[%s396 + $0x20] sm:$0xff]
      %v633 = vld [vmem:[%s396 + $0x28] sm:$0xff]
      %v634 = vld [vmem:[%s396 + $0x30] sm:$0xff]
      %v635 = vld [vmem:[%s396 + $0x38] sm:$0xff]
      %v636 = vld [vmem:[%s396 + $0x40] sm:$0xff]
      %v637 = vld [vmem:[%s396 + $0x48] sm:$0xff]
      %v638 = vld [vmem:[%s396 + $0x50] sm:$0xff]
      %v639 = vld [vmem:[%s396 + $0x58] sm:$0xff]
      %v640 = vld [vmem:[%s396 + $0x60] sm:$0xff]
      %v641 = vld [vmem:[%s396 + $0x68] sm:$0xff]
      %v642 = vld [vmem:[%s396 + $0x70] sm:$0xff]
      %v643 = vld [vmem:[%s396 + $0x78] sm:$0xff]
      %v644 = vadd.f32 %v628, %v612
      %v645 = vadd.f32 %v629, %v613
      %v646 = vadd.f32 %v630, %v614
      %v647 = vadd.f32 %v631, %v615
      %v648 = vadd.f32 %v632, %v616
      %v649 = vadd.f32 %v633, %v617
      %v650 = vadd.f32 %v634, %v618
      %v651 = vadd.f32 %v635, %v619
      %v652 = vadd.f32 %v636, %v620
      %v653 = vadd.f32 %v637, %v621
      %v654 = vadd.f32 %v638, %v622
      %v655 = vadd.f32 %v639, %v623
      %v656 = vadd.f32 %v640, %v624
      %v657 = vadd.f32 %v641, %v625
      %v658 = vadd.f32 %v642, %v626
      %v659 = vadd.f32 %v643, %v627
      %v660 = vlaneseq
      %v661 = vshrl.u32 %v660, 7
      %v662 = vadd.s32 %v661, 8
      %v663 = vadd.s32 %v661, 16
      %v664 = vadd.s32 %v661, 24
      %v665 = vadd.s32 %v661, 32
      %v666 = vadd.s32 %v661, 40
      %v667 = vadd.s32 %v661, 48
      %v668 = vadd.s32 %v661, 56
      %v669 = vadd.s32 %v661, 64
      %v670 = vadd.s32 %v661, 72
      %v671 = vadd.s32 %v661, 80
      %v672 = vadd.s32 %v661, 88
      %v673 = vadd.s32 %v661, 96
      %v674 = vadd.s32 %v661, 104
      %v675 = vadd.s32 %v661, 112
      %v676 = vadd.s32 %v661, 120
      %s677 = smul.u32 %s23, 128
      %v678 = vstv %s677
      %v679 = vadd.s32 %v661, %v678
      %v680 = vadd.s32 %v662, %v678
      %v681 = vadd.s32 %v663, %v678
      %v682 = vadd.s32 %v664, %v678
      %v683 = vadd.s32 %v665, %v678
      %v684 = vadd.s32 %v666, %v678
      %v685 = vadd.s32 %v667, %v678
      %v686 = vadd.s32 %v668, %v678
      %v687 = vadd.s32 %v669, %v678
      %v688 = vadd.s32 %v670, %v678
      %v689 = vadd.s32 %v671, %v678
      %v690 = vadd.s32 %v672, %v678
      %v691 = vadd.s32 %v673, %v678
      %v692 = vadd.s32 %v674, %v678
      %v693 = vadd.s32 %v675, %v678
      %v694 = vadd.s32 %v676, %v678
      %vm695 = vcmp.lt.s32.totalorder %v679, 200
      %vm696 = vcmp.lt.s32.totalorder %v680, 200
      %vm697 = vcmp.lt.s32.totalorder %v681, 200
      %vm698 = vcmp.lt.s32.totalorder %v682, 200
      %vm699 = vcmp.lt.s32.totalorder %v683, 200
      %vm700 = vcmp.lt.s32.totalorder %v684, 200
      %vm701 = vcmp.lt.s32.totalorder %v685, 200
      %vm702 = vcmp.lt.s32.totalorder %v686, 200
      %vm703 = vcmp.lt.s32.totalorder %v687, 200
      %vm704 = vcmp.lt.s32.totalorder %v688, 200
      %vm705 = vcmp.lt.s32.totalorder %v689, 200
      %vm706 = vcmp.lt.s32.totalorder %v690, 200
      %vm707 = vcmp.lt.s32.totalorder %v691, 200
      %vm708 = vcmp.lt.s32.totalorder %v692, 200
      %vm709 = vcmp.lt.s32.totalorder %v693, 200
      %vm710 = vcmp.lt.s32.totalorder %v694, 200
      %v711 = vsel %vm695, 1, 0
      %v712 = vsel %vm696, 1, 0
      %v713 = vsel %vm697, 1, 0
      %v714 = vsel %vm698, 1, 0
      %v715 = vsel %vm699, 1, 0
      %v716 = vsel %vm700, 1, 0
      %v717 = vsel %vm701, 1, 0
      %v718 = vsel %vm702, 1, 0
      %v719 = vsel %vm703, 1, 0
      %v720 = vsel %vm704, 1, 0
      %v721 = vsel %vm705, 1, 0
      %v722 = vsel %vm706, 1, 0
      %v723 = vsel %vm707, 1, 0
      %v724 = vsel %vm708, 1, 0
      %v725 = vsel %vm709, 1, 0
      %v726 = vsel %vm710, 1, 0
      %vm727 = vcmp.eq.s32.totalorder %v711, 1
      %vm728 = vcmp.eq.s32.totalorder %v712, 1
      %vm729 = vcmp.eq.s32.totalorder %v713, 1
      %vm730 = vcmp.eq.s32.totalorder %v714, 1
      %vm731 = vcmp.eq.s32.totalorder %v715, 1
      %vm732 = vcmp.eq.s32.totalorder %v716, 1
      %vm733 = vcmp.eq.s32.totalorder %v717, 1
      %vm734 = vcmp.eq.s32.totalorder %v718, 1
      %vm735 = vcmp.eq.s32.totalorder %v719, 1
      %vm736 = vcmp.eq.s32.totalorder %v720, 1
      %vm737 = vcmp.eq.s32.totalorder %v721, 1
      %vm738 = vcmp.eq.s32.totalorder %v722, 1
      %vm739 = vcmp.eq.s32.totalorder %v723, 1
      %vm740 = vcmp.eq.s32.totalorder %v724, 1
      %vm741 = vcmp.eq.s32.totalorder %v725, 1
      %vm742 = vcmp.eq.s32.totalorder %v726, 1
      %v743 = vsel %vm727, %v644, 0.0
      %v744 = vsel %vm728, %v645, 0.0
      %v745 = vsel %vm729, %v646, 0.0
      %v746 = vsel %vm730, %v647, 0.0
      %v747 = vsel %vm731, %v648, 0.0
      %v748 = vsel %vm732, %v649, 0.0
      %v749 = vsel %vm733, %v650, 0.0
      %v750 = vsel %vm734, %v651, 0.0
      %v751 = vsel %vm735, %v652, 0.0
      %v752 = vsel %vm736, %v653, 0.0
      %v753 = vsel %vm737, %v654, 0.0
      %v754 = vsel %vm738, %v655, 0.0
      %v755 = vsel %vm739, %v656, 0.0
      %v756 = vsel %vm740, %v657, 0.0
      %v757 = vsel %vm741, %v658, 0.0
      %v758 = vsel %vm742, %v659, 0.0
      %v759 = vld [vmem:[#allocation2] sm:$0xff]
      %v760 = vld [vmem:[#allocation2 + $0x8] sm:$0xff]
      %v761 = vld [vmem:[#allocation2 + $0x10] sm:$0xff]
      %v762 = vld [vmem:[#allocation2 + $0x18] sm:$0xff]
      %v763 = vld [vmem:[#allocation2 + $0x20] sm:$0xff]
      %v764 = vld [vmem:[#allocation2 + $0x28] sm:$0xff]
      %v765 = vld [vmem:[#allocation2 + $0x30] sm:$0xff]
      %v766 = vld [vmem:[#allocation2 + $0x38] sm:$0xff]
      %v767 = vld [vmem:[#allocation2 + $0x40] sm:$0xff]
      %v768 = vld [vmem:[#allocation2 + $0x48] sm:$0xff]
      %v769 = vld [vmem:[#allocation2 + $0x50] sm:$0xff]
      %v770 = vld [vmem:[#allocation2 + $0x58] sm:$0xff]
      %v771 = vld [vmem:[#allocation2 + $0x60] sm:$0xff]
      %v772 = vld [vmem:[#allocation2 + $0x68] sm:$0xff]
      %v773 = vld [vmem:[#allocation2 + $0x70] sm:$0xff]
      %v774 = vld [vmem:[#allocation2 + $0x78] sm:$0xff]
      %775 = vxpose.xlu0.b32.start [1/16] %v743, 128
      %776 = vxpose.xlu0.b32.cont [2/16] %v744, 128
      %777 = vxpose.xlu0.b32.cont [3/16] %v745, 128
      %778 = vxpose.xlu0.b32.cont [4/16] %v746, 128
      %779 = vxpose.xlu0.b32.cont [5/16] %v747, 128
      %780 = vxpose.xlu0.b32.cont [6/16] %v748, 128
      %781 = vxpose.xlu0.b32.cont [7/16] %v749, 128
      %782 = vxpose.xlu0.b32.cont [8/16] %v750, 128
      %783 = vxpose.xlu0.b32.cont [9/16] %v751, 128
      %784 = vxpose.xlu0.b32.cont [10/16] %v752, 128
      %785 = vxpose.xlu0.b32.cont [11/16] %v753, 128
      %786 = vxpose.xlu0.b32.cont [12/16] %v754, 128
      %787 = vxpose.xlu0.b32.cont [13/16] %v755, 128
      %788 = vxpose.xlu0.b32.cont [14/16] %v756, 128
      %789 = vxpose.xlu0.b32.cont [15/16] %v757, 128
      %790 = vxpose.xlu0.b32.end [16/16] %v758, 128
      %v791 = vpop.trf.xlu0
      %v792 = vpop.trf.xlu0
      %v793 = vpop.trf.xlu0
      %v794 = vpop.trf.xlu0
      %v795 = vpop.trf.xlu0
      %v796 = vpop.trf.xlu0
      %v797 = vpop.trf.xlu0
      %v798 = vpop.trf.xlu0
      %v799 = vpop.trf.xlu0
      %v800 = vpop.trf.xlu0
      %v801 = vpop.trf.xlu0
      %v802 = vpop.trf.xlu0
      %v803 = vpop.trf.xlu0
      %v804 = vpop.trf.xlu0
      %v805 = vpop.trf.xlu0
      %v806 = vpop.trf.xlu0
      %807 = vmatpush.msra.mxu0 %v758
      %808 = vmatpush.msra.mxu0 %v757
      %809 = vmatpush.msra.mxu0 %v756
      %810 = vmatpush.msra.mxu0 %v755
      %811 = vmatpush.msra.mxu0 %v754
      %812 = vmatpush.msra.mxu0 %v753
      %813 = vmatpush.msra.mxu0 %v752
      %814 = vmatpush.msra.mxu0 %v751
      %815 = vmatpush.msra.mxu0 %v750
      %816 = vmatpush.msra.mxu0 %v749
      %817 = vmatpush.msra.mxu0 %v748
      %818 = vmatpush.msra.mxu0 %v747
      %819 = vmatpush.msra.mxu0 %v746
      %820 = vmatpush.msra.mxu0 %v745
      %821 = vmatpush.msra.mxu0 %v744
      %822 = vmatpush.msra.mxu0 %v743
      %823 = vmatmul.f32.gmra.mxu0 %v791
      %v824 = vpop.f32.mrf.mxu0
      %v825 = vadd.f32 0.0, %v824
      %826 = vmatmul.f32.gmra.mxu0 %v792
      %v827 = vpop.f32.mrf.mxu0
      %v828 = vadd.f32 0.0, %v827
      %829 = vmatmul.f32.gmra.mxu0 %v793
      %v830 = vpop.f32.mrf.mxu0
      %v831 = vadd.f32 0.0, %v830
      %832 = vmatmul.f32.gmra.mxu0 %v794
      %v833 = vpop.f32.mrf.mxu0
      %v834 = vadd.f32 0.0, %v833
      %835 = vmatmul.f32.gmra.mxu0 %v795
      %v836 = vpop.f32.mrf.mxu0
      %v837 = vadd.f32 0.0, %v836
      %838 = vmatmul.f32.gmra.mxu0 %v796
      %v839 = vpop.f32.mrf.mxu0
      %v840 = vadd.f32 0.0, %v839
      %841 = vmatmul.f32.gmra.mxu0 %v797
      %v842 = vpop.f32.mrf.mxu0
      %v843 = vadd.f32 0.0, %v842
      %844 = vmatmul.f32.gmra.mxu0 %v798
      %v845 = vpop.f32.mrf.mxu0
      %v846 = vadd.f32 0.0, %v845
      %847 = vmatmul.f32.gmra.mxu0 %v799
      %v848 = vpop.f32.mrf.mxu0
      %v849 = vadd.f32 0.0, %v848
      %850 = vmatmul.f32.gmra.mxu0 %v800
      %v851 = vpop.f32.mrf.mxu0
      %v852 = vadd.f32 0.0, %v851
      %853 = vmatmul.f32.gmra.mxu0 %v801
      %v854 = vpop.f32.mrf.mxu0
      %v855 = vadd.f32 0.0, %v854
      %856 = vmatmul.f32.gmra.mxu0 %v802
      %v857 = vpop.f32.mrf.mxu0
      %v858 = vadd.f32 0.0, %v857
      %859 = vmatmul.f32.gmra.mxu0 %v803
      %v860 = vpop.f32.mrf.mxu0
      %v861 = vadd.f32 0.0, %v860
      %862 = vmatmul.f32.gmra.mxu0 %v804
      %v863 = vpop.f32.mrf.mxu0
      %v864 = vadd.f32 0.0, %v863
      %865 = vmatmul.f32.gmra.mxu0 %v805
      %v866 = vpop.f32.mrf.mxu0
      %v867 = vadd.f32 0.0, %v866
      %868 = vmatmul.f32.gmra.mxu0 %v806
      %v869 = vpop.f32.mrf.mxu0
      %v870 = vadd.f32 0.0, %v869
      %871 = vdwg.mxu0
      %v872 = vadd.f32 %v759, %v825
      %v873 = vadd.f32 %v760, %v828
      %v874 = vadd.f32 %v761, %v831
      %v875 = vadd.f32 %v762, %v834
      %v876 = vadd.f32 %v763, %v837
      %v877 = vadd.f32 %v764, %v840
      %v878 = vadd.f32 %v765, %v843
      %v879 = vadd.f32 %v766, %v846
      %v880 = vadd.f32 %v767, %v849
      %v881 = vadd.f32 %v768, %v852
      %v882 = vadd.f32 %v769, %v855
      %v883 = vadd.f32 %v770, %v858
      %v884 = vadd.f32 %v771, %v861
      %v885 = vadd.f32 %v772, %v864
      %v886 = vadd.f32 %v773, %v867
      %v887 = vadd.f32 %v774, %v870
      %888 = vst [vmem:[#allocation2] sm:$0xff] %v872
      %889 = vst [vmem:[#allocation2 + $0x8] sm:$0xff] %v873
      %890 = vst [vmem:[#allocation2 + $0x10] sm:$0xff] %v874
      %891 = vst [vmem:[#allocation2 + $0x18] sm:$0xff] %v875
      %892 = vst [vmem:[#allocation2 + $0x20] sm:$0xff] %v876
      %893 = vst [vmem:[#allocation2 + $0x28] sm:$0xff] %v877
      %894 = vst [vmem:[#allocation2 + $0x30] sm:$0xff] %v878
      %895 = vst [vmem:[#allocation2 + $0x38] sm:$0xff] %v879
      %896 = vst [vmem:[#allocation2 + $0x40] sm:$0xff] %v880
      %897 = vst [vmem:[#allocation2 + $0x48] sm:$0xff] %v881
      %898 = vst [vmem:[#allocation2 + $0x50] sm:$0xff] %v882
      %899 = vst [vmem:[#allocation2 + $0x58] sm:$0xff] %v883
      %900 = vst [vmem:[#allocation2 + $0x60] sm:$0xff] %v884
      %901 = vst [vmem:[#allocation2 + $0x68] sm:$0xff] %v885
      %902 = vst [vmem:[#allocation2 + $0x70] sm:$0xff] %v886
      %903 = vst [vmem:[#allocation2 + $0x78] sm:$0xff] %v887
      %v904 = vld [vmem:[#allocation3] sm:$0xff]
      %v905 = vadd.f32 %v743, %v744
      %v906 = vadd.f32 %v905, %v745
      %v907 = vadd.f32 %v906, %v746
      %v908 = vadd.f32 %v907, %v747
      %v909 = vadd.f32 %v908, %v748
      %v910 = vadd.f32 %v909, %v749
      %v911 = vadd.f32 %v910, %v750
      %v912 = vadd.f32 %v911, %v751
      %v913 = vadd.f32 %v912, %v752
      %v914 = vadd.f32 %v913, %v753
      %v915 = vadd.f32 %v914, %v754
      %v916 = vadd.f32 %v915, %v755
      %v917 = vadd.f32 %v916, %v756
      %v918 = vadd.f32 %v917, %v757
      %v919 = vadd.f32 %v918, %v758
      %v920 = vadd.f32 %v904, %v919
      %921 = vst [vmem:[#allocation3] sm:$0xff] %v920
      %v922 = vpack.c.bf16 %v645, %v644
      %v923 = vpack.c.bf16 %v647, %v646
      %v924 = vpack.c.bf16 %v649, %v648
      %v925 = vpack.c.bf16 %v651, %v650
      %v926 = vpack.c.bf16 %v653, %v652
      %v927 = vpack.c.bf16 %v655, %v654
      %v928 = vpack.c.bf16 %v657, %v656
      %v929 = vpack.c.bf16 %v659, %v658
      %v930 = vld [vmem:[%s4] sm:$0xf]
      %v931 = vld [vmem:[%s4 + $0x4] sm:$0xf]
      %v932 = vld [vmem:[%s4 + $0x8] sm:$0xf]
      %v933 = vld [vmem:[%s4 + $0xc] sm:$0xf]
      %v934 = vld [vmem:[%s4 + $0x10] sm:$0xf]
      %v935 = vld [vmem:[%s4 + $0x14] sm:$0xf]
      %v936 = vld [vmem:[%s4 + $0x18] sm:$0xf]
      %v937 = vld [vmem:[%s4 + $0x1c] sm:$0xf]
      %v938 = vld [vmem:[%s4 + $0x20] sm:$0xf]
      %v939 = vld [vmem:[%s4 + $0x24] sm:$0xf]
      %v940 = vld [vmem:[%s4 + $0x28] sm:$0xf]
      %v941 = vld [vmem:[%s4 + $0x2c] sm:$0xf]
      %v942 = vld [vmem:[%s4 + $0x30] sm:$0xf]
      %v943 = vld [vmem:[%s4 + $0x34] sm:$0xf]
      %v944 = vld [vmem:[%s4 + $0x38] sm:$0xf]
      %v945 = vld [vmem:[%s4 + $0x3c] sm:$0xf]
      %v946 = vld [vmem:[%s5] sm:$0x1]
      %v948 = vperm.slane %v946, 0
      %v966 = vunpack.c.l.b16 %v930
      %v967 = vunpack.c.l.b16 %v931
      %v968 = vunpack.c.l.b16 %v932
      %v969 = vunpack.c.l.b16 %v933
      %v970 = vunpack.c.l.b16 %v934
      %v971 = vunpack.c.l.b16 %v935
      %v972 = vunpack.c.l.b16 %v936
      %v973 = vunpack.c.l.b16 %v937
      %v974 = vunpack.c.l.b16 %v938
      %v975 = vunpack.c.l.b16 %v939
      %v976 = vunpack.c.l.b16 %v940
      %v977 = vunpack.c.l.b16 %v941
      %v978 = vunpack.c.l.b16 %v942
      %v979 = vunpack.c.l.b16 %v943
      %v980 = vunpack.c.l.b16 %v944
      %v981 = vunpack.c.l.b16 %v945
      %v982 = vpack.c.b16 %v967, %v966
      %v983 = vpack.c.b16 %v969, %v968
      %v984 = vpack.c.b16 %v971, %v970
      %v985 = vpack.c.b16 %v973, %v972
      %v986 = vpack.c.b16 %v975, %v974
      %v987 = vpack.c.b16 %v977, %v976
      %v988 = vpack.c.b16 %v979, %v978
      %v989 = vpack.c.b16 %v981, %v980
      %998 = vmatpush.bf16.msra.mxu0 %v989
      %999 = vmatpush.bf16.msra.mxu0 %v988
      %1000 = vmatpush.bf16.msra.mxu0 %v987
      %1001 = vmatpush.bf16.msra.mxu0 %v986
      %1002 = vmatpush.bf16.msra.mxu0 %v985
      %1003 = vmatpush.bf16.msra.mxu0 %v984
      %1004 = vmatpush.bf16.msra.mxu0 %v983
      %1005 = vmatpush.bf16.msra.mxu0 %v982
      %1006 = vmatmul.bf16.gmra.mxu0 %v922
      %v1007 = vpop.f32.mrf.mxu0
      %v1008 = vadd.f32 %v948, %v1007
      %v1009 = vpop.f32.mrf.mxu0
      %v1010 = vadd.f32 %v948, %v1009
      %1011 = vmatmul.bf16.gmra.mxu0 %v923
      %v1012 = vpop.f32.mrf.mxu0
      %v1013 = vadd.f32 %v948, %v1012
      %v1014 = vpop.f32.mrf.mxu0
      %v1015 = vadd.f32 %v948, %v1014
      %1016 = vmatmul.bf16.gmra.mxu0 %v924
      %v1017 = vpop.f32.mrf.mxu0
      %v1018 = vadd.f32 %v948, %v1017
      %v1019 = vpop.f32.mrf.mxu0
      %v1020 = vadd.f32 %v948, %v1019
      %1021 = vmatmul.bf16.gmra.mxu0 %v925
      %v1022 = vpop.f32.mrf.mxu0
      %v1023 = vadd.f32 %v948, %v1022
      %v1024 = vpop.f32.mrf.mxu0
      %v1025 = vadd.f32 %v948, %v1024
      %1026 = vmatmul.bf16.gmra.mxu0 %v926
      %v1027 = vpop.f32.mrf.mxu0
      %v1028 = vadd.f32 %v948, %v1027
      %v1029 = vpop.f32.mrf.mxu0
      %v1030 = vadd.f32 %v948, %v1029
      %1031 = vmatmul.bf16.gmra.mxu0 %v927
      %v1032 = vpop.f32.mrf.mxu0
      %v1033 = vadd.f32 %v948, %v1032
      %v1034 = vpop.f32.mrf.mxu0
      %v1035 = vadd.f32 %v948, %v1034
      %1036 = vmatmul.bf16.gmra.mxu0 %v928
      %v1037 = vpop.f32.mrf.mxu0
      %v1038 = vadd.f32 %v948, %v1037
      %v1039 = vpop.f32.mrf.mxu0
      %v1040 = vadd.f32 %v948, %v1039
      %1041 = vmatmul.bf16.gmra.mxu0 %v929
      %v1042 = vpop.f32.mrf.mxu0
      %v1043 = vadd.f32 %v948, %v1042
      %v1044 = vpop.f32.mrf.mxu0
      %v1045 = vadd.f32 %v948, %v1044
      %1046 = vdwg.mxu0
      %v1047 = vmax.f32 %v1008, 0.0
      %v1048 = vmax.f32 %v1010, 0.0
      %v1049 = vmax.f32 %v1013, 0.0
      %v1050 = vmax.f32 %v1015, 0.0
      %v1051 = vmax.f32 %v1018, 0.0
      %v1052 = vmax.f32 %v1020, 0.0
      %v1053 = vmax.f32 %v1023, 0.0
      %v1054 = vmax.f32 %v1025, 0.0
      %v1055 = vmax.f32 %v1028, 0.0
      %v1056 = vmax.f32 %v1030, 0.0
      %v1057 = vmax.f32 %v1033, 0.0
      %v1058 = vmax.f32 %v1035, 0.0
      %v1059 = vmax.f32 %v1038, 0.0
      %v1060 = vmax.f32 %v1040, 0.0
      %v1061 = vmax.f32 %v1043, 0.0
      %v1062 = vmax.f32 %v1045, 0.0
      %v1063 = vpack.c.bf16 %v1048, %v1047
      %v1064 = vpack.c.bf16 %v1050, %v1049
      %v1065 = vpack.c.bf16 %v1052, %v1051
      %v1066 = vpack.c.bf16 %v1054, %v1053
      %v1067 = vpack.c.bf16 %v1056, %v1055
      %v1068 = vpack.c.bf16 %v1058, %v1057
      %v1069 = vpack.c.bf16 %v1060, %v1059
      %v1070 = vpack.c.bf16 %v1062, %v1061
      %v1071 = vld [vmem:[%s6] sm:$0xf]
      %v1072 = vld [vmem:[%s6 + $0x4] sm:$0xf]
      %v1073 = vld [vmem:[%s6 + $0x8] sm:$0xf]
      %v1074 = vld [vmem:[%s6 + $0xc] sm:$0xf]
      %v1075 = vld [vmem:[%s6 + $0x10] sm:$0xf]
      %v1076 = vld [vmem:[%s6 + $0x14] sm:$0xf]
      %v1077 = vld [vmem:[%s6 + $0x18] sm:$0xf]
      %v1078 = vld [vmem:[%s6 + $0x1c] sm:$0xf]
      %v1079 = vld [vmem:[%s6 + $0x20] sm:$0xf]
      %v1080 = vld [vmem:[%s6 + $0x24] sm:$0xf]
      %v1081 = vld [vmem:[%s6 + $0x28] sm:$0xf]
      %v1082 = vld [vmem:[%s6 + $0x2c] sm:$0xf]
      %v1083 = vld [vmem:[%s6 + $0x30] sm:$0xf]
      %v1084 = vld [vmem:[%s6 + $0x34] sm:$0xf]
      %v1085 = vld [vmem:[%s6 + $0x38] sm:$0xf]
      %v1086 = vld [vmem:[%s6 + $0x3c] sm:$0xf]
      %v1087 = vld [vmem:[%s7] sm:$0x1]
      %v1089 = vperm.slane %v1087, 0
      %v1107 = vunpack.c.l.b16 %v1071
      %v1108 = vunpack.c.l.b16 %v1072
      %v1109 = vunpack.c.l.b16 %v1073
      %v1110 = vunpack.c.l.b16 %v1074
      %v1111 = vunpack.c.l.b16 %v1075
      %v1112 = vunpack.c.l.b16 %v1076
      %v1113 = vunpack.c.l.b16 %v1077
      %v1114 = vunpack.c.l.b16 %v1078
      %v1115 = vunpack.c.l.b16 %v1079
      %v1116 = vunpack.c.l.b16 %v1080
      %v1117 = vunpack.c.l.b16 %v1081
      %v1118 = vunpack.c.l.b16 %v1082
      %v1119 = vunpack.c.l.b16 %v1083
      %v1120 = vunpack.c.l.b16 %v1084
      %v1121 = vunpack.c.l.b16 %v1085
      %v1122 = vunpack.c.l.b16 %v1086
      %v1123 = vpack.c.b16 %v1108, %v1107
      %v1124 = vpack.c.b16 %v1110, %v1109
      %v1125 = vpack.c.b16 %v1112, %v1111
      %v1126 = vpack.c.b16 %v1114, %v1113
      %v1127 = vpack.c.b16 %v1116, %v1115
      %v1128 = vpack.c.b16 %v1118, %v1117
      %v1129 = vpack.c.b16 %v1120, %v1119
      %v1130 = vpack.c.b16 %v1122, %v1121
      %1139 = vmatpush.bf16.msra.mxu0 %v1130
      %1140 = vmatpush.bf16.msra.mxu0 %v1129
      %1141 = vmatpush.bf16.msra.mxu0 %v1128
      %1142 = vmatpush.bf16.msra.mxu0 %v1127
      %1143 = vmatpush.bf16.msra.mxu0 %v1126
      %1144 = vmatpush.bf16.msra.mxu0 %v1125
      %1145 = vmatpush.bf16.msra.mxu0 %v1124
      %1146 = vmatpush.bf16.msra.mxu0 %v1123
      %1147 = vmatmul.bf16.gmra.mxu0 %v1063
      %v1148 = vpop.f32.mrf.mxu0
      %v1149 = vadd.f32 %v1089, %v1148
      %v1150 = vpop.f32.mrf.mxu0
      %v1151 = vadd.f32 %v1089, %v1150
      %1152 = vmatmul.bf16.gmra.mxu0 %v1064
      %v1153 = vpop.f32.mrf.mxu0
      %v1154 = vadd.f32 %v1089, %v1153
      %v1155 = vpop.f32.mrf.mxu0
      %v1156 = vadd.f32 %v1089, %v1155
      %1157 = vmatmul.bf16.gmra.mxu0 %v1065
      %v1158 = vpop.f32.mrf.mxu0
      %v1159 = vadd.f32 %v1089, %v1158
      %v1160 = vpop.f32.mrf.mxu0
      %v1161 = vadd.f32 %v1089, %v1160
      %1162 = vmatmul.bf16.gmra.mxu0 %v1066
      %v1163 = vpop.f32.mrf.mxu0
      %v1164 = vadd.f32 %v1089, %v1163
      %v1165 = vpop.f32.mrf.mxu0
      %v1166 = vadd.f32 %v1089, %v1165
      %1167 = vmatmul.bf16.gmra.mxu0 %v1067
      %v1168 = vpop.f32.mrf.mxu0
      %v1169 = vadd.f32 %v1089, %v1168
      %v1170 = vpop.f32.mrf.mxu0
      %v1171 = vadd.f32 %v1089, %v1170
      %1172 = vmatmul.bf16.gmra.mxu0 %v1068
      %v1173 = vpop.f32.mrf.mxu0
      %v1174 = vadd.f32 %v1089, %v1173
      %v1175 = vpop.f32.mrf.mxu0
      %v1176 = vadd.f32 %v1089, %v1175
      %1177 = vmatmul.bf16.gmra.mxu0 %v1069
      %v1178 = vpop.f32.mrf.mxu0
      %v1179 = vadd.f32 %v1089, %v1178
      %v1180 = vpop.f32.mrf.mxu0
      %v1181 = vadd.f32 %v1089, %v1180
      %1182 = vmatmul.bf16.gmra.mxu0 %v1070
      %v1183 = vpop.f32.mrf.mxu0
      %v1184 = vadd.f32 %v1089, %v1183
      %v1185 = vpop.f32.mrf.mxu0
      %v1186 = vadd.f32 %v1089, %v1185
      %1187 = vdwg.mxu0
      %v1188 = vmax.f32 %v1149, 0.0
      %v1189 = vmax.f32 %v1151, 0.0
      %v1190 = vmax.f32 %v1154, 0.0
      %v1191 = vmax.f32 %v1156, 0.0
      %v1192 = vmax.f32 %v1159, 0.0
      %v1193 = vmax.f32 %v1161, 0.0
      %v1194 = vmax.f32 %v1164, 0.0
      %v1195 = vmax.f32 %v1166, 0.0
      %v1196 = vmax.f32 %v1169, 0.0
      %v1197 = vmax.f32 %v1171, 0.0
      %v1198 = vmax.f32 %v1174, 0.0
      %v1199 = vmax.f32 %v1176, 0.0
      %v1200 = vmax.f32 %v1179, 0.0
      %v1201 = vmax.f32 %v1181, 0.0
      %v1202 = vmax.f32 %v1184, 0.0
      %v1203 = vmax.f32 %v1186, 0.0
      %v1204 = vld [vmem:[%s8] sm:$0x1]
      %v1206 = vperm.slane %v1204, 0
      %v1208 = vmul.f32 %v1188, %v1206
      %v1209 = vmul.f32 %v1189, %v1206
      %v1210 = vmul.f32 %v1190, %v1206
      %v1211 = vmul.f32 %v1191, %v1206
      %v1212 = vmul.f32 %v1192, %v1206
      %v1213 = vmul.f32 %v1193, %v1206
      %v1214 = vmul.f32 %v1194, %v1206
      %v1215 = vmul.f32 %v1195, %v1206
      %v1216 = vmul.f32 %v1196, %v1206
      %v1217 = vmul.f32 %v1197, %v1206
      %v1218 = vmul.f32 %v1198, %v1206
      %v1219 = vmul.f32 %v1199, %v1206
      %v1220 = vmul.f32 %v1200, %v1206
      %v1221 = vmul.f32 %v1201, %v1206
      %v1222 = vmul.f32 %v1202, %v1206
      %v1223 = vmul.f32 %v1203, %v1206
      %v1224 = vld [vmem:[%s9] sm:$0x1]
      %v1226 = vperm.slane %v1224, 0
      %v1228 = vadd.f32 %v1208, %v1226
      %v1229 = vadd.f32 %v1209, %v1226
      %v1230 = vadd.f32 %v1210, %v1226
      %v1231 = vadd.f32 %v1211, %v1226
      %v1232 = vadd.f32 %v1212, %v1226
      %v1233 = vadd.f32 %v1213, %v1226
      %v1234 = vadd.f32 %v1214, %v1226
      %v1235 = vadd.f32 %v1215, %v1226
      %v1236 = vadd.f32 %v1216, %v1226
      %v1237 = vadd.f32 %v1217, %v1226
      %v1238 = vadd.f32 %v1218, %v1226
      %v1239 = vadd.f32 %v1219, %v1226
      %v1240 = vadd.f32 %v1220, %v1226
      %v1241 = vadd.f32 %v1221, %v1226
      %v1242 = vadd.f32 %v1222, %v1226
      %v1243 = vadd.f32 %v1223, %v1226
      %v1244 = vpack.c.bf16 %v1228, %v1228
      %v1245 = vpack.c.bf16 %v1229, %v1229
      %v1246 = vpack.c.bf16 %v1230, %v1230
      %v1247 = vpack.c.bf16 %v1231, %v1231
      %v1248 = vpack.c.bf16 %v1232, %v1232
      %v1249 = vpack.c.bf16 %v1233, %v1233
      %v1250 = vpack.c.bf16 %v1234, %v1234
      %v1251 = vpack.c.bf16 %v1235, %v1235
      %v1252 = vpack.c.bf16 %v1236, %v1236
      %v1253 = vpack.c.bf16 %v1237, %v1237
      %v1254 = vpack.c.bf16 %v1238, %v1238
      %v1255 = vpack.c.bf16 %v1239, %v1239
      %v1256 = vpack.c.bf16 %v1240, %v1240
      %v1257 = vpack.c.bf16 %v1241, %v1241
      %v1258 = vpack.c.bf16 %v1242, %v1242
      %v1259 = vpack.c.bf16 %v1243, %v1243
      %1260 = vst [vmem:[%s408] sm:$0xf] %v1244
      %1261 = vst [vmem:[%s408 + $0x4] sm:$0xf] %v1245
      %1262 = vst [vmem:[%s408 + $0x8] sm:$0xf] %v1246
      %1263 = vst [vmem:[%s408 + $0xc] sm:$0xf] %v1247
      %1264 = vst [vmem:[%s408 + $0x10] sm:$0xf] %v1248
      %1265 = vst [vmem:[%s408 + $0x14] sm:$0xf] %v1249
      %1266 = vst [vmem:[%s408 + $0x18] sm:$0xf] %v1250
      %1267 = vst [vmem:[%s408 + $0x1c] sm:$0xf] %v1251
      %1268 = vst [vmem:[%s408 + $0x20] sm:$0xf] %v1252
      %1269 = vst [vmem:[%s408 + $0x24] sm:$0xf] %v1253
      %1270 = vst [vmem:[%s408 + $0x28] sm:$0xf] %v1254
      %1271 = vst [vmem:[%s408 + $0x2c] sm:$0xf] %v1255
      %1272 = vst [vmem:[%s408 + $0x30] sm:$0xf] %v1256
      %1273 = vst [vmem:[%s408 + $0x34] sm:$0xf] %v1257
      %1274 = vst [vmem:[%s408 + $0x38] sm:$0xf] %v1258
      %1275 = vst [vmem:[%s408 + $0x3c] sm:$0xf] %v1259
      %p1276 = scmp.eq.s32.totalorder %s23, 1
      // Predicated region
      $region65: #{conv_forward.3} parent=59 // pred_check
        %p1277 = pneg %p1276
      $region66: #{conv_forward.3} parent=59 // pred_check_branch
        %1279 = sbr.rel (%p1277) target = $region68
      $region67: #{conv_forward.3} parent=59 // pred_region
        %v1280 = vld [vmem:[#allocation3] sm:$0xff]
        %v1281 = vrot.slane %v1280, 4
        %v1282 = vadd.f32 %v1280, %v1281
        %v1283 = vrot.slane %v1282, 2
        %v1284 = vadd.f32 %v1282, %v1283
        %v1285 = vrot.slane %v1284, 1
        %v1286 = vadd.f32 %v1284, %v1285
        %vm1287 = vcmp.eq.s32.totalorder %v661, 0
        %v1288 = vsel %vm1287, %v1286, 0.0
        %1289 = vxpose.xlu0.b32.start [1/16] %v1288, 128
        %1290 = vxpose.xlu0.b32.cont [2/16] 0.0, 128
        %1291 = vxpose.xlu0.b32.cont [3/16] 0.0, 128
        %1292 = vxpose.xlu0.b32.cont [4/16] 0.0, 128
        %1293 = vxpose.xlu0.b32.cont [5/16] 0.0, 128
        %1294 = vxpose.xlu0.b32.cont [6/16] 0.0, 128
        %1295 = vxpose.xlu0.b32.cont [7/16] 0.0, 128
        %1296 = vxpose.xlu0.b32.cont [8/16] 0.0, 128
        %1297 = vxpose.xlu0.b32.cont [9/16] 0.0, 128
        %1298 = vxpose.xlu0.b32.cont [10/16] 0.0, 128
        %1299 = vxpose.xlu0.b32.cont [11/16] 0.0, 128
        %1300 = vxpose.xlu0.b32.cont [12/16] 0.0, 128
        %1301 = vxpose.xlu0.b32.cont [13/16] 0.0, 128
        %1302 = vxpose.xlu0.b32.cont [14/16] 0.0, 128
        %1303 = vxpose.xlu0.b32.cont [15/16] 0.0, 128
        %1304 = vxpose.xlu0.b32.end [16/16] 0.0, 128
        %v1305 = vpop.trf.xlu0
        %v1306 = vpop.trf.xlu0
        %v1307 = vpop.trf.xlu0
        %v1308 = vpop.trf.xlu0
        %v1309 = vpop.trf.xlu0
        %v1310 = vpop.trf.xlu0
        %v1311 = vpop.trf.xlu0
        %v1312 = vpop.trf.xlu0
        %v1313 = vpop.trf.xlu0
        %v1314 = vpop.trf.xlu0
        %v1315 = vpop.trf.xlu0
        %v1316 = vpop.trf.xlu0
        %v1317 = vpop.trf.xlu0
        %v1318 = vpop.trf.xlu0
        %v1319 = vpop.trf.xlu0
        %v1320 = vpop.trf.xlu0
        %vm1321 = vcmask 64512
        %v1323 = vsel %vm1321, %v1305, 0
        %v1326 = vsel %vm1321, %v1306, 0
        %v1329 = vsel %vm1321, %v1307, 0
        %v1332 = vsel %vm1321, %v1308, 0
        %v1335 = vsel %vm1321, %v1309, 0
        %v1338 = vsel %vm1321, %v1310, 0
        %v1341 = vsel %vm1321, %v1311, 0
        %v1344 = vsel %vm1321, %v1312, 0
        %v1347 = vsel %vm1321, %v1313, 0
        %v1350 = vsel %vm1321, %v1314, 0
        %v1353 = vsel %vm1321, %v1315, 0
        %v1356 = vsel %vm1321, %v1316, 0
        %v1359 = vsel %vm1321, %v1317, 0
        %v1362 = vsel %vm1321, %v1318, 0
        %v1365 = vsel %vm1321, %v1319, 0
        %v1368 = vsel %vm1321, %v1320, 0
        %1370 = vmatpush.msra.mxu0 0.0
        %1371 = vmatpush.msra.mxu0 0.0
        %1372 = vmatpush.msra.mxu0 0.0
        %1373 = vmatpush.msra.mxu0 0.0
        %1374 = vmatpush.msra.mxu0 0.0
        %1375 = vmatpush.msra.mxu0 0.0
        %1376 = vmatpush.msra.mxu0 0.0
        %1377 = vmatpush.msra.mxu0 0.0
        %1378 = vmatpush.msra.mxu0 0.0
        %1379 = vmatpush.msra.mxu0 0.0
        %1380 = vmatpush.msra.mxu0 0.0
        %1381 = vmatpush.msra.mxu0 0.0
        %1382 = vmatpush.msra.mxu0 0.0
        %1383 = vmatpush.msra.mxu0 0.0
        %1384 = vmatpush.msra.mxu0 0.0
        %1385 = vmatpush.msra.mxu0 %v1288
        %1386 = vmatmul.f32.gmra.mxu0 %v1323
        %v1387 = vpop.f32.mrf.mxu0
        %v1388 = vadd.f32 0.0, %v1387
        %1389 = vmatmul.f32.gmra.mxu0 %v1326
        %v1390 = vpop.f32.mrf.mxu0
        %v1391 = vadd.f32 0.0, %v1390
        %1392 = vmatmul.f32.gmra.mxu0 %v1329
        %v1393 = vpop.f32.mrf.mxu0
        %v1394 = vadd.f32 0.0, %v1393
        %1395 = vmatmul.f32.gmra.mxu0 %v1332
        %v1396 = vpop.f32.mrf.mxu0
        %v1397 = vadd.f32 0.0, %v1396
        %1398 = vmatmul.f32.gmra.mxu0 %v1335
        %v1399 = vpop.f32.mrf.mxu0
        %v1400 = vadd.f32 0.0, %v1399
        %1401 = vmatmul.f32.gmra.mxu0 %v1338
        %v1402 = vpop.f32.mrf.mxu0
        %v1403 = vadd.f32 0.0, %v1402
        %1404 = vmatmul.f32.gmra.mxu0 %v1341
        %v1405 = vpop.f32.mrf.mxu0
        %v1406 = vadd.f32 0.0, %v1405
        %1407 = vmatmul.f32.gmra.mxu0 %v1344
        %v1408 = vpop.f32.mrf.mxu0
        %v1409 = vadd.f32 0.0, %v1408
        %1410 = vmatmul.f32.gmra.mxu0 %v1347
        %v1411 = vpop.f32.mrf.mxu0
        %v1412 = vadd.f32 0.0, %v1411
        %1413 = vmatmul.f32.gmra.mxu0 %v1350
        %v1414 = vpop.f32.mrf.mxu0
        %v1415 = vadd.f32 0.0, %v1414
        %1416 = vmatmul.f32.gmra.mxu0 %v1353
        %v1417 = vpop.f32.mrf.mxu0
        %v1418 = vadd.f32 0.0, %v1417
        %1419 = vmatmul.f32.gmra.mxu0 %v1356
        %v1420 = vpop.f32.mrf.mxu0
        %v1421 = vadd.f32 0.0, %v1420
        %1422 = vmatmul.f32.gmra.mxu0 %v1359
        %v1423 = vpop.f32.mrf.mxu0
        %v1424 = vadd.f32 0.0, %v1423
        %1425 = vmatmul.f32.gmra.mxu0 %v1362
        %v1426 = vpop.f32.mrf.mxu0
        %v1427 = vadd.f32 0.0, %v1426
        %1428 = vmatmul.f32.gmra.mxu0 %v1365
        %v1429 = vpop.f32.mrf.mxu0
        %v1430 = vadd.f32 0.0, %v1429
        %1431 = vmatmul.f32.gmra.mxu0 %v1368
        %v1432 = vpop.f32.mrf.mxu0
        %v1433 = vadd.f32 0.0, %v1432
        %1434 = vdwg.mxu0
        %v1435 = vrcp.pop 200.0
        %v1436 = vmul.f32 200.0, %v1435
        %v1437 = vsub.f32 1.0, %v1436
        %v1438 = vmul.f32 %v1435, %v1437
        %v1439 = vadd.f32 %v1435, %v1438
        %vm1440 = vweird.f32 %v1435
        %v1441 = vsel %vm1440, %v1435, %v1439
        %v1442 = vmul.f32 %v1388, %v1441
        %v1443 = vmul.f32 %v1391, %v1441
        %v1444 = vmul.f32 %v1394, %v1441
        %v1445 = vmul.f32 %v1397, %v1441
        %v1446 = vmul.f32 %v1400, %v1441
        %v1447 = vmul.f32 %v1403, %v1441
        %v1448 = vmul.f32 %v1406, %v1441
        %v1449 = vmul.f32 %v1409, %v1441
        %v1450 = vmul.f32 %v1412, %v1441
        %v1451 = vmul.f32 %v1415, %v1441
        %v1452 = vmul.f32 %v1418, %v1441
        %v1453 = vmul.f32 %v1421, %v1441
        %v1454 = vmul.f32 %v1424, %v1441
        %v1455 = vmul.f32 %v1427, %v1441
        %v1456 = vmul.f32 %v1430, %v1441
        %v1457 = vmul.f32 %v1433, %v1441
        %v1458 = vld [vmem:[#allocation2] sm:$0xff]
        %v1459 = vld [vmem:[#allocation2 + $0x8] sm:$0xff]
        %v1460 = vld [vmem:[#allocation2 + $0x10] sm:$0xff]
        %v1461 = vld [vmem:[#allocation2 + $0x18] sm:$0xff]
        %v1462 = vld [vmem:[#allocation2 + $0x20] sm:$0xff]
        %v1463 = vld [vmem:[#allocation2 + $0x28] sm:$0xff]
        %v1464 = vld [vmem:[#allocation2 + $0x30] sm:$0xff]
        %v1465 = vld [vmem:[#allocation2 + $0x38] sm:$0xff]
        %v1466 = vld [vmem:[#allocation2 + $0x40] sm:$0xff]
        %v1467 = vld [vmem:[#allocation2 + $0x48] sm:$0xff]
        %v1468 = vld [vmem:[#allocation2 + $0x50] sm:$0xff]
        %v1469 = vld [vmem:[#allocation2 + $0x58] sm:$0xff]
        %v1470 = vld [vmem:[#allocation2 + $0x60] sm:$0xff]
        %v1471 = vld [vmem:[#allocation2 + $0x68] sm:$0xff]
        %v1472 = vld [vmem:[#allocation2 + $0x70] sm:$0xff]
        %v1473 = vld [vmem:[#allocation2 + $0x78] sm:$0xff]
        %v1474 = vsub.f32 %v1458, %v1442
        %v1475 = vsub.f32 %v1459, %v1443
        %v1476 = vsub.f32 %v1460, %v1444
        %v1477 = vsub.f32 %v1461, %v1445
        %v1478 = vsub.f32 %v1462, %v1446
        %v1479 = vsub.f32 %v1463, %v1447
        %v1480 = vsub.f32 %v1464, %v1448
        %v1481 = vsub.f32 %v1465, %v1449
        %v1482 = vsub.f32 %v1466, %v1450
        %v1483 = vsub.f32 %v1467, %v1451
        %v1484 = vsub.f32 %v1468, %v1452
        %v1485 = vsub.f32 %v1469, %v1453
        %v1486 = vsub.f32 %v1470, %v1454
        %v1487 = vsub.f32 %v1471, %v1455
        %v1488 = vsub.f32 %v1472, %v1456
        %v1489 = vsub.f32 %v1473, %v1457
        %v1490 = vmul.f32 %v1474, %v1441
        %v1491 = vmul.f32 %v1475, %v1441
        %v1492 = vmul.f32 %v1476, %v1441
        %v1493 = vmul.f32 %v1477, %v1441
        %v1494 = vmul.f32 %v1478, %v1441
        %v1495 = vmul.f32 %v1479, %v1441
        %v1496 = vmul.f32 %v1480, %v1441
        %v1497 = vmul.f32 %v1481, %v1441
        %v1498 = vmul.f32 %v1482, %v1441
        %v1499 = vmul.f32 %v1483, %v1441
        %v1500 = vmul.f32 %v1484, %v1441
        %v1501 = vmul.f32 %v1485, %v1441
        %v1502 = vmul.f32 %v1486, %v1441
        %v1503 = vmul.f32 %v1487, %v1441
        %v1504 = vmul.f32 %v1488, %v1441
        %v1505 = vmul.f32 %v1489, %v1441
        %1506 = vst [vmem:[%s11] sm:$0xff] %v1490
        %1507 = vst [vmem:[%s11 + $0x8] sm:$0xff] %v1491
        %1508 = vst [vmem:[%s11 + $0x10] sm:$0xff] %v1492
        %1509 = vst [vmem:[%s11 + $0x18] sm:$0xff] %v1493
        %1510 = vst [vmem:[%s11 + $0x20] sm:$0xff] %v1494
        %1511 = vst [vmem:[%s11 + $0x28] sm:$0xff] %v1495
        %1512 = vst [vmem:[%s11 + $0x30] sm:$0xff] %v1496
        %1513 = vst [vmem:[%s11 + $0x38] sm:$0xff] %v1497
        %1514 = vst [vmem:[%s11 + $0x40] sm:$0xff] %v1498
        %1515 = vst [vmem:[%s11 + $0x48] sm:$0xff] %v1499
        %1516 = vst [vmem:[%s11 + $0x50] sm:$0xff] %v1500
        %1517 = vst [vmem:[%s11 + $0x58] sm:$0xff] %v1501
        %1518 = vst [vmem:[%s11 + $0x60] sm:$0xff] %v1502
        %1519 = vst [vmem:[%s11 + $0x68] sm:$0xff] %v1503
        %1520 = vst [vmem:[%s11 + $0x70] sm:$0xff] %v1504
        %1521 = vst [vmem:[%s11 + $0x78] sm:$0xff] %v1505
      $region68: #{conv_forward.3} parent=59 // pred_fallthru
        _
      %s1522 = smul.u32 16, %s23
      %p1523 = scmp.lt.s32.totalorder %s1522, 31
      %s1524 = scalar_select %p1523, %s1522, 31
      %s1525 = smul.addr %s1524, 4
      %s1526 = scalar_lea.vmem %s10, %s1525
      // Predicated region
      $region69: #{conv_forward.3} parent=59 // pred_check
        %p1527 = pneg %p261
      $region70: #{conv_forward.3} parent=59 // pred_check_branch
        %1529 = sbr.rel (%p1527) target = $region72
      $region71: #{conv_forward.3} parent=59 // pred_region
        %s1530 = smul.u32 16, %s23
      $region72: #{conv_forward.3} parent=59 // pred_fallthru
        _
      // Predicated region
      $region73: #{conv_forward.3} parent=59 // pred_check
        %p1531 = pneg %p282
      $region74: #{conv_forward.3} parent=59 // pred_check_branch
        %1533 = sbr.rel (%p1531) target = $region76
      $region75: #{conv_forward.3} parent=59 // pred_region
        _
      $region76: #{conv_forward.3} parent=59 // pred_fallthru
        _
      // Predicated region
      $region77: #{conv_forward.3} parent=59 // pred_check
        %p1534 = pneg %p282
      $region78: #{conv_forward.3} parent=59 // pred_check_branch
        %1536 = sbr.rel (%p1534) target = $region80
      $region79: #{conv_forward.3} parent=59 // pred_region
        _
      $region80: #{conv_forward.3} parent=59 // pred_fallthru
        _
    $region60: #{conv_forward.3} parent=5 // pred_fallthru
      _
    %p1537 = scmp.le.s32.totalorder 2, %s18
    // Predicated region
    $region81: #{conv_forward.3} parent=5 // pred_check
      %p1538 = pneg %p1537
    $region82: #{conv_forward.3} parent=5 // pred_check_branch
      %1540 = sbr.rel (%p1538) target = $region84
    $region83: #{conv_forward.3} parent=5 // pred_region
      %s1541 = ssub.s32 %s18, 2
      // Predicated region
      $region85: #{conv_forward.3} parent=83 // pred_check
        %p1542 = pneg %p267
      $region86: #{conv_forward.3} parent=83 // pred_check_branch
        %1544 = sbr.rel (%p1542) target = $region88
      $region87: #{conv_forward.3} parent=83 // pred_region
        %s1545 = smul.u32 16, %s24
        %p1546 = scmp.lt.s32.totalorder %s1545, 31
        %s1547 = scalar_select %p1546, %s1545, 31
        %s1548 = smul.addr %s1547, 4
        %s1549 = scalar_lea.vmem %s10, %s1548
      $region88: #{conv_forward.3} parent=83 // pred_fallthru
        _
    $region84: #{conv_forward.3} parent=5 // pred_fallthru
      _
  $region6: #{conv_forward.3} parent=0 // loop_footer
    %s22 = sadd.s32 1, %s18
  $region7: #{conv_forward.3} parent=0 // loop_footer_branch
    %17 = sbr.rel target = $region3
  $region8: #{conv_forward.3} parent=0 // loop_exit
    _

// kernel: conv_forward.2
$region0: #{conv_forward.2}
  #allocation0 [shape = 'u32[]', space=smem, size = 0x4, offset = 0x4, fixed_abs, tag = 'smem constant byte address 0x4 - core index']
  #allocation1 [shape = 'u32[72,128]{1,0:T(1,128)}', space=vmem, size = 0x9000, scoped, tag = 'internal scratch']
  %s0 = inlined_call_operand.vmem [shape: s32[1,1024], index: 0, kind: input, shape index: {}]
  %s1 = inlined_call_operand.vmem [shape: bf16[1024,128], index: 1, kind: input, shape index: {}]
  %s2 = inlined_call_operand.vmem [shape: bf16[1024,7], index: 2, kind: input, shape index: {}]
  %s3 = inlined_call_operand.vmem [shape: bf16[1024,128], index: 3, kind: input, shape index: {}]
  %s4 = inlined_call_operand.vmem [shape: bf16[128,128], index: 4, kind: input, shape index: {}]
  %s5 = inlined_call_operand.vmem [shape: bf16[7,128], index: 5, kind: input, shape index: {}]
  %s6 = inlined_call_operand.vmem [shape: f32[1,128], index: 6, kind: input, shape index: {}]
  %s7 = inlined_call_operand.vmem [shape: f32[256,128], index: 7, kind: output, shape index: {}]
  %s8 = sld [smem:[#allocation0]]
  $region65: #{conv_forward.2} parent=0
    _
  %s10 = ssub.s32 1, %s8
  %s11 = scalar_select 0, %s10, %s8
  loop: start=0, step=1, limit=4
  $region2: #{conv_forward.2} parent=0 // loop_pre_header
    _
  $region3: #{conv_forward.2} parent=0 // loop_header
    %s13 = sphi 0, %s17
    %p14 = scmp.ge.s32.totalorder %s13, 4
    %s23 = sphi 0, %s25
    %s26 = sphi 0, %s23
    %s27 = sphi 0, %s26
    %s43 = sphi 0, %s27
    %s49 = sphi 0, %s51
    %s52 = sphi 0, %s49
    %s53 = sphi 0, %s52
    %s69 = sphi 0, %s53
    %s75 = sphi 0, %s77
    %s78 = sphi 0, %s75
    %s79 = sphi 0, %s78
    %s95 = sphi 0, %s79
    %s101 = sphi 0, %s103
    %s104 = sphi 0, %s101
    %s105 = sphi 0, %s104
    %s121 = sphi 0, %s105
    %s125 = sphi 0, %s125
    %s127 = sphi 0, %s125
    %s128 = sphi 0, %s127
    %s142 = sphi 0, %s128
    %s146 = sphi 0, %s146
    %s148 = sphi 0, %s146
    %s149 = sphi 0, %s148
    %s163 = sphi 0, %s149
    %s167 = sphi 0, %s167
    %s169 = sphi 0, %s167
    %s170 = sphi 0, %s169
    %s184 = sphi 0, %s170
    %s188 = sphi 0, %s188
    %s190 = sphi 0, %s188
    %s191 = sphi 0, %s190
    %s205 = sphi 0, %s191
  $region4: #{conv_forward.2} parent=0 // loop_header_branch
    %16 = sbr.rel (%p14) target = $region8
  $region5: #{conv_forward.2} parent=0 // loop_body
    %s18 = ssub.s32 %s13, 1
    %s19 = ssub.s32 %s13, 2
    %s20 = sadd.s32 %s13, 1
    %s21 = ssub.s32 %s13, %s20
    %p22 = scmp.eq.s32.totalorder %s21, 0
    %s24 = sadd.s32 %s23, 1
    %s25 = scalar_select %p22, %s23, %s24
    %p28 = pneg %p22
    %p29 = scmp.eq.s32.totalorder %s13, 1
    %p30 = por %p28, %p29
    %p31 = scmp.ne.s32.totalorder %s23, %s26
    %p32 = scmp.eq.s32.totalorder %s13, 0
    %p33 = por %p31, %p32
    %p34 = scmp.ne.s32.totalorder %s23, %s26
    %p35 = scmp.eq.s32.totalorder %s18, 1
    %p36 = por %p34, %p35
    %p37 = scmp.ne.s32.totalorder %s26, %s27
    %p38 = scmp.eq.s32.totalorder %s18, 0
    %p39 = por %p37, %p38
    %p40 = scmp.ne.s32.totalorder %s26, %s27
    %p41 = scmp.eq.s32.totalorder %s19, 1
    %p42 = por %p40, %p41
    %p44 = scmp.ne.s32.totalorder %s27, %s43
    %p45 = scmp.eq.s32.totalorder %s19, 0
    %p46 = por %p44, %p45
    %s47 = ssub.s32 %s13, %s20
    %p48 = scmp.eq.s32.totalorder %s47, 0
    %s50 = sadd.s32 %s49, 1
    %s51 = scalar_select %p48, %s49, %s50
    %p54 = pneg %p48
    %p55 = scmp.eq.s32.totalorder %s13, 1
    %p56 = por %p54, %p55
    %p57 = scmp.ne.s32.totalorder %s49, %s52
    %p58 = scmp.eq.s32.totalorder %s13, 0
    %p59 = por %p57, %p58
    %p60 = scmp.ne.s32.totalorder %s49, %s52
    %p61 = scmp.eq.s32.totalorder %s18, 1
    %p62 = por %p60, %p61
    %p63 = scmp.ne.s32.totalorder %s52, %s53
    %p64 = scmp.eq.s32.totalorder %s18, 0
    %p65 = por %p63, %p64
    %p66 = scmp.ne.s32.totalorder %s52, %s53
    %p67 = scmp.eq.s32.totalorder %s19, 1
    %p68 = por %p66, %p67
    %p70 = scmp.ne.s32.totalorder %s53, %s69
    %p71 = scmp.eq.s32.totalorder %s19, 0
    %p72 = por %p70, %p71
    %s73 = ssub.s32 %s13, %s20
    %p74 = scmp.eq.s32.totalorder %s73, 0
    %s76 = sadd.s32 %s75, 1
    %s77 = scalar_select %p74, %s75, %s76
    %p80 = pneg %p74
    %p81 = scmp.eq.s32.totalorder %s13, 1
    %p82 = por %p80, %p81
    %p83 = scmp.ne.s32.totalorder %s75, %s78
    %p84 = scmp.eq.s32.totalorder %s13, 0
    %p85 = por %p83, %p84
    %p86 = scmp.ne.s32.totalorder %s75, %s78
    %p87 = scmp.eq.s32.totalorder %s18, 1
    %p88 = por %p86, %p87
    %p89 = scmp.ne.s32.totalorder %s78, %s79
    %p90 = scmp.eq.s32.totalorder %s18, 0
    %p91 = por %p89, %p90
    %p92 = scmp.ne.s32.totalorder %s78, %s79
    %p93 = scmp.eq.s32.totalorder %s19, 1
    %p94 = por %p92, %p93
    %p96 = scmp.ne.s32.totalorder %s79, %s95
    %p97 = scmp.eq.s32.totalorder %s19, 0
    %p98 = por %p96, %p97
    %s99 = ssub.s32 %s13, %s20
    %p100 = scmp.eq.s32.totalorder %s99, 0
    %s102 = sadd.s32 %s101, 1
    %s103 = scalar_select %p100, %s101, %s102
    %p106 = pneg %p100
    %p107 = scmp.eq.s32.totalorder %s13, 1
    %p108 = por %p106, %p107
    %p109 = scmp.ne.s32.totalorder %s101, %s104
    %p110 = scmp.eq.s32.totalorder %s13, 0
    %p111 = por %p109, %p110
    %p112 = scmp.ne.s32.totalorder %s101, %s104
    %p113 = scmp.eq.s32.totalorder %s18, 1
    %p114 = por %p112, %p113
    %p115 = scmp.ne.s32.totalorder %s104, %s105
    %p116 = scmp.eq.s32.totalorder %s18, 0
    %p117 = por %p115, %p116
    %p118 = scmp.ne.s32.totalorder %s104, %s105
    %p119 = scmp.eq.s32.totalorder %s19, 1
    %p120 = por %p118, %p119
    %p122 = scmp.ne.s32.totalorder %s105, %s121
    %p123 = scmp.eq.s32.totalorder %s19, 0
    %p124 = por %p122, %p123
    %s126 = sadd.s32 %s125, 1
    %p129 = scmp.eq.s32.totalorder %s13, 1
    %p130 = scmp.ne.s32.totalorder %s125, %s127
    %p131 = scmp.eq.s32.totalorder %s13, 0
    %p132 = por %p130, %p131
    %p133 = scmp.ne.s32.totalorder %s125, %s127
    %p134 = scmp.eq.s32.totalorder %s18, 1
    %p135 = por %p133, %p134
    %p136 = scmp.ne.s32.totalorder %s127, %s128
    %p137 = scmp.eq.s32.totalorder %s18, 0
    %p138 = por %p136, %p137
    %p139 = scmp.ne.s32.totalorder %s127, %s128
    %p140 = scmp.eq.s32.totalorder %s19, 1
    %p141 = por %p139, %p140
    %p143 = scmp.ne.s32.totalorder %s128, %s142
    %p144 = scmp.eq.s32.totalorder %s19, 0
    %p145 = por %p143, %p144
    %s147 = sadd.s32 %s146, 1
    %p150 = scmp.eq.s32.totalorder %s13, 1
    %p151 = scmp.ne.s32.totalorder %s146, %s148
    %p152 = scmp.eq.s32.totalorder %s13, 0
    %p153 = por %p151, %p152
    %p154 = scmp.ne.s32.totalorder %s146, %s148
    %p155 = scmp.eq.s32.totalorder %s18, 1
    %p156 = por %p154, %p155
    %p157 = scmp.ne.s32.totalorder %s148, %s149
    %p158 = scmp.eq.s32.totalorder %s18, 0
    %p159 = por %p157, %p158
    %p160 = scmp.ne.s32.totalorder %s148, %s149
    %p161 = scmp.eq.s32.totalorder %s19, 1
    %p162 = por %p160, %p161
    %p164 = scmp.ne.s32.totalorder %s149, %s163
    %p165 = scmp.eq.s32.totalorder %s19, 0
    %p166 = por %p164, %p165
    %s168 = sadd.s32 %s167, 1
    %p171 = scmp.eq.s32.totalorder %s13, 1
    %p172 = scmp.ne.s32.totalorder %s167, %s169
    %p173 = scmp.eq.s32.totalorder %s13, 0
    %p174 = por %p172, %p173
    %p175 = scmp.ne.s32.totalorder %s167, %s169
    %p176 = scmp.eq.s32.totalorder %s18, 1
    %p177 = por %p175, %p176
    %p178 = scmp.ne.s32.totalorder %s169, %s170
    %p179 = scmp.eq.s32.totalorder %s18, 0
    %p180 = por %p178, %p179
    %p181 = scmp.ne.s32.totalorder %s169, %s170
    %p182 = scmp.eq.s32.totalorder %s19, 1
    %p183 = por %p181, %p182
    %p185 = scmp.ne.s32.totalorder %s170, %s184
    %p186 = scmp.eq.s32.totalorder %s19, 0
    %p187 = por %p185, %p186
    %s189 = sadd.s32 %s188, 1
    %p192 = scmp.eq.s32.totalorder %s13, 1
    %p193 = scmp.ne.s32.totalorder %s188, %s190
    %p194 = scmp.eq.s32.totalorder %s13, 0
    %p195 = por %p193, %p194
    %p196 = scmp.ne.s32.totalorder %s188, %s190
    %p197 = scmp.eq.s32.totalorder %s18, 1
    %p198 = por %p196, %p197
    %p199 = scmp.ne.s32.totalorder %s190, %s191
    %p200 = scmp.eq.s32.totalorder %s18, 0
    %p201 = por %p199, %p200
    %p202 = scmp.ne.s32.totalorder %s190, %s191
    %p203 = scmp.eq.s32.totalorder %s19, 1
    %p204 = por %p202, %p203
    %p206 = scmp.ne.s32.totalorder %s191, %s205
    %p207 = scmp.eq.s32.totalorder %s19, 0
    %p208 = por %p206, %p207
    %p209 = scmp.le.s32.totalorder 1, %s13
    %p210 = scmp.lt.s32.totalorder %s13, 3
    %p211 = pnand %p209, %p210
    %p212 = pneg %p211
    // Predicated region
    $region9: #{conv_forward.2} parent=5 // pred_check
      _
    $region10: #{conv_forward.2} parent=5 // pred_check_branch
      %214 = sbr.rel (%p211) target = $region12
    $region11: #{conv_forward.2} parent=5 // pred_region
      %s215 = ssub.s32 %s13, 1
      // Predicated region
      $region13: #{conv_forward.2} parent=11 // pred_check
        %p216 = pneg %p138
      $region14: #{conv_forward.2} parent=11 // pred_check_branch
        %218 = sbr.rel (%p216) target = $region16
      $region15: #{conv_forward.2} parent=11 // pred_region
        _
      $region16: #{conv_forward.2} parent=11 // pred_fallthru
        _
      // Predicated region
      $region17: #{conv_forward.2} parent=11 // pred_check
        %p219 = pneg %p159
      $region18: #{conv_forward.2} parent=11 // pred_check_branch
        %221 = sbr.rel (%p219) target = $region20
      $region19: #{conv_forward.2} parent=11 // pred_region
        _
      $region20: #{conv_forward.2} parent=11 // pred_fallthru
        _
      // Predicated region
      $region21: #{conv_forward.2} parent=11 // pred_check
        %p222 = pneg %p180
      $region22: #{conv_forward.2} parent=11 // pred_check_branch
        %224 = sbr.rel (%p222) target = $region24
      $region23: #{conv_forward.2} parent=11 // pred_region
        _
      $region24: #{conv_forward.2} parent=11 // pred_fallthru
        _
    $region12: #{conv_forward.2} parent=5 // pred_fallthru
      _
    %p225 = scmp.lt.s32.totalorder %s13, 2
    // Predicated region
    $region25: #{conv_forward.2} parent=5 // pred_check
      %p226 = pneg %p225
    $region26: #{conv_forward.2} parent=5 // pred_check_branch
      %228 = sbr.rel (%p226) target = $region28
    $region27: #{conv_forward.2} parent=5 // pred_region
      // Predicated region
      $region29: #{conv_forward.2} parent=27 // pred_check
        %p229 = pneg %p33
      $region30: #{conv_forward.2} parent=27 // pred_check_branch
        %231 = sbr.rel (%p229) target = $region32
      $region31: #{conv_forward.2} parent=27 // pred_region
        %s232 = smul.u32 4, %s13
        %p233 = scmp.lt.s32.totalorder %s232, 7
        %s234 = scalar_select %p233, %s232, 7
        %s235 = scalar_lea.vmem %s0, %s234
        %s236 = smul.u32 4, %s13
      $region32: #{conv_forward.2} parent=27 // pred_fallthru
        _
      // Predicated region
      $region33: #{conv_forward.2} parent=27 // pred_check
        %p237 = pneg %p59
      $region34: #{conv_forward.2} parent=27 // pred_check_branch
        %239 = sbr.rel (%p237) target = $region36
      $region35: #{conv_forward.2} parent=27 // pred_region
        %s240 = smul.u32 64, %s13
        %p241 = scmp.lt.s32.totalorder %s240, 127
        %s242 = scalar_select %p241, %s240, 127
        %s243 = smul.addr %s242, 4
        %s244 = scalar_lea.vmem %s1, %s243
        %s245 = smul.u32 64, %s13
      $region36: #{conv_forward.2} parent=27 // pred_fallthru
        _
      // Predicated region
      $region37: #{conv_forward.2} parent=27 // pred_check
        %p246 = pneg %p85
      $region38: #{conv_forward.2} parent=27 // pred_check_branch
        %248 = sbr.rel (%p246) target = $region40
      $region39: #{conv_forward.2} parent=27 // pred_region
        %s249 = smul.u32 64, %s13
        %p250 = scmp.lt.s32.totalorder %s249, 127
        %s251 = scalar_select %p250, %s249, 127
        %s252 = smul.addr %s251, 4
        %s253 = scalar_lea.vmem %s2, %s252
        %s254 = smul.u32 64, %s13
      $region40: #{conv_forward.2} parent=27 // pred_fallthru
        _
      // Predicated region
      $region41: #{conv_forward.2} parent=27 // pred_check
        %p255 = pneg %p111
      $region42: #{conv_forward.2} parent=27 // pred_check_branch
        %257 = sbr.rel (%p255) target = $region44
      $region43: #{conv_forward.2} parent=27 // pred_region
        %s258 = smul.u32 64, %s13
        %p259 = scmp.lt.s32.totalorder %s258, 127
        %s260 = scalar_select %p259, %s258, 127
        %s261 = smul.addr %s260, 4
        %s262 = scalar_lea.vmem %s3, %s261
        %s263 = smul.u32 64, %s13
      $region44: #{conv_forward.2} parent=27 // pred_fallthru
        _
    $region28: #{conv_forward.2} parent=5 // pred_fallthru
      _
    %p264 = scmp.le.s32.totalorder 1, %s13
    %p265 = scmp.lt.s32.totalorder %s13, 3
    %p266 = pnand %p264, %p265
    %p267 = pneg %p266
    // Predicated region
    $region45: #{conv_forward.2} parent=5 // pred_check
      _
    $region46: #{conv_forward.2} parent=5 // pred_check_branch
      %269 = sbr.rel (%p266) target = $region48
    $region47: #{conv_forward.2} parent=5 // pred_region
      %s270 = ssub.s32 %s13, 1
      %s271 = smul.u32 4, %s18
      %p272 = scmp.lt.s32.totalorder %s271, 7
      %s273 = scalar_select %p272, %s271, 7
      %s274 = scalar_lea.vmem %s0, %s273
      %p275 = pneg %p39
      %p276 = pneg %p36
      %s277 = smul.u32 64, %s18
      %p278 = scmp.lt.s32.totalorder %s277, 127
      %s279 = scalar_select %p278, %s277, 127
      %s280 = smul.addr %s279, 4
      %s281 = scalar_lea.vmem %s1, %s280
      %p282 = pneg %p65
      %p283 = pneg %p62
      %s284 = smul.u32 64, %s18
      %p285 = scmp.lt.s32.totalorder %s284, 127
      %s286 = scalar_select %p285, %s284, 127
      %s287 = smul.addr %s286, 4
      %s288 = scalar_lea.vmem %s2, %s287
      %p289 = pneg %p91
      %p290 = pneg %p88
      %s291 = smul.u32 64, %s18
      %p292 = scmp.lt.s32.totalorder %s291, 127
      %s293 = scalar_select %p292, %s291, 127
      %s294 = smul.addr %s293, 4
      %s295 = scalar_lea.vmem %s3, %s294
      %p296 = pneg %p117
      %p297 = pneg %p114
      %p298 = pneg %p138
      %p299 = pneg %p135
      %p300 = pneg %p159
      %p301 = pneg %p156
      %p302 = pneg %p180
      %p303 = pneg %p177
      %p304 = pneg %p201
      %p305 = pneg %p198
      %s306 = smul.u32 4, %s18
      %p307 = scmp.lt.s32.totalorder %s306, 7
      %s308 = scalar_select %p307, %s306, 7
      %s309 = scalar_lea.vmem %s0, %s308
      %s310 = smul.u32 4, %s18
      %s311 = smul.u32 64, %s18
      %p312 = scmp.lt.s32.totalorder %s311, 127
      %s313 = scalar_select %p312, %s311, 127
      %s314 = smul.addr %s313, 4
      %s315 = scalar_lea.vmem %s1, %s314
      %s316 = smul.u32 64, %s18
      %s317 = smul.u32 64, %s18
      %p318 = scmp.lt.s32.totalorder %s317, 127
      %s319 = scalar_select %p318, %s317, 127
      %s320 = smul.addr %s319, 4
      %s321 = scalar_lea.vmem %s2, %s320
      %s322 = smul.u32 64, %s18
      %s323 = smul.u32 64, %s18
      %p324 = scmp.lt.s32.totalorder %s323, 127
      %s325 = scalar_select %p324, %s323, 127
      %s326 = smul.addr %s325, 4
      %s327 = scalar_lea.vmem %s3, %s326
      %s328 = smul.u32 64, %s18
      %p330 = scmp.eq.s32.totalorder %s18, 0
      // Predicated region
      $region49: #{conv_forward.2} parent=47 // pred_check
        %p331 = pneg %p330
      $region50: #{conv_forward.2} parent=47 // pred_check_branch
        %333 = sbr.rel (%p331) target = $region52
      $region51: #{conv_forward.2} parent=47 // pred_region
        %334 = vst [vmem:[%s7] sm:$0xff] 0.0
        %335 = vst [vmem:[%s7 + $0x8] sm:$0xff] 0.0
        %336 = vst [vmem:[%s7 + $0x10] sm:$0xff] 0.0
        %337 = vst [vmem:[%s7 + $0x18] sm:$0xff] 0.0
        %338 = vst [vmem:[%s7 + $0x20] sm:$0xff] 0.0
        %339 = vst [vmem:[%s7 + $0x28] sm:$0xff] 0.0
        %340 = vst [vmem:[%s7 + $0x30] sm:$0xff] 0.0
        %341 = vst [vmem:[%s7 + $0x38] sm:$0xff] 0.0
        %342 = vst [vmem:[%s7 + $0x40] sm:$0xff] 0.0
        %343 = vst [vmem:[%s7 + $0x48] sm:$0xff] 0.0
        %344 = vst [vmem:[%s7 + $0x50] sm:$0xff] 0.0
        %345 = vst [vmem:[%s7 + $0x58] sm:$0xff] 0.0
        %346 = vst [vmem:[%s7 + $0x60] sm:$0xff] 0.0
        %347 = vst [vmem:[%s7 + $0x68] sm:$0xff] 0.0
        %348 = vst [vmem:[%s7 + $0x70] sm:$0xff] 0.0
        %349 = vst [vmem:[%s7 + $0x78] sm:$0xff] 0.0
        %350 = vst [vmem:[%s7 + $0x80] sm:$0xff] 0.0
        %351 = vst [vmem:[%s7 + $0x88] sm:$0xff] 0.0
        %352 = vst [vmem:[%s7 + $0x90] sm:$0xff] 0.0
        %353 = vst [vmem:[%s7 + $0x98] sm:$0xff] 0.0
        %354 = vst [vmem:[%s7 + $0xa0] sm:$0xff] 0.0
        %355 = vst [vmem:[%s7 + $0xa8] sm:$0xff] 0.0
        %356 = vst [vmem:[%s7 + $0xb0] sm:$0xff] 0.0
        %357 = vst [vmem:[%s7 + $0xb8] sm:$0xff] 0.0
        %358 = vst [vmem:[%s7 + $0xc0] sm:$0xff] 0.0
        %359 = vst [vmem:[%s7 + $0xc8] sm:$0xff] 0.0
        %360 = vst [vmem:[%s7 + $0xd0] sm:$0xff] 0.0
        %361 = vst [vmem:[%s7 + $0xd8] sm:$0xff] 0.0
        %362 = vst [vmem:[%s7 + $0xe0] sm:$0xff] 0.0
        %363 = vst [vmem:[%s7 + $0xe8] sm:$0xff] 0.0
        %364 = vst [vmem:[%s7 + $0xf0] sm:$0xff] 0.0
        %365 = vst [vmem:[%s7 + $0xf8] sm:$0xff] 0.0
      $region52: #{conv_forward.2} parent=47 // pred_fallthru
        _
      %v366 = vld [vmem:[%s315] sm:$0xf]
      %v367 = vld [vmem:[%s315 + $0x4] sm:$0xf]
      %v368 = vld [vmem:[%s315 + $0x8] sm:$0xf]
      %v369 = vld [vmem:[%s315 + $0xc] sm:$0xf]
      %v370 = vld [vmem:[%s315 + $0x10] sm:$0xf]
      %v371 = vld [vmem:[%s315 + $0x14] sm:$0xf]
      %v372 = vld [vmem:[%s315 + $0x18] sm:$0xf]
      %v373 = vld [vmem:[%s315 + $0x1c] sm:$0xf]
      %v374 = vld [vmem:[%s315 + $0x20] sm:$0xf]
      %v375 = vld [vmem:[%s315 + $0x24] sm:$0xf]
      %v376 = vld [vmem:[%s315 + $0x28] sm:$0xf]
      %v377 = vld [vmem:[%s315 + $0x2c] sm:$0xf]
      %v378 = vld [vmem:[%s315 + $0x30] sm:$0xf]
      %v379 = vld [vmem:[%s315 + $0x34] sm:$0xf]
      %v380 = vld [vmem:[%s315 + $0x38] sm:$0xf]
      %v381 = vld [vmem:[%s315 + $0x3c] sm:$0xf]
      %v382 = vld [vmem:[%s315 + $0x40] sm:$0xf]
      %v383 = vld [vmem:[%s315 + $0x44] sm:$0xf]
      %v384 = vld [vmem:[%s315 + $0x48] sm:$0xf]
      %v385 = vld [vmem:[%s315 + $0x4c] sm:$0xf]
      %v386 = vld [vmem:[%s315 + $0x50] sm:$0xf]
      %v387 = vld [vmem:[%s315 + $0x54] sm:$0xf]
      %v388 = vld [vmem:[%s315 + $0x58] sm:$0xf]
      %v389 = vld [vmem:[%s315 + $0x5c] sm:$0xf]
      %v390 = vld [vmem:[%s315 + $0x60] sm:$0xf]
      %v391 = vld [vmem:[%s315 + $0x64] sm:$0xf]
      %v392 = vld [vmem:[%s315 + $0x68] sm:$0xf]
      %v393 = vld [vmem:[%s315 + $0x6c] sm:$0xf]
      %v394 = vld [vmem:[%s315 + $0x70] sm:$0xf]
      %v395 = vld [vmem:[%s315 + $0x74] sm:$0xf]
      %v396 = vld [vmem:[%s315 + $0x78] sm:$0xf]
      %v397 = vld [vmem:[%s315 + $0x7c] sm:$0xf]
      %v398 = vld [vmem:[%s315 + $0x80] sm:$0xf]
      %v399 = vld [vmem:[%s315 + $0x84] sm:$0xf]
      %v400 = vld [vmem:[%s315 + $0x88] sm:$0xf]
      %v401 = vld [vmem:[%s315 + $0x8c] sm:$0xf]
      %v402 = vld [vmem:[%s315 + $0x90] sm:$0xf]
      %v403 = vld [vmem:[%s315 + $0x94] sm:$0xf]
      %v404 = vld [vmem:[%s315 + $0x98] sm:$0xf]
      %v405 = vld [vmem:[%s315 + $0x9c] sm:$0xf]
      %v406 = vld [vmem:[%s315 + $0xa0] sm:$0xf]
      %v407 = vld [vmem:[%s315 + $0xa4] sm:$0xf]
      %v408 = vld [vmem:[%s315 + $0xa8] sm:$0xf]
      %v409 = vld [vmem:[%s315 + $0xac] sm:$0xf]
      %v410 = vld [vmem:[%s315 + $0xb0] sm:$0xf]
      %v411 = vld [vmem:[%s315 + $0xb4] sm:$0xf]
      %v412 = vld [vmem:[%s315 + $0xb8] sm:$0xf]
      %v413 = vld [vmem:[%s315 + $0xbc] sm:$0xf]
      %v414 = vld [vmem:[%s315 + $0xc0] sm:$0xf]
      %v415 = vld [vmem:[%s315 + $0xc4] sm:$0xf]
      %v416 = vld [vmem:[%s315 + $0xc8] sm:$0xf]
      %v417 = vld [vmem:[%s315 + $0xcc] sm:$0xf]
      %v418 = vld [vmem:[%s315 + $0xd0] sm:$0xf]
      %v419 = vld [vmem:[%s315 + $0xd4] sm:$0xf]
      %v420 = vld [vmem:[%s315 + $0xd8] sm:$0xf]
      %v421 = vld [vmem:[%s315 + $0xdc] sm:$0xf]
      %v422 = vld [vmem:[%s315 + $0xe0] sm:$0xf]
      %v423 = vld [vmem:[%s315 + $0xe4] sm:$0xf]
      %v424 = vld [vmem:[%s315 + $0xe8] sm:$0xf]
      %v425 = vld [vmem:[%s315 + $0xec] sm:$0xf]
      %v426 = vld [vmem:[%s315 + $0xf0] sm:$0xf]
      %v427 = vld [vmem:[%s315 + $0xf4] sm:$0xf]
      %v428 = vld [vmem:[%s315 + $0xf8] sm:$0xf]
      %v429 = vld [vmem:[%s315 + $0xfc] sm:$0xf]
      %v430 = vld [vmem:[%s4] sm:$0xf]
      %v431 = vld [vmem:[%s4 + $0x4] sm:$0xf]
      %v432 = vld [vmem:[%s4 + $0x8] sm:$0xf]
      %v433 = vld [vmem:[%s4 + $0xc] sm:$0xf]
      %v434 = vld [vmem:[%s4 + $0x10] sm:$0xf]
      %v435 = vld [vmem:[%s4 + $0x14] sm:$0xf]
      %v436 = vld [vmem:[%s4 + $0x18] sm:$0xf]
      %v437 = vld [vmem:[%s4 + $0x1c] sm:$0xf]
      %v438 = vld [vmem:[%s4 + $0x20] sm:$0xf]
      %v439 = vld [vmem:[%s4 + $0x24] sm:$0xf]
      %v440 = vld [vmem:[%s4 + $0x28] sm:$0xf]
      %v441 = vld [vmem:[%s4 + $0x2c] sm:$0xf]
      %v442 = vld [vmem:[%s4 + $0x30] sm:$0xf]
      %v443 = vld [vmem:[%s4 + $0x34] sm:$0xf]
      %v444 = vld [vmem:[%s4 + $0x38] sm:$0xf]
      %v445 = vld [vmem:[%s4 + $0x3c] sm:$0xf]
      %v446 = vld [vmem:[%s321] sm:$0xf]
      %v447 = vld [vmem:[%s321 + $0x4] sm:$0xf]
      %v448 = vld [vmem:[%s321 + $0x8] sm:$0xf]
      %v449 = vld [vmem:[%s321 + $0xc] sm:$0xf]
      %v450 = vld [vmem:[%s321 + $0x10] sm:$0xf]
      %v451 = vld [vmem:[%s321 + $0x14] sm:$0xf]
      %v452 = vld [vmem:[%s321 + $0x18] sm:$0xf]
      %v453 = vld [vmem:[%s321 + $0x1c] sm:$0xf]
      %v454 = vld [vmem:[%s321 + $0x20] sm:$0xf]
      %v455 = vld [vmem:[%s321 + $0x24] sm:$0xf]
      %v456 = vld [vmem:[%s321 + $0x28] sm:$0xf]
      %v457 = vld [vmem:[%s321 + $0x2c] sm:$0xf]
      %v458 = vld [vmem:[%s321 + $0x30] sm:$0xf]
      %v459 = vld [vmem:[%s321 + $0x34] sm:$0xf]
      %v460 = vld [vmem:[%s321 + $0x38] sm:$0xf]
      %v461 = vld [vmem:[%s321 + $0x3c] sm:$0xf]
      %v462 = vld [vmem:[%s321 + $0x40] sm:$0xf]
      %v463 = vld [vmem:[%s321 + $0x44] sm:$0xf]
      %v464 = vld [vmem:[%s321 + $0x48] sm:$0xf]
      %v465 = vld [vmem:[%s321 + $0x4c] sm:$0xf]
      %v466 = vld [vmem:[%s321 + $0x50] sm:$0xf]
      %v467 = vld [vmem:[%s321 + $0x54] sm:$0xf]
      %v468 = vld [vmem:[%s321 + $0x58] sm:$0xf]
      %v469 = vld [vmem:[%s321 + $0x5c] sm:$0xf]
      %v470 = vld [vmem:[%s321 + $0x60] sm:$0xf]
      %v471 = vld [vmem:[%s321 + $0x64] sm:$0xf]
      %v472 = vld [vmem:[%s321 + $0x68] sm:$0xf]
      %v473 = vld [vmem:[%s321 + $0x6c] sm:$0xf]
      %v474 = vld [vmem:[%s321 + $0x70] sm:$0xf]
      %v475 = vld [vmem:[%s321 + $0x74] sm:$0xf]
      %v476 = vld [vmem:[%s321 + $0x78] sm:$0xf]
      %v477 = vld [vmem:[%s321 + $0x7c] sm:$0xf]
      %v478 = vld [vmem:[%s321 + $0x80] sm:$0xf]
      %v479 = vld [vmem:[%s321 + $0x84] sm:$0xf]
      %v480 = vld [vmem:[%s321 + $0x88] sm:$0xf]
      %v481 = vld [vmem:[%s321 + $0x8c] sm:$0xf]
      %v482 = vld [vmem:[%s321 + $0x90] sm:$0xf]
      %v483 = vld [vmem:[%s321 + $0x94] sm:$0xf]
      %v484 = vld [vmem:[%s321 + $0x98] sm:$0xf]
      %v485 = vld [vmem:[%s321 + $0x9c] sm:$0xf]
      %v486 = vld [vmem:[%s321 + $0xa0] sm:$0xf]
      %v487 = vld [vmem:[%s321 + $0xa4] sm:$0xf]
      %v488 = vld [vmem:[%s321 + $0xa8] sm:$0xf]
      %v489 = vld [vmem:[%s321 + $0xac] sm:$0xf]
      %v490 = vld [vmem:[%s321 + $0xb0] sm:$0xf]
      %v491 = vld [vmem:[%s321 + $0xb4] sm:$0xf]
      %v492 = vld [vmem:[%s321 + $0xb8] sm:$0xf]
      %v493 = vld [vmem:[%s321 + $0xbc] sm:$0xf]
      %v494 = vld [vmem:[%s321 + $0xc0] sm:$0xf]
      %v495 = vld [vmem:[%s321 + $0xc4] sm:$0xf]
      %v496 = vld [vmem:[%s321 + $0xc8] sm:$0xf]
      %v497 = vld [vmem:[%s321 + $0xcc] sm:$0xf]
      %v498 = vld [vmem:[%s321 + $0xd0] sm:$0xf]
      %v499 = vld [vmem:[%s321 + $0xd4] sm:$0xf]
      %v500 = vld [vmem:[%s321 + $0xd8] sm:$0xf]
      %v501 = vld [vmem:[%s321 + $0xdc] sm:$0xf]
      %v502 = vld [vmem:[%s321 + $0xe0] sm:$0xf]
      %v503 = vld [vmem:[%s321 + $0xe4] sm:$0xf]
      %v504 = vld [vmem:[%s321 + $0xe8] sm:$0xf]
      %v505 = vld [vmem:[%s321 + $0xec] sm:$0xf]
      %v506 = vld [vmem:[%s321 + $0xf0] sm:$0xf]
      %v507 = vld [vmem:[%s321 + $0xf4] sm:$0xf]
      %v508 = vld [vmem:[%s321 + $0xf8] sm:$0xf]
      %v509 = vld [vmem:[%s321 + $0xfc] sm:$0xf]
      %v510 = vld [vmem:[%s5] sm:$0xf]
      %v575 = vunpack.c.l.b16 %v446
      %v576 = vunpack.c.l.b16 %v447
      %v577 = vunpack.c.l.b16 %v448
      %v578 = vunpack.c.l.b16 %v449
      %v579 = vunpack.c.l.b16 %v450
      %v580 = vunpack.c.l.b16 %v451
      %v581 = vunpack.c.l.b16 %v452
      %v582 = vunpack.c.l.b16 %v453
      %v583 = vunpack.c.l.b16 %v454
      %v584 = vunpack.c.l.b16 %v455
      %v585 = vunpack.c.l.b16 %v456
      %v586 = vunpack.c.l.b16 %v457
      %v587 = vunpack.c.l.b16 %v458
      %v588 = vunpack.c.l.b16 %v459
      %v589 = vunpack.c.l.b16 %v460
      %v590 = vunpack.c.l.b16 %v461
      %v591 = vunpack.c.l.b16 %v462
      %v592 = vunpack.c.l.b16 %v463
      %v593 = vunpack.c.l.b16 %v464
      %v594 = vunpack.c.l.b16 %v465
      %v595 = vunpack.c.l.b16 %v466
      %v596 = vunpack.c.l.b16 %v467
      %v597 = vunpack.c.l.b16 %v468
      %v598 = vunpack.c.l.b16 %v469
      %v599 = vunpack.c.l.b16 %v470
      %v600 = vunpack.c.l.b16 %v471
      %v601 = vunpack.c.l.b16 %v472
      %v602 = vunpack.c.l.b16 %v473
      %v603 = vunpack.c.l.b16 %v474
      %v604 = vunpack.c.l.b16 %v475
      %v605 = vunpack.c.l.b16 %v476
      %v606 = vunpack.c.l.b16 %v477
      %v607 = vunpack.c.l.b16 %v478
      %v608 = vunpack.c.l.b16 %v479
      %v609 = vunpack.c.l.b16 %v480
      %v610 = vunpack.c.l.b16 %v481
      %v611 = vunpack.c.l.b16 %v482
      %v612 = vunpack.c.l.b16 %v483
      %v613 = vunpack.c.l.b16 %v484
      %v614 = vunpack.c.l.b16 %v485
      %v615 = vunpack.c.l.b16 %v486
      %v616 = vunpack.c.l.b16 %v487
      %v617 = vunpack.c.l.b16 %v488
      %v618 = vunpack.c.l.b16 %v489
      %v619 = vunpack.c.l.b16 %v490
      %v620 = vunpack.c.l.b16 %v491
      %v621 = vunpack.c.l.b16 %v492
      %v622 = vunpack.c.l.b16 %v493
      %v623 = vunpack.c.l.b16 %v494
      %v624 = vunpack.c.l.b16 %v495
      %v625 = vunpack.c.l.b16 %v496
      %v626 = vunpack.c.l.b16 %v497
      %v627 = vunpack.c.l.b16 %v498
      %v628 = vunpack.c.l.b16 %v499
      %v629 = vunpack.c.l.b16 %v500
      %v630 = vunpack.c.l.b16 %v501
      %v631 = vunpack.c.l.b16 %v502
      %v632 = vunpack.c.l.b16 %v503
      %v633 = vunpack.c.l.b16 %v504
      %v634 = vunpack.c.l.b16 %v505
      %v635 = vunpack.c.l.b16 %v506
      %v636 = vunpack.c.l.b16 %v507
      %v637 = vunpack.c.l.b16 %v508
      %v638 = vunpack.c.l.b16 %v509
      %v639 = vpack.c.b16 %v576, %v575
      %v640 = vpack.c.b16 %v578, %v577
      %v641 = vpack.c.b16 %v580, %v579
      %v642 = vpack.c.b16 %v582, %v581
      %v643 = vpack.c.b16 %v584, %v583
      %v644 = vpack.c.b16 %v586, %v585
      %v645 = vpack.c.b16 %v588, %v587
      %v646 = vpack.c.b16 %v590, %v589
      %v647 = vpack.c.b16 %v592, %v591
      %v648 = vpack.c.b16 %v594, %v593
      %v649 = vpack.c.b16 %v596, %v595
      %v650 = vpack.c.b16 %v598, %v597
      %v651 = vpack.c.b16 %v600, %v599
      %v652 = vpack.c.b16 %v602, %v601
      %v653 = vpack.c.b16 %v604, %v603
      %v654 = vpack.c.b16 %v606, %v605
      %v655 = vpack.c.b16 %v608, %v607
      %v656 = vpack.c.b16 %v610, %v609
      %v657 = vpack.c.b16 %v612, %v611
      %v658 = vpack.c.b16 %v614, %v613
      %v659 = vpack.c.b16 %v616, %v615
      %v660 = vpack.c.b16 %v618, %v617
      %v661 = vpack.c.b16 %v620, %v619
      %v662 = vpack.c.b16 %v622, %v621
      %v663 = vpack.c.b16 %v624, %v623
      %v664 = vpack.c.b16 %v626, %v625
      %v665 = vpack.c.b16 %v628, %v627
      %v666 = vpack.c.b16 %v630, %v629
      %v667 = vpack.c.b16 %v632, %v631
      %v668 = vpack.c.b16 %v634, %v633
      %v669 = vpack.c.b16 %v636, %v635
      %v670 = vpack.c.b16 %v638, %v637
      %vm671 = vcmask 56320
      %v673 = vsel %vm671, %v639, 0
      %v676 = vsel %vm671, %v640, 0
      %v679 = vsel %vm671, %v641, 0
      %v682 = vsel %vm671, %v642, 0
      %v685 = vsel %vm671, %v643, 0
      %v688 = vsel %vm671, %v644, 0
      %v691 = vsel %vm671, %v645, 0
      %v694 = vsel %vm671, %v646, 0
      %v697 = vsel %vm671, %v647, 0
      %v700 = vsel %vm671, %v648, 0
      %v703 = vsel %vm671, %v649, 0
      %v706 = vsel %vm671, %v650, 0
      %v709 = vsel %vm671, %v651, 0
      %v712 = vsel %vm671, %v652, 0
      %v715 = vsel %vm671, %v653, 0
      %v718 = vsel %vm671, %v654, 0
      %v721 = vsel %vm671, %v655, 0
      %v724 = vsel %vm671, %v656, 0
      %v727 = vsel %vm671, %v657, 0
      %v730 = vsel %vm671, %v658, 0
      %v733 = vsel %vm671, %v659, 0
      %v736 = vsel %vm671, %v660, 0
      %v739 = vsel %vm671, %v661, 0
      %v742 = vsel %vm671, %v662, 0
      %v745 = vsel %vm671, %v663, 0
      %v748 = vsel %vm671, %v664, 0
      %v751 = vsel %vm671, %v665, 0
      %v754 = vsel %vm671, %v666, 0
      %v757 = vsel %vm671, %v667, 0
      %v760 = vsel %vm671, %v668, 0
      %v763 = vsel %vm671, %v669, 0
      %v766 = vsel %vm671, %v670, 0
      %vm768 = vcmask 1042432
      %vm769 = vcmask 1043456
      %v770 = vsel %vm768, 4294967295, 65535
      %v771 = vsel %vm769, %v770, 0
      %v773 = vand.u32 %v510, %v771
      %775 = vmatpush.bf16.msra.mxu0 0
      %776 = vmatpush.bf16.msra.mxu0 0
      %777 = vmatpush.bf16.msra.mxu0 0
      %778 = vmatpush.bf16.msra.mxu0 0
      %779 = vmatpush.bf16.msra.mxu0 0
      %780 = vmatpush.bf16.msra.mxu0 0
      %781 = vmatpush.bf16.msra.mxu0 0
      %782 = vmatpush.bf16.msra.mxu0 %v773
      %783 = vmatmul.bf16.gmra.mxu0 %v673
      %v784 = vpop.f32.mrf.mxu0
      %v785 = vadd.f32 0.0, %v784
      %v786 = vpop.f32.mrf.mxu0
      %v787 = vadd.f32 0.0, %v786
      %788 = vmatmul.bf16.gmra.mxu0 %v676
      %v789 = vpop.f32.mrf.mxu0
      %v790 = vadd.f32 0.0, %v789
      %v791 = vpop.f32.mrf.mxu0
      %v792 = vadd.f32 0.0, %v791
      %793 = vmatmul.bf16.gmra.mxu0 %v679
      %v794 = vpop.f32.mrf.mxu0
      %v795 = vadd.f32 0.0, %v794
      %v796 = vpop.f32.mrf.mxu0
      %v797 = vadd.f32 0.0, %v796
      %798 = vmatmul.bf16.gmra.mxu0 %v682
      %v799 = vpop.f32.mrf.mxu0
      %v800 = vadd.f32 0.0, %v799
      %v801 = vpop.f32.mrf.mxu0
      %v802 = vadd.f32 0.0, %v801
      %803 = vmatmul.bf16.gmra.mxu0 %v685
      %v804 = vpop.f32.mrf.mxu0
      %v805 = vadd.f32 0.0, %v804
      %v806 = vpop.f32.mrf.mxu0
      %v807 = vadd.f32 0.0, %v806
      %808 = vmatmul.bf16.gmra.mxu0 %v688
      %v809 = vpop.f32.mrf.mxu0
      %v810 = vadd.f32 0.0, %v809
      %v811 = vpop.f32.mrf.mxu0
      %v812 = vadd.f32 0.0, %v811
      %813 = vmatmul.bf16.gmra.mxu0 %v691
      %v814 = vpop.f32.mrf.mxu0
      %v815 = vadd.f32 0.0, %v814
      %v816 = vpop.f32.mrf.mxu0
      %v817 = vadd.f32 0.0, %v816
      %818 = vmatmul.bf16.gmra.mxu0 %v694
      %v819 = vpop.f32.mrf.mxu0
      %v820 = vadd.f32 0.0, %v819
      %v821 = vpop.f32.mrf.mxu0
      %v822 = vadd.f32 0.0, %v821
      %823 = vmatmul.bf16.gmra.mxu0 %v697
      %v824 = vpop.f32.mrf.mxu0
      %v825 = vadd.f32 0.0, %v824
      %v826 = vpop.f32.mrf.mxu0
      %v827 = vadd.f32 0.0, %v826
      %828 = vmatmul.bf16.gmra.mxu0 %v700
      %v829 = vpop.f32.mrf.mxu0
      %v830 = vadd.f32 0.0, %v829
      %v831 = vpop.f32.mrf.mxu0
      %v832 = vadd.f32 0.0, %v831
      %833 = vmatmul.bf16.gmra.mxu0 %v703
      %v834 = vpop.f32.mrf.mxu0
      %v835 = vadd.f32 0.0, %v834
      %v836 = vpop.f32.mrf.mxu0
      %v837 = vadd.f32 0.0, %v836
      %838 = vmatmul.bf16.gmra.mxu0 %v706
      %v839 = vpop.f32.mrf.mxu0
      %v840 = vadd.f32 0.0, %v839
      %v841 = vpop.f32.mrf.mxu0
      %v842 = vadd.f32 0.0, %v841
      %843 = vmatmul.bf16.gmra.mxu0 %v709
      %v844 = vpop.f32.mrf.mxu0
      %v845 = vadd.f32 0.0, %v844
      %v846 = vpop.f32.mrf.mxu0
      %v847 = vadd.f32 0.0, %v846
      %848 = vmatmul.bf16.gmra.mxu0 %v712
      %v849 = vpop.f32.mrf.mxu0
      %v850 = vadd.f32 0.0, %v849
      %v851 = vpop.f32.mrf.mxu0
      %v852 = vadd.f32 0.0, %v851
      %853 = vmatmul.bf16.gmra.mxu0 %v715
      %v854 = vpop.f32.mrf.mxu0
      %v855 = vadd.f32 0.0, %v854
      %v856 = vpop.f32.mrf.mxu0
      %v857 = vadd.f32 0.0, %v856
      %858 = vmatmul.bf16.gmra.mxu0 %v718
      %v859 = vpop.f32.mrf.mxu0
      %v860 = vadd.f32 0.0, %v859
      %v861 = vpop.f32.mrf.mxu0
      %v862 = vadd.f32 0.0, %v861
      %863 = vmatmul.bf16.gmra.mxu0 %v721
      %v864 = vpop.f32.mrf.mxu0
      %v865 = vadd.f32 0.0, %v864
      %v866 = vpop.f32.mrf.mxu0
      %v867 = vadd.f32 0.0, %v866
      %868 = vmatmul.bf16.gmra.mxu0 %v724
      %v869 = vpop.f32.mrf.mxu0
      %v870 = vadd.f32 0.0, %v869
      %v871 = vpop.f32.mrf.mxu0
      %v872 = vadd.f32 0.0, %v871
      %873 = vmatmul.bf16.gmra.mxu0 %v727
      %v874 = vpop.f32.mrf.mxu0
      %v875 = vadd.f32 0.0, %v874
      %v876 = vpop.f32.mrf.mxu0
      %v877 = vadd.f32 0.0, %v876
      %878 = vmatmul.bf16.gmra.mxu0 %v730
      %v879 = vpop.f32.mrf.mxu0
      %v880 = vadd.f32 0.0, %v879
      %v881 = vpop.f32.mrf.mxu0
      %v882 = vadd.f32 0.0, %v881
      %883 = vmatmul.bf16.gmra.mxu0 %v733
      %v884 = vpop.f32.mrf.mxu0
      %v885 = vadd.f32 0.0, %v884
      %v886 = vpop.f32.mrf.mxu0
      %v887 = vadd.f32 0.0, %v886
      %888 = vmatmul.bf16.gmra.mxu0 %v736
      %v889 = vpop.f32.mrf.mxu0
      %v890 = vadd.f32 0.0, %v889
      %v891 = vpop.f32.mrf.mxu0
      %v892 = vadd.f32 0.0, %v891
      %893 = vmatmul.bf16.gmra.mxu0 %v739
      %v894 = vpop.f32.mrf.mxu0
      %v895 = vadd.f32 0.0, %v894
      %v896 = vpop.f32.mrf.mxu0
      %v897 = vadd.f32 0.0, %v896
      %898 = vmatmul.bf16.gmra.mxu0 %v742
      %v899 = vpop.f32.mrf.mxu0
      %v900 = vadd.f32 0.0, %v899
      %v901 = vpop.f32.mrf.mxu0
      %v902 = vadd.f32 0.0, %v901
      %903 = vmatmul.bf16.gmra.mxu0 %v745
      %v904 = vpop.f32.mrf.mxu0
      %v905 = vadd.f32 0.0, %v904
      %v906 = vpop.f32.mrf.mxu0
      %v907 = vadd.f32 0.0, %v906
      %908 = vmatmul.bf16.gmra.mxu0 %v748
      %v909 = vpop.f32.mrf.mxu0
      %v910 = vadd.f32 0.0, %v909
      %v911 = vpop.f32.mrf.mxu0
      %v912 = vadd.f32 0.0, %v911
      %913 = vmatmul.bf16.gmra.mxu0 %v751
      %v914 = vpop.f32.mrf.mxu0
      %v915 = vadd.f32 0.0, %v914
      %v916 = vpop.f32.mrf.mxu0
      %v917 = vadd.f32 0.0, %v916
      %918 = vmatmul.bf16.gmra.mxu0 %v754
      %v919 = vpop.f32.mrf.mxu0
      %v920 = vadd.f32 0.0, %v919
      %v921 = vpop.f32.mrf.mxu0
      %v922 = vadd.f32 0.0, %v921
      %923 = vmatmul.bf16.gmra.mxu0 %v757
      %v924 = vpop.f32.mrf.mxu0
      %v925 = vadd.f32 0.0, %v924
      %v926 = vpop.f32.mrf.mxu0
      %v927 = vadd.f32 0.0, %v926
      %928 = vmatmul.bf16.gmra.mxu0 %v760
      %v929 = vpop.f32.mrf.mxu0
      %v930 = vadd.f32 0.0, %v929
      %v931 = vpop.f32.mrf.mxu0
      %v932 = vadd.f32 0.0, %v931
      %933 = vmatmul.bf16.gmra.mxu0 %v763
      %v934 = vpop.f32.mrf.mxu0
      %v935 = vadd.f32 0.0, %v934
      %v936 = vpop.f32.mrf.mxu0
      %v937 = vadd.f32 0.0, %v936
      %938 = vmatmul.bf16.gmra.mxu0 %v766
      %v939 = vpop.f32.mrf.mxu0
      %v940 = vadd.f32 0.0, %v939
      %v941 = vpop.f32.mrf.mxu0
      %v942 = vadd.f32 0.0, %v941
      %943 = vdwg.mxu0
      %v1008 = vunpack.c.l.b16 %v366
      %v1009 = vunpack.c.l.b16 %v367
      %v1010 = vunpack.c.l.b16 %v368
      %v1011 = vunpack.c.l.b16 %v369
      %v1012 = vunpack.c.l.b16 %v370
      %v1013 = vunpack.c.l.b16 %v371
      %v1014 = vunpack.c.l.b16 %v372
      %v1015 = vunpack.c.l.b16 %v373
      %v1016 = vunpack.c.l.b16 %v374
      %v1017 = vunpack.c.l.b16 %v375
      %v1018 = vunpack.c.l.b16 %v376
      %v1019 = vunpack.c.l.b16 %v377
      %v1020 = vunpack.c.l.b16 %v378
      %v1021 = vunpack.c.l.b16 %v379
      %v1022 = vunpack.c.l.b16 %v380
      %v1023 = vunpack.c.l.b16 %v381
      %v1024 = vunpack.c.l.b16 %v382
      %v1025 = vunpack.c.l.b16 %v383
      %v1026 = vunpack.c.l.b16 %v384
      %v1027 = vunpack.c.l.b16 %v385
      %v1028 = vunpack.c.l.b16 %v386
      %v1029 = vunpack.c.l.b16 %v387
      %v1030 = vunpack.c.l.b16 %v388
      %v1031 = vunpack.c.l.b16 %v389
      %v1032 = vunpack.c.l.b16 %v390
      %v1033 = vunpack.c.l.b16 %v391
      %v1034 = vunpack.c.l.b16 %v392
      %v1035 = vunpack.c.l.b16 %v393
      %v1036 = vunpack.c.l.b16 %v394
      %v1037 = vunpack.c.l.b16 %v395
      %v1038 = vunpack.c.l.b16 %v396
      %v1039 = vunpack.c.l.b16 %v397
      %v1040 = vunpack.c.l.b16 %v398
      %v1041 = vunpack.c.l.b16 %v399
      %v1042 = vunpack.c.l.b16 %v400
      %v1043 = vunpack.c.l.b16 %v401
      %v1044 = vunpack.c.l.b16 %v402
      %v1045 = vunpack.c.l.b16 %v403
      %v1046 = vunpack.c.l.b16 %v404
      %v1047 = vunpack.c.l.b16 %v405
      %v1048 = vunpack.c.l.b16 %v406
      %v1049 = vunpack.c.l.b16 %v407
      %v1050 = vunpack.c.l.b16 %v408
      %v1051 = vunpack.c.l.b16 %v409
      %v1052 = vunpack.c.l.b16 %v410
      %v1053 = vunpack.c.l.b16 %v411
      %v1054 = vunpack.c.l.b16 %v412
      %v1055 = vunpack.c.l.b16 %v413
      %v1056 = vunpack.c.l.b16 %v414
      %v1057 = vunpack.c.l.b16 %v415
      %v1058 = vunpack.c.l.b16 %v416
      %v1059 = vunpack.c.l.b16 %v417
      %v1060 = vunpack.c.l.b16 %v418
      %v1061 = vunpack.c.l.b16 %v419
      %v1062 = vunpack.c.l.b16 %v420
      %v1063 = vunpack.c.l.b16 %v421
      %v1064 = vunpack.c.l.b16 %v422
      %v1065 = vunpack.c.l.b16 %v423
      %v1066 = vunpack.c.l.b16 %v424
      %v1067 = vunpack.c.l.b16 %v425
      %v1068 = vunpack.c.l.b16 %v426
      %v1069 = vunpack.c.l.b16 %v427
      %v1070 = vunpack.c.l.b16 %v428
      %v1071 = vunpack.c.l.b16 %v429
      %v1072 = vpack.c.b16 %v1009, %v1008
      %v1073 = vpack.c.b16 %v1011, %v1010
      %v1074 = vpack.c.b16 %v1013, %v1012
      %v1075 = vpack.c.b16 %v1015, %v1014
      %v1076 = vpack.c.b16 %v1017, %v1016
      %v1077 = vpack.c.b16 %v1019, %v1018
      %v1078 = vpack.c.b16 %v1021, %v1020
      %v1079 = vpack.c.b16 %v1023, %v1022
      %v1080 = vpack.c.b16 %v1025, %v1024
      %v1081 = vpack.c.b16 %v1027, %v1026
      %v1082 = vpack.c.b16 %v1029, %v1028
      %v1083 = vpack.c.b16 %v1031, %v1030
      %v1084 = vpack.c.b16 %v1033, %v1032
      %v1085 = vpack.c.b16 %v1035, %v1034
      %v1086 = vpack.c.b16 %v1037, %v1036
      %v1087 = vpack.c.b16 %v1039, %v1038
      %v1088 = vpack.c.b16 %v1041, %v1040
      %v1089 = vpack.c.b16 %v1043, %v1042
      %v1090 = vpack.c.b16 %v1045, %v1044
      %v1091 = vpack.c.b16 %v1047, %v1046
      %v1092 = vpack.c.b16 %v1049, %v1048
      %v1093 = vpack.c.b16 %v1051, %v1050
      %v1094 = vpack.c.b16 %v1053, %v1052
      %v1095 = vpack.c.b16 %v1055, %v1054
      %v1096 = vpack.c.b16 %v1057, %v1056
      %v1097 = vpack.c.b16 %v1059, %v1058
      %v1098 = vpack.c.b16 %v1061, %v1060
      %v1099 = vpack.c.b16 %v1063, %v1062
      %v1100 = vpack.c.b16 %v1065, %v1064
      %v1101 = vpack.c.b16 %v1067, %v1066
      %v1102 = vpack.c.b16 %v1069, %v1068
      %v1103 = vpack.c.b16 %v1071, %v1070
      %v1152 = vunpack.c.l.b16 %v430
      %v1153 = vunpack.c.l.b16 %v431
      %v1154 = vunpack.c.l.b16 %v432
      %v1155 = vunpack.c.l.b16 %v433
      %v1156 = vunpack.c.l.b16 %v434
      %v1157 = vunpack.c.l.b16 %v435
      %v1158 = vunpack.c.l.b16 %v436
      %v1159 = vunpack.c.l.b16 %v437
      %v1160 = vunpack.c.l.b16 %v438
      %v1161 = vunpack.c.l.b16 %v439
      %v1162 = vunpack.c.l.b16 %v440
      %v1163 = vunpack.c.l.b16 %v441
      %v1164 = vunpack.c.l.b16 %v442
      %v1165 = vunpack.c.l.b16 %v443
      %v1166 = vunpack.c.l.b16 %v444
      %v1167 = vunpack.c.l.b16 %v445
      %v1168 = vpack.c.b16 %v1153, %v1152
      %v1169 = vpack.c.b16 %v1155, %v1154
      %v1170 = vpack.c.b16 %v1157, %v1156
      %v1171 = vpack.c.b16 %v1159, %v1158
      %v1172 = vpack.c.b16 %v1161, %v1160
      %v1173 = vpack.c.b16 %v1163, %v1162
      %v1174 = vpack.c.b16 %v1165, %v1164
      %v1175 = vpack.c.b16 %v1167, %v1166
      %1184 = vmatpush.bf16.msra.mxu0 %v1175
      %1185 = vmatpush.bf16.msra.mxu0 %v1174
      %1186 = vmatpush.bf16.msra.mxu0 %v1173
      %1187 = vmatpush.bf16.msra.mxu0 %v1172
      %1188 = vmatpush.bf16.msra.mxu0 %v1171
      %1189 = vmatpush.bf16.msra.mxu0 %v1170
      %1190 = vmatpush.bf16.msra.mxu0 %v1169
      %1191 = vmatpush.bf16.msra.mxu0 %v1168
      %1192 = vmatmul.bf16.gmra.mxu0 %v1072
      %v1193 = vpop.f32.mrf.mxu0
      %v1194 = vadd.f32 %v785, %v1193
      %v1195 = vpop.f32.mrf.mxu0
      %v1196 = vadd.f32 %v787, %v1195
      %1197 = vmatmul.bf16.gmra.mxu0 %v1073
      %v1198 = vpop.f32.mrf.mxu0
      %v1199 = vadd.f32 %v790, %v1198
      %v1200 = vpop.f32.mrf.mxu0
      %v1201 = vadd.f32 %v792, %v1200
      %1202 = vmatmul.bf16.gmra.mxu0 %v1074
      %v1203 = vpop.f32.mrf.mxu0
      %v1204 = vadd.f32 %v795, %v1203
      %v1205 = vpop.f32.mrf.mxu0
      %v1206 = vadd.f32 %v797, %v1205
      %1207 = vmatmul.bf16.gmra.mxu0 %v1075
      %v1208 = vpop.f32.mrf.mxu0
      %v1209 = vadd.f32 %v800, %v1208
      %v1210 = vpop.f32.mrf.mxu0
      %v1211 = vadd.f32 %v802, %v1210
      %1212 = vmatmul.bf16.gmra.mxu0 %v1076
      %v1213 = vpop.f32.mrf.mxu0
      %v1214 = vadd.f32 %v805, %v1213
      %v1215 = vpop.f32.mrf.mxu0
      %v1216 = vadd.f32 %v807, %v1215
      %1217 = vmatmul.bf16.gmra.mxu0 %v1077
      %v1218 = vpop.f32.mrf.mxu0
      %v1219 = vadd.f32 %v810, %v1218
      %v1220 = vpop.f32.mrf.mxu0
      %v1221 = vadd.f32 %v812, %v1220
      %1222 = vmatmul.bf16.gmra.mxu0 %v1078
      %v1223 = vpop.f32.mrf.mxu0
      %v1224 = vadd.f32 %v815, %v1223
      %v1225 = vpop.f32.mrf.mxu0
      %v1226 = vadd.f32 %v817, %v1225
      %1227 = vmatmul.bf16.gmra.mxu0 %v1079
      %v1228 = vpop.f32.mrf.mxu0
      %v1229 = vadd.f32 %v820, %v1228
      %v1230 = vpop.f32.mrf.mxu0
      %v1231 = vadd.f32 %v822, %v1230
      %1232 = vmatmul.bf16.gmra.mxu0 %v1080
      %v1233 = vpop.f32.mrf.mxu0
      %v1234 = vadd.f32 %v825, %v1233
      %v1235 = vpop.f32.mrf.mxu0
      %v1236 = vadd.f32 %v827, %v1235
      %1237 = vmatmul.bf16.gmra.mxu0 %v1081
      %v1238 = vpop.f32.mrf.mxu0
      %v1239 = vadd.f32 %v830, %v1238
      %v1240 = vpop.f32.mrf.mxu0
      %v1241 = vadd.f32 %v832, %v1240
      %1242 = vmatmul.bf16.gmra.mxu0 %v1082
      %v1243 = vpop.f32.mrf.mxu0
      %v1244 = vadd.f32 %v835, %v1243
      %v1245 = vpop.f32.mrf.mxu0
      %v1246 = vadd.f32 %v837, %v1245
      %1247 = vmatmul.bf16.gmra.mxu0 %v1083
      %v1248 = vpop.f32.mrf.mxu0
      %v1249 = vadd.f32 %v840, %v1248
      %v1250 = vpop.f32.mrf.mxu0
      %v1251 = vadd.f32 %v842, %v1250
      %1252 = vmatmul.bf16.gmra.mxu0 %v1084
      %v1253 = vpop.f32.mrf.mxu0
      %v1254 = vadd.f32 %v845, %v1253
      %v1255 = vpop.f32.mrf.mxu0
      %v1256 = vadd.f32 %v847, %v1255
      %1257 = vmatmul.bf16.gmra.mxu0 %v1085
      %v1258 = vpop.f32.mrf.mxu0
      %v1259 = vadd.f32 %v850, %v1258
      %v1260 = vpop.f32.mrf.mxu0
      %v1261 = vadd.f32 %v852, %v1260
      %1262 = vmatmul.bf16.gmra.mxu0 %v1086
      %v1263 = vpop.f32.mrf.mxu0
      %v1264 = vadd.f32 %v855, %v1263
      %v1265 = vpop.f32.mrf.mxu0
      %v1266 = vadd.f32 %v857, %v1265
      %1267 = vmatmul.bf16.gmra.mxu0 %v1087
      %v1268 = vpop.f32.mrf.mxu0
      %v1269 = vadd.f32 %v860, %v1268
      %v1270 = vpop.f32.mrf.mxu0
      %v1271 = vadd.f32 %v862, %v1270
      %1272 = vmatmul.bf16.gmra.mxu0 %v1088
      %v1273 = vpop.f32.mrf.mxu0
      %v1274 = vadd.f32 %v865, %v1273
      %v1275 = vpop.f32.mrf.mxu0
      %v1276 = vadd.f32 %v867, %v1275
      %1277 = vmatmul.bf16.gmra.mxu0 %v1089
      %v1278 = vpop.f32.mrf.mxu0
      %v1279 = vadd.f32 %v870, %v1278
      %v1280 = vpop.f32.mrf.mxu0
      %v1281 = vadd.f32 %v872, %v1280
      %1282 = vmatmul.bf16.gmra.mxu0 %v1090
      %v1283 = vpop.f32.mrf.mxu0
      %v1284 = vadd.f32 %v875, %v1283
      %v1285 = vpop.f32.mrf.mxu0
      %v1286 = vadd.f32 %v877, %v1285
      %1287 = vmatmul.bf16.gmra.mxu0 %v1091
      %v1288 = vpop.f32.mrf.mxu0
      %v1289 = vadd.f32 %v880, %v1288
      %v1290 = vpop.f32.mrf.mxu0
      %v1291 = vadd.f32 %v882, %v1290
      %1292 = vmatmul.bf16.gmra.mxu0 %v1092
      %v1293 = vpop.f32.mrf.mxu0
      %v1294 = vadd.f32 %v885, %v1293
      %v1295 = vpop.f32.mrf.mxu0
      %v1296 = vadd.f32 %v887, %v1295
      %1297 = vmatmul.bf16.gmra.mxu0 %v1093
      %v1298 = vpop.f32.mrf.mxu0
      %v1299 = vadd.f32 %v890, %v1298
      %v1300 = vpop.f32.mrf.mxu0
      %v1301 = vadd.f32 %v892, %v1300
      %1302 = vmatmul.bf16.gmra.mxu0 %v1094
      %v1303 = vpop.f32.mrf.mxu0
      %v1304 = vadd.f32 %v895, %v1303
      %v1305 = vpop.f32.mrf.mxu0
      %v1306 = vadd.f32 %v897, %v1305
      %1307 = vmatmul.bf16.gmra.mxu0 %v1095
      %v1308 = vpop.f32.mrf.mxu0
      %v1309 = vadd.f32 %v900, %v1308
      %v1310 = vpop.f32.mrf.mxu0
      %v1311 = vadd.f32 %v902, %v1310
      %1312 = vmatmul.bf16.gmra.mxu0 %v1096
      %v1313 = vpop.f32.mrf.mxu0
      %v1314 = vadd.f32 %v905, %v1313
      %v1315 = vpop.f32.mrf.mxu0
      %v1316 = vadd.f32 %v907, %v1315
      %1317 = vmatmul.bf16.gmra.mxu0 %v1097
      %v1318 = vpop.f32.mrf.mxu0
      %v1319 = vadd.f32 %v910, %v1318
      %v1320 = vpop.f32.mrf.mxu0
      %v1321 = vadd.f32 %v912, %v1320
      %1322 = vmatmul.bf16.gmra.mxu0 %v1098
      %v1323 = vpop.f32.mrf.mxu0
      %v1324 = vadd.f32 %v915, %v1323
      %v1325 = vpop.f32.mrf.mxu0
      %v1326 = vadd.f32 %v917, %v1325
      %1327 = vmatmul.bf16.gmra.mxu0 %v1099
      %v1328 = vpop.f32.mrf.mxu0
      %v1329 = vadd.f32 %v920, %v1328
      %v1330 = vpop.f32.mrf.mxu0
      %v1331 = vadd.f32 %v922, %v1330
      %1332 = vmatmul.bf16.gmra.mxu0 %v1100
      %v1333 = vpop.f32.mrf.mxu0
      %v1334 = vadd.f32 %v925, %v1333
      %v1335 = vpop.f32.mrf.mxu0
      %v1336 = vadd.f32 %v927, %v1335
      %1337 = vmatmul.bf16.gmra.mxu0 %v1101
      %v1338 = vpop.f32.mrf.mxu0
      %v1339 = vadd.f32 %v930, %v1338
      %v1340 = vpop.f32.mrf.mxu0
      %v1341 = vadd.f32 %v932, %v1340
      %1342 = vmatmul.bf16.gmra.mxu0 %v1102
      %v1343 = vpop.f32.mrf.mxu0
      %v1344 = vadd.f32 %v935, %v1343
      %v1345 = vpop.f32.mrf.mxu0
      %v1346 = vadd.f32 %v937, %v1345
      %1347 = vmatmul.bf16.gmra.mxu0 %v1103
      %v1348 = vpop.f32.mrf.mxu0
      %v1349 = vadd.f32 %v940, %v1348
      %v1350 = vpop.f32.mrf.mxu0
      %v1351 = vadd.f32 %v942, %v1350
      %1352 = vdwg.mxu0
      %v1353 = vld [vmem:[%s6] sm:$0x1]
      %v1355 = vperm.slane %v1353, 0
      %v1357 = vadd.f32 %v1194, %v1355
      %v1358 = vadd.f32 %v1196, %v1355
      %v1359 = vadd.f32 %v1199, %v1355
      %v1360 = vadd.f32 %v1201, %v1355
      %v1361 = vadd.f32 %v1204, %v1355
      %v1362 = vadd.f32 %v1206, %v1355
      %v1363 = vadd.f32 %v1209, %v1355
      %v1364 = vadd.f32 %v1211, %v1355
      %v1365 = vadd.f32 %v1214, %v1355
      %v1366 = vadd.f32 %v1216, %v1355
      %v1367 = vadd.f32 %v1219, %v1355
      %v1368 = vadd.f32 %v1221, %v1355
      %v1369 = vadd.f32 %v1224, %v1355
      %v1370 = vadd.f32 %v1226, %v1355
      %v1371 = vadd.f32 %v1229, %v1355
      %v1372 = vadd.f32 %v1231, %v1355
      %v1373 = vadd.f32 %v1234, %v1355
      %v1374 = vadd.f32 %v1236, %v1355
      %v1375 = vadd.f32 %v1239, %v1355
      %v1376 = vadd.f32 %v1241, %v1355
      %v1377 = vadd.f32 %v1244, %v1355
      %v1378 = vadd.f32 %v1246, %v1355
      %v1379 = vadd.f32 %v1249, %v1355
      %v1380 = vadd.f32 %v1251, %v1355
      %v1381 = vadd.f32 %v1254, %v1355
      %v1382 = vadd.f32 %v1256, %v1355
      %v1383 = vadd.f32 %v1259, %v1355
      %v1384 = vadd.f32 %v1261, %v1355
      %v1385 = vadd.f32 %v1264, %v1355
      %v1386 = vadd.f32 %v1266, %v1355
      %v1387 = vadd.f32 %v1269, %v1355
      %v1388 = vadd.f32 %v1271, %v1355
      %v1389 = vadd.f32 %v1274, %v1355
      %v1390 = vadd.f32 %v1276, %v1355
      %v1391 = vadd.f32 %v1279, %v1355
      %v1392 = vadd.f32 %v1281, %v1355
      %v1393 = vadd.f32 %v1284, %v1355
      %v1394 = vadd.f32 %v1286, %v1355
      %v1395 = vadd.f32 %v1289, %v1355
      %v1396 = vadd.f32 %v1291, %v1355
      %v1397 = vadd.f32 %v1294, %v1355
      %v1398 = vadd.f32 %v1296, %v1355
      %v1399 = vadd.f32 %v1299, %v1355
      %v1400 = vadd.f32 %v1301, %v1355
      %v1401 = vadd.f32 %v1304, %v1355
      %v1402 = vadd.f32 %v1306, %v1355
      %v1403 = vadd.f32 %v1309, %v1355
      %v1404 = vadd.f32 %v1311, %v1355
      %v1405 = vadd.f32 %v1314, %v1355
      %v1406 = vadd.f32 %v1316, %v1355
      %v1407 = vadd.f32 %v1319, %v1355
      %v1408 = vadd.f32 %v1321, %v1355
      %v1409 = vadd.f32 %v1324, %v1355
      %v1410 = vadd.f32 %v1326, %v1355
      %v1411 = vadd.f32 %v1329, %v1355
      %v1412 = vadd.f32 %v1331, %v1355
      %v1413 = vadd.f32 %v1334, %v1355
      %v1414 = vadd.f32 %v1336, %v1355
      %v1415 = vadd.f32 %v1339, %v1355
      %v1416 = vadd.f32 %v1341, %v1355
      %v1417 = vadd.f32 %v1344, %v1355
      %v1418 = vadd.f32 %v1346, %v1355
      %v1419 = vadd.f32 %v1349, %v1355
      %v1420 = vadd.f32 %v1351, %v1355
      %v1421 = vmax.f32 %v1357, 0.0
      %v1422 = vmax.f32 %v1358, 0.0
      %v1423 = vmax.f32 %v1359, 0.0
      %v1424 = vmax.f32 %v1360, 0.0
      %v1425 = vmax.f32 %v1361, 0.0
      %v1426 = vmax.f32 %v1362, 0.0
      %v1427 = vmax.f32 %v1363, 0.0
      %v1428 = vmax.f32 %v1364, 0.0
      %v1429 = vmax.f32 %v1365, 0.0
      %v1430 = vmax.f32 %v1366, 0.0
      %v1431 = vmax.f32 %v1367, 0.0
      %v1432 = vmax.f32 %v1368, 0.0
      %v1433 = vmax.f32 %v1369, 0.0
      %v1434 = vmax.f32 %v1370, 0.0
      %v1435 = vmax.f32 %v1371, 0.0
      %v1436 = vmax.f32 %v1372, 0.0
      %v1437 = vmax.f32 %v1373, 0.0
      %v1438 = vmax.f32 %v1374, 0.0
      %v1439 = vmax.f32 %v1375, 0.0
      %v1440 = vmax.f32 %v1376, 0.0
      %v1441 = vmax.f32 %v1377, 0.0
      %v1442 = vmax.f32 %v1378, 0.0
      %v1443 = vmax.f32 %v1379, 0.0
      %v1444 = vmax.f32 %v1380, 0.0
      %v1445 = vmax.f32 %v1381, 0.0
      %v1446 = vmax.f32 %v1382, 0.0
      %v1447 = vmax.f32 %v1383, 0.0
      %v1448 = vmax.f32 %v1384, 0.0
      %v1449 = vmax.f32 %v1385, 0.0
      %v1450 = vmax.f32 %v1386, 0.0
      %v1451 = vmax.f32 %v1387, 0.0
      %v1452 = vmax.f32 %v1388, 0.0
      %v1453 = vmax.f32 %v1389, 0.0
      %v1454 = vmax.f32 %v1390, 0.0
      %v1455 = vmax.f32 %v1391, 0.0
      %v1456 = vmax.f32 %v1392, 0.0
      %v1457 = vmax.f32 %v1393, 0.0
      %v1458 = vmax.f32 %v1394, 0.0
      %v1459 = vmax.f32 %v1395, 0.0
      %v1460 = vmax.f32 %v1396, 0.0
      %v1461 = vmax.f32 %v1397, 0.0
      %v1462 = vmax.f32 %v1398, 0.0
      %v1463 = vmax.f32 %v1399, 0.0
      %v1464 = vmax.f32 %v1400, 0.0
      %v1465 = vmax.f32 %v1401, 0.0
      %v1466 = vmax.f32 %v1402, 0.0
      %v1467 = vmax.f32 %v1403, 0.0
      %v1468 = vmax.f32 %v1404, 0.0
      %v1469 = vmax.f32 %v1405, 0.0
      %v1470 = vmax.f32 %v1406, 0.0
      %v1471 = vmax.f32 %v1407, 0.0
      %v1472 = vmax.f32 %v1408, 0.0
      %v1473 = vmax.f32 %v1409, 0.0
      %v1474 = vmax.f32 %v1410, 0.0
      %v1475 = vmax.f32 %v1411, 0.0
      %v1476 = vmax.f32 %v1412, 0.0
      %v1477 = vmax.f32 %v1413, 0.0
      %v1478 = vmax.f32 %v1414, 0.0
      %v1479 = vmax.f32 %v1415, 0.0
      %v1480 = vmax.f32 %v1416, 0.0
      %v1481 = vmax.f32 %v1417, 0.0
      %v1482 = vmax.f32 %v1418, 0.0
      %v1483 = vmax.f32 %v1419, 0.0
      %v1484 = vmax.f32 %v1420, 0.0
      %v1485 = vld [vmem:[%s327] sm:$0xf]
      %v1486 = vld [vmem:[%s327 + $0x4] sm:$0xf]
      %v1487 = vld [vmem:[%s327 + $0x8] sm:$0xf]
      %v1488 = vld [vmem:[%s327 + $0xc] sm:$0xf]
      %v1489 = vld [vmem:[%s327 + $0x10] sm:$0xf]
      %v1490 = vld [vmem:[%s327 + $0x14] sm:$0xf]
      %v1491 = vld [vmem:[%s327 + $0x18] sm:$0xf]
      %v1492 = vld [vmem:[%s327 + $0x1c] sm:$0xf]
      %v1493 = vld [vmem:[%s327 + $0x20] sm:$0xf]
      %v1494 = vld [vmem:[%s327 + $0x24] sm:$0xf]
      %v1495 = vld [vmem:[%s327 + $0x28] sm:$0xf]
      %v1496 = vld [vmem:[%s327 + $0x2c] sm:$0xf]
      %v1497 = vld [vmem:[%s327 + $0x30] sm:$0xf]
      %v1498 = vld [vmem:[%s327 + $0x34] sm:$0xf]
      %v1499 = vld [vmem:[%s327 + $0x38] sm:$0xf]
      %v1500 = vld [vmem:[%s327 + $0x3c] sm:$0xf]
      %v1501 = vld [vmem:[%s327 + $0x40] sm:$0xf]
      %v1502 = vld [vmem:[%s327 + $0x44] sm:$0xf]
      %v1503 = vld [vmem:[%s327 + $0x48] sm:$0xf]
      %v1504 = vld [vmem:[%s327 + $0x4c] sm:$0xf]
      %v1505 = vld [vmem:[%s327 + $0x50] sm:$0xf]
      %v1506 = vld [vmem:[%s327 + $0x54] sm:$0xf]
      %v1507 = vld [vmem:[%s327 + $0x58] sm:$0xf]
      %v1508 = vld [vmem:[%s327 + $0x5c] sm:$0xf]
      %v1509 = vld [vmem:[%s327 + $0x60] sm:$0xf]
      %v1510 = vld [vmem:[%s327 + $0x64] sm:$0xf]
      %v1511 = vld [vmem:[%s327 + $0x68] sm:$0xf]
      %v1512 = vld [vmem:[%s327 + $0x6c] sm:$0xf]
      %v1513 = vld [vmem:[%s327 + $0x70] sm:$0xf]
      %v1514 = vld [vmem:[%s327 + $0x74] sm:$0xf]
      %v1515 = vld [vmem:[%s327 + $0x78] sm:$0xf]
      %v1516 = vld [vmem:[%s327 + $0x7c] sm:$0xf]
      %v1517 = vld [vmem:[%s327 + $0x80] sm:$0xf]
      %v1518 = vld [vmem:[%s327 + $0x84] sm:$0xf]
      %v1519 = vld [vmem:[%s327 + $0x88] sm:$0xf]
      %v1520 = vld [vmem:[%s327 + $0x8c] sm:$0xf]
      %v1521 = vld [vmem:[%s327 + $0x90] sm:$0xf]
      %v1522 = vld [vmem:[%s327 + $0x94] sm:$0xf]
      %v1523 = vld [vmem:[%s327 + $0x98] sm:$0xf]
      %v1524 = vld [vmem:[%s327 + $0x9c] sm:$0xf]
      %v1525 = vld [vmem:[%s327 + $0xa0] sm:$0xf]
      %v1526 = vld [vmem:[%s327 + $0xa4] sm:$0xf]
      %v1527 = vld [vmem:[%s327 + $0xa8] sm:$0xf]
      %v1528 = vld [vmem:[%s327 + $0xac] sm:$0xf]
      %v1529 = vld [vmem:[%s327 + $0xb0] sm:$0xf]
      %v1530 = vld [vmem:[%s327 + $0xb4] sm:$0xf]
      %v1531 = vld [vmem:[%s327 + $0xb8] sm:$0xf]
      %v1532 = vld [vmem:[%s327 + $0xbc] sm:$0xf]
      %v1533 = vld [vmem:[%s327 + $0xc0] sm:$0xf]
      %v1534 = vld [vmem:[%s327 + $0xc4] sm:$0xf]
      %v1535 = vld [vmem:[%s327 + $0xc8] sm:$0xf]
      %v1536 = vld [vmem:[%s327 + $0xcc] sm:$0xf]
      %v1537 = vld [vmem:[%s327 + $0xd0] sm:$0xf]
      %v1538 = vld [vmem:[%s327 + $0xd4] sm:$0xf]
      %v1539 = vld [vmem:[%s327 + $0xd8] sm:$0xf]
      %v1540 = vld [vmem:[%s327 + $0xdc] sm:$0xf]
      %v1541 = vld [vmem:[%s327 + $0xe0] sm:$0xf]
      %v1542 = vld [vmem:[%s327 + $0xe4] sm:$0xf]
      %v1543 = vld [vmem:[%s327 + $0xe8] sm:$0xf]
      %v1544 = vld [vmem:[%s327 + $0xec] sm:$0xf]
      %v1545 = vld [vmem:[%s327 + $0xf0] sm:$0xf]
      %v1546 = vld [vmem:[%s327 + $0xf4] sm:$0xf]
      %v1547 = vld [vmem:[%s327 + $0xf8] sm:$0xf]
      %v1548 = vld [vmem:[%s327 + $0xfc] sm:$0xf]
      %v1549 = vunpack.c.l.bf16 %v1485
      %v1550 = vunpack.c.l.bf16 %v1486
      %v1551 = vunpack.c.l.bf16 %v1487
      %v1552 = vunpack.c.l.bf16 %v1488
      %v1553 = vunpack.c.l.bf16 %v1489
      %v1554 = vunpack.c.l.bf16 %v1490
      %v1555 = vunpack.c.l.bf16 %v1491
      %v1556 = vunpack.c.l.bf16 %v1492
      %v1557 = vunpack.c.l.bf16 %v1493
      %v1558 = vunpack.c.l.bf16 %v1494
      %v1559 = vunpack.c.l.bf16 %v1495
      %v1560 = vunpack.c.l.bf16 %v1496
      %v1561 = vunpack.c.l.bf16 %v1497
      %v1562 = vunpack.c.l.bf16 %v1498
      %v1563 = vunpack.c.l.bf16 %v1499
      %v1564 = vunpack.c.l.bf16 %v1500
      %v1565 = vunpack.c.l.bf16 %v1501
      %v1566 = vunpack.c.l.bf16 %v1502
      %v1567 = vunpack.c.l.bf16 %v1503
      %v1568 = vunpack.c.l.bf16 %v1504
      %v1569 = vunpack.c.l.bf16 %v1505
      %v1570 = vunpack.c.l.bf16 %v1506
      %v1571 = vunpack.c.l.bf16 %v1507
      %v1572 = vunpack.c.l.bf16 %v1508
      %v1573 = vunpack.c.l.bf16 %v1509
      %v1574 = vunpack.c.l.bf16 %v1510
      %v1575 = vunpack.c.l.bf16 %v1511
      %v1576 = vunpack.c.l.bf16 %v1512
      %v1577 = vunpack.c.l.bf16 %v1513
      %v1578 = vunpack.c.l.bf16 %v1514
      %v1579 = vunpack.c.l.bf16 %v1515
      %v1580 = vunpack.c.l.bf16 %v1516
      %v1581 = vunpack.c.l.bf16 %v1517
      %v1582 = vunpack.c.l.bf16 %v1518
      %v1583 = vunpack.c.l.bf16 %v1519
      %v1584 = vunpack.c.l.bf16 %v1520
      %v1585 = vunpack.c.l.bf16 %v1521
      %v1586 = vunpack.c.l.bf16 %v1522
      %v1587 = vunpack.c.l.bf16 %v1523
      %v1588 = vunpack.c.l.bf16 %v1524
      %v1589 = vunpack.c.l.bf16 %v1525
      %v1590 = vunpack.c.l.bf16 %v1526
      %v1591 = vunpack.c.l.bf16 %v1527
      %v1592 = vunpack.c.l.bf16 %v1528
      %v1593 = vunpack.c.l.bf16 %v1529
      %v1594 = vunpack.c.l.bf16 %v1530
      %v1595 = vunpack.c.l.bf16 %v1531
      %v1596 = vunpack.c.l.bf16 %v1532
      %v1597 = vunpack.c.l.bf16 %v1533
      %v1598 = vunpack.c.l.bf16 %v1534
      %v1599 = vunpack.c.l.bf16 %v1535
      %v1600 = vunpack.c.l.bf16 %v1536
      %v1601 = vunpack.c.l.bf16 %v1537
      %v1602 = vunpack.c.l.bf16 %v1538
      %v1603 = vunpack.c.l.bf16 %v1539
      %v1604 = vunpack.c.l.bf16 %v1540
      %v1605 = vunpack.c.l.bf16 %v1541
      %v1606 = vunpack.c.l.bf16 %v1542
      %v1607 = vunpack.c.l.bf16 %v1543
      %v1608 = vunpack.c.l.bf16 %v1544
      %v1609 = vunpack.c.l.bf16 %v1545
      %v1610 = vunpack.c.l.bf16 %v1546
      %v1611 = vunpack.c.l.bf16 %v1547
      %v1612 = vunpack.c.l.bf16 %v1548
      %v1613 = vmul.f32 %v1421, %v1549
      %v1614 = vmul.f32 %v1422, %v1550
      %v1615 = vmul.f32 %v1423, %v1551
      %v1616 = vmul.f32 %v1424, %v1552
      %v1617 = vmul.f32 %v1425, %v1553
      %v1618 = vmul.f32 %v1426, %v1554
      %v1619 = vmul.f32 %v1427, %v1555
      %v1620 = vmul.f32 %v1428, %v1556
      %v1621 = vmul.f32 %v1429, %v1557
      %v1622 = vmul.f32 %v1430, %v1558
      %v1623 = vmul.f32 %v1431, %v1559
      %v1624 = vmul.f32 %v1432, %v1560
      %v1625 = vmul.f32 %v1433, %v1561
      %v1626 = vmul.f32 %v1434, %v1562
      %v1627 = vmul.f32 %v1435, %v1563
      %v1628 = vmul.f32 %v1436, %v1564
      %v1629 = vmul.f32 %v1437, %v1565
      %v1630 = vmul.f32 %v1438, %v1566
      %v1631 = vmul.f32 %v1439, %v1567
      %v1632 = vmul.f32 %v1440, %v1568
      %v1633 = vmul.f32 %v1441, %v1569
      %v1634 = vmul.f32 %v1442, %v1570
      %v1635 = vmul.f32 %v1443, %v1571
      %v1636 = vmul.f32 %v1444, %v1572
      %v1637 = vmul.f32 %v1445, %v1573
      %v1638 = vmul.f32 %v1446, %v1574
      %v1639 = vmul.f32 %v1447, %v1575
      %v1640 = vmul.f32 %v1448, %v1576
      %v1641 = vmul.f32 %v1449, %v1577
      %v1642 = vmul.f32 %v1450, %v1578
      %v1643 = vmul.f32 %v1451, %v1579
      %v1644 = vmul.f32 %v1452, %v1580
      %v1645 = vmul.f32 %v1453, %v1581
      %v1646 = vmul.f32 %v1454, %v1582
      %v1647 = vmul.f32 %v1455, %v1583
      %v1648 = vmul.f32 %v1456, %v1584
      %v1649 = vmul.f32 %v1457, %v1585
      %v1650 = vmul.f32 %v1458, %v1586
      %v1651 = vmul.f32 %v1459, %v1587
      %v1652 = vmul.f32 %v1460, %v1588
      %v1653 = vmul.f32 %v1461, %v1589
      %v1654 = vmul.f32 %v1462, %v1590
      %v1655 = vmul.f32 %v1463, %v1591
      %v1656 = vmul.f32 %v1464, %v1592
      %v1657 = vmul.f32 %v1465, %v1593
      %v1658 = vmul.f32 %v1466, %v1594
      %v1659 = vmul.f32 %v1467, %v1595
      %v1660 = vmul.f32 %v1468, %v1596
      %v1661 = vmul.f32 %v1469, %v1597
      %v1662 = vmul.f32 %v1470, %v1598
      %v1663 = vmul.f32 %v1471, %v1599
      %v1664 = vmul.f32 %v1472, %v1600
      %v1665 = vmul.f32 %v1473, %v1601
      %v1666 = vmul.f32 %v1474, %v1602
      %v1667 = vmul.f32 %v1475, %v1603
      %v1668 = vmul.f32 %v1476, %v1604
      %v1669 = vmul.f32 %v1477, %v1605
      %v1670 = vmul.f32 %v1478, %v1606
      %v1671 = vmul.f32 %v1479, %v1607
      %v1672 = vmul.f32 %v1480, %v1608
      %v1673 = vmul.f32 %v1481, %v1609
      %v1674 = vmul.f32 %v1482, %v1610
      %v1675 = vmul.f32 %v1483, %v1611
      %v1676 = vmul.f32 %v1484, %v1612
      %v1677 = vlaneseq
      %v1678 = vshrl.u32 %v1677, 7
      %v1679 = vadd.s32 %v1678, 8
      %v1680 = vadd.s32 %v1678, 16
      %v1681 = vadd.s32 %v1678, 24
      %v1682 = vadd.s32 %v1678, 32
      %v1683 = vadd.s32 %v1678, 40
      %v1684 = vadd.s32 %v1678, 48
      %v1685 = vadd.s32 %v1678, 56
      %v1686 = vadd.s32 %v1678, 64
      %v1687 = vadd.s32 %v1678, 72
      %v1688 = vadd.s32 %v1678, 80
      %v1689 = vadd.s32 %v1678, 88
      %v1690 = vadd.s32 %v1678, 96
      %v1691 = vadd.s32 %v1678, 104
      %v1692 = vadd.s32 %v1678, 112
      %v1693 = vadd.s32 %v1678, 120
      %v1694 = vadd.s32 %v1678, 128
      %v1695 = vadd.s32 %v1678, 136
      %v1696 = vadd.s32 %v1678, 144
      %v1697 = vadd.s32 %v1678, 152
      %v1698 = vadd.s32 %v1678, 160
      %v1699 = vadd.s32 %v1678, 168
      %v1700 = vadd.s32 %v1678, 176
      %v1701 = vadd.s32 %v1678, 184
      %v1702 = vadd.s32 %v1678, 192
      %v1703 = vadd.s32 %v1678, 200
      %v1704 = vadd.s32 %v1678, 208
      %v1705 = vadd.s32 %v1678, 216
      %v1706 = vadd.s32 %v1678, 224
      %v1707 = vadd.s32 %v1678, 232
      %v1708 = vadd.s32 %v1678, 240
      %v1709 = vadd.s32 %v1678, 248
      %v1710 = vld [vmem:[%s309] sm:$0xf]
      %v1711 = vperm.slane %v1710, 0
      %v1712 = vperm.slane %v1710, 1
      %v1713 = vperm.slane %v1710, 2
      %v1714 = vperm.slane %v1710, 3
      %vm1715 = vcmp.eq.s32.totalorder %v1711, %v1678
      %vm1716 = vcmp.eq.s32.totalorder %v1712, %v1678
      %vm1717 = vcmp.eq.s32.totalorder %v1713, %v1678
      %vm1718 = vcmp.eq.s32.totalorder %v1714, %v1678
      %vm1719 = vcmp.eq.s32.totalorder %v1711, %v1679
      %vm1720 = vcmp.eq.s32.totalorder %v1712, %v1679
      %vm1721 = vcmp.eq.s32.totalorder %v1713, %v1679
      %vm1722 = vcmp.eq.s32.totalorder %v1714, %v1679
      %vm1723 = vcmp.eq.s32.totalorder %v1711, %v1680
      %vm1724 = vcmp.eq.s32.totalorder %v1712, %v1680
      %vm1725 = vcmp.eq.s32.totalorder %v1713, %v1680
      %vm1726 = vcmp.eq.s32.totalorder %v1714, %v1680
      %vm1727 = vcmp.eq.s32.totalorder %v1711, %v1681
      %vm1728 = vcmp.eq.s32.totalorder %v1712, %v1681
      %vm1729 = vcmp.eq.s32.totalorder %v1713, %v1681
      %vm1730 = vcmp.eq.s32.totalorder %v1714, %v1681
      %vm1731 = vcmp.eq.s32.totalorder %v1711, %v1682
      %vm1732 = vcmp.eq.s32.totalorder %v1712, %v1682
      %vm1733 = vcmp.eq.s32.totalorder %v1713, %v1682
      %vm1734 = vcmp.eq.s32.totalorder %v1714, %v1682
      %vm1735 = vcmp.eq.s32.totalorder %v1711, %v1683
      %vm1736 = vcmp.eq.s32.totalorder %v1712, %v1683
      %vm1737 = vcmp.eq.s32.totalorder %v1713, %v1683
      %vm1738 = vcmp.eq.s32.totalorder %v1714, %v1683
      %vm1739 = vcmp.eq.s32.totalorder %v1711, %v1684
      %vm1740 = vcmp.eq.s32.totalorder %v1712, %v1684
      %vm1741 = vcmp.eq.s32.totalorder %v1713, %v1684
      %vm1742 = vcmp.eq.s32.totalorder %v1714, %v1684
      %vm1743 = vcmp.eq.s32.totalorder %v1711, %v1685
      %vm1744 = vcmp.eq.s32.totalorder %v1712, %v1685
      %vm1745 = vcmp.eq.s32.totalorder %v1713, %v1685
      %vm1746 = vcmp.eq.s32.totalorder %v1714, %v1685
      %vm1747 = vcmp.eq.s32.totalorder %v1711, %v1686
      %vm1748 = vcmp.eq.s32.totalorder %v1712, %v1686
      %vm1749 = vcmp.eq.s32.totalorder %v1713, %v1686
      %vm1750 = vcmp.eq.s32.totalorder %v1714, %v1686
      %vm1751 = vcmp.eq.s32.totalorder %v1711, %v1687
      %vm1752 = vcmp.eq.s32.totalorder %v1712, %v1687
      %vm1753 = vcmp.eq.s32.totalorder %v1713, %v1687
      %vm1754 = vcmp.eq.s32.totalorder %v1714, %v1687
      %vm1755 = vcmp.eq.s32.totalorder %v1711, %v1688
      %vm1756 = vcmp.eq.s32.totalorder %v1712, %v1688
      %vm1757 = vcmp.eq.s32.totalorder %v1713, %v1688
      %vm1758 = vcmp.eq.s32.totalorder %v1714, %v1688
      %vm1759 = vcmp.eq.s32.totalorder %v1711, %v1689
      %vm1760 = vcmp.eq.s32.totalorder %v1712, %v1689
      %vm1761 = vcmp.eq.s32.totalorder %v1713, %v1689
      %vm1762 = vcmp.eq.s32.totalorder %v1714, %v1689
      %vm1763 = vcmp.eq.s32.totalorder %v1711, %v1690
      %vm1764 = vcmp.eq.s32.totalorder %v1712, %v1690
      %vm1765 = vcmp.eq.s32.totalorder %v1713, %v1690
      %vm1766 = vcmp.eq.s32.totalorder %v1714, %v1690
      %vm1767 = vcmp.eq.s32.totalorder %v1711, %v1691
      %vm1768 = vcmp.eq.s32.totalorder %v1712, %v1691
      %vm1769 = vcmp.eq.s32.totalorder %v1713, %v1691
      %vm1770 = vcmp.eq.s32.totalorder %v1714, %v1691
      %vm1771 = vcmp.eq.s32.totalorder %v1711, %v1692
      %vm1772 = vcmp.eq.s32.totalorder %v1712, %v1692
      %vm1773 = vcmp.eq.s32.totalorder %v1713, %v1692
      %vm1774 = vcmp.eq.s32.totalorder %v1714, %v1692
      %vm1775 = vcmp.eq.s32.totalorder %v1711, %v1693
      %vm1776 = vcmp.eq.s32.totalorder %v1712, %v1693
      %vm1777 = vcmp.eq.s32.totalorder %v1713, %v1693
      %vm1778 = vcmp.eq.s32.totalorder %v1714, %v1693
      %vm1779 = vcmp.eq.s32.totalorder %v1711, %v1694
      %vm1780 = vcmp.eq.s32.totalorder %v1712, %v1694
      %vm1781 = vcmp.eq.s32.totalorder %v1713, %v1694
      %vm1782 = vcmp.eq.s32.totalorder %v1714, %v1694
      %vm1783 = vcmp.eq.s32.totalorder %v1711, %v1695
      %vm1784 = vcmp.eq.s32.totalorder %v1712, %v1695
      %vm1785 = vcmp.eq.s32.totalorder %v1713, %v1695
      %vm1786 = vcmp.eq.s32.totalorder %v1714, %v1695
      %vm1787 = vcmp.eq.s32.totalorder %v1711, %v1696
      %vm1788 = vcmp.eq.s32.totalorder %v1712, %v1696
      %vm1789 = vcmp.eq.s32.totalorder %v1713, %v1696
      %vm1790 = vcmp.eq.s32.totalorder %v1714, %v1696
      %vm1791 = vcmp.eq.s32.totalorder %v1711, %v1697
      %vm1792 = vcmp.eq.s32.totalorder %v1712, %v1697
      %vm1793 = vcmp.eq.s32.totalorder %v1713, %v1697
      %vm1794 = vcmp.eq.s32.totalorder %v1714, %v1697
      %vm1795 = vcmp.eq.s32.totalorder %v1711, %v1698
      %vm1796 = vcmp.eq.s32.totalorder %v1712, %v1698
      %vm1797 = vcmp.eq.s32.totalorder %v1713, %v1698
      %vm1798 = vcmp.eq.s32.totalorder %v1714, %v1698
      %vm1799 = vcmp.eq.s32.totalorder %v1711, %v1699
      %vm1800 = vcmp.eq.s32.totalorder %v1712, %v1699
      %vm1801 = vcmp.eq.s32.totalorder %v1713, %v1699
      %vm1802 = vcmp.eq.s32.totalorder %v1714, %v1699
      %vm1803 = vcmp.eq.s32.totalorder %v1711, %v1700
      %vm1804 = vcmp.eq.s32.totalorder %v1712, %v1700
      %vm1805 = vcmp.eq.s32.totalorder %v1713, %v1700
      %vm1806 = vcmp.eq.s32.totalorder %v1714, %v1700
      %vm1807 = vcmp.eq.s32.totalorder %v1711, %v1701
      %vm1808 = vcmp.eq.s32.totalorder %v1712, %v1701
      %vm1809 = vcmp.eq.s32.totalorder %v1713, %v1701
      %vm1810 = vcmp.eq.s32.totalorder %v1714, %v1701
      %vm1811 = vcmp.eq.s32.totalorder %v1711, %v1702
      %vm1812 = vcmp.eq.s32.totalorder %v1712, %v1702
      %vm1813 = vcmp.eq.s32.totalorder %v1713, %v1702
      %vm1814 = vcmp.eq.s32.totalorder %v1714, %v1702
      %vm1815 = vcmp.eq.s32.totalorder %v1711, %v1703
      %vm1816 = vcmp.eq.s32.totalorder %v1712, %v1703
      %vm1817 = vcmp.eq.s32.totalorder %v1713, %v1703
      %vm1818 = vcmp.eq.s32.totalorder %v1714, %v1703
      %vm1819 = vcmp.eq.s32.totalorder %v1711, %v1704
      %vm1820 = vcmp.eq.s32.totalorder %v1712, %v1704
      %vm1821 = vcmp.eq.s32.totalorder %v1713, %v1704
      %vm1822 = vcmp.eq.s32.totalorder %v1714, %v1704
      %vm1823 = vcmp.eq.s32.totalorder %v1711, %v1705
      %vm1824 = vcmp.eq.s32.totalorder %v1712, %v1705
      %vm1825 = vcmp.eq.s32.totalorder %v1713, %v1705
      %vm1826 = vcmp.eq.s32.totalorder %v1714, %v1705
      %vm1827 = vcmp.eq.s32.totalorder %v1711, %v1706
      %vm1828 = vcmp.eq.s32.totalorder %v1712, %v1706
      %vm1829 = vcmp.eq.s32.totalorder %v1713, %v1706
      %vm1830 = vcmp.eq.s32.totalorder %v1714, %v1706
      %vm1831 = vcmp.eq.s32.totalorder %v1711, %v1707
      %vm1832 = vcmp.eq.s32.totalorder %v1712, %v1707
      %vm1833 = vcmp.eq.s32.totalorder %v1713, %v1707
      %vm1834 = vcmp.eq.s32.totalorder %v1714, %v1707
      %vm1835 = vcmp.eq.s32.totalorder %v1711, %v1708
      %vm1836 = vcmp.eq.s32.totalorder %v1712, %v1708
      %vm1837 = vcmp.eq.s32.totalorder %v1713, %v1708
      %vm1838 = vcmp.eq.s32.totalorder %v1714, %v1708
      %vm1839 = vcmp.eq.s32.totalorder %v1711, %v1709
      %vm1840 = vcmp.eq.s32.totalorder %v1712, %v1709
      %vm1841 = vcmp.eq.s32.totalorder %v1713, %v1709
      %vm1842 = vcmp.eq.s32.totalorder %v1714, %v1709
      %v1843 = vsel %vm1715, 1, 0
      %v1844 = vsel %vm1716, 1, 0
      %v1845 = vsel %vm1717, 1, 0
      %v1846 = vsel %vm1718, 1, 0
      %v1847 = vsel %vm1719, 1, 0
      %v1848 = vsel %vm1720, 1, 0
      %v1849 = vsel %vm1721, 1, 0
      %v1850 = vsel %vm1722, 1, 0
      %v1851 = vsel %vm1723, 1, 0
      %v1852 = vsel %vm1724, 1, 0
      %v1853 = vsel %vm1725, 1, 0
      %v1854 = vsel %vm1726, 1, 0
      %v1855 = vsel %vm1727, 1, 0
      %v1856 = vsel %vm1728, 1, 0
      %v1857 = vsel %vm1729, 1, 0
      %v1858 = vsel %vm1730, 1, 0
      %v1859 = vsel %vm1731, 1, 0
      %v1860 = vsel %vm1732, 1, 0
      %v1861 = vsel %vm1733, 1, 0
      %v1862 = vsel %vm1734, 1, 0
      %v1863 = vsel %vm1735, 1, 0
      %v1864 = vsel %vm1736, 1, 0
      %v1865 = vsel %vm1737, 1, 0
      %v1866 = vsel %vm1738, 1, 0
      %v1867 = vsel %vm1739, 1, 0
      %v1868 = vsel %vm1740, 1, 0
      %v1869 = vsel %vm1741, 1, 0
      %v1870 = vsel %vm1742, 1, 0
      %v1871 = vsel %vm1743, 1, 0
      %v1872 = vsel %vm1744, 1, 0
      %v1873 = vsel %vm1745, 1, 0
      %v1874 = vsel %vm1746, 1, 0
      %v1875 = vsel %vm1747, 1, 0
      %v1876 = vsel %vm1748, 1, 0
      %v1877 = vsel %vm1749, 1, 0
      %v1878 = vsel %vm1750, 1, 0
      %v1879 = vsel %vm1751, 1, 0
      %v1880 = vsel %vm1752, 1, 0
      %v1881 = vsel %vm1753, 1, 0
      %v1882 = vsel %vm1754, 1, 0
      %v1883 = vsel %vm1755, 1, 0
      %v1884 = vsel %vm1756, 1, 0
      %v1885 = vsel %vm1757, 1, 0
      %v1886 = vsel %vm1758, 1, 0
      %v1887 = vsel %vm1759, 1, 0
      %v1888 = vsel %vm1760, 1, 0
      %v1889 = vsel %vm1761, 1, 0
      %v1890 = vsel %vm1762, 1, 0
      %v1891 = vsel %vm1763, 1, 0
      %v1892 = vsel %vm1764, 1, 0
      %v1893 = vsel %vm1765, 1, 0
      %v1894 = vsel %vm1766, 1, 0
      %v1895 = vsel %vm1767, 1, 0
      %v1896 = vsel %vm1768, 1, 0
      %v1897 = vsel %vm1769, 1, 0
      %v1898 = vsel %vm1770, 1, 0
      %v1899 = vsel %vm1771, 1, 0
      %v1900 = vsel %vm1772, 1, 0
      %v1901 = vsel %vm1773, 1, 0
      %v1902 = vsel %vm1774, 1, 0
      %v1903 = vsel %vm1775, 1, 0
      %v1904 = vsel %vm1776, 1, 0
      %v1905 = vsel %vm1777, 1, 0
      %v1906 = vsel %vm1778, 1, 0
      %v1907 = vsel %vm1779, 1, 0
      %v1908 = vsel %vm1780, 1, 0
      %v1909 = vsel %vm1781, 1, 0
      %v1910 = vsel %vm1782, 1, 0
      %v1911 = vsel %vm1783, 1, 0
      %v1912 = vsel %vm1784, 1, 0
      %v1913 = vsel %vm1785, 1, 0
      %v1914 = vsel %vm1786, 1, 0
      %v1915 = vsel %vm1787, 1, 0
      %v1916 = vsel %vm1788, 1, 0
      %v1917 = vsel %vm1789, 1, 0
      %v1918 = vsel %vm1790, 1, 0
      %v1919 = vsel %vm1791, 1, 0
      %v1920 = vsel %vm1792, 1, 0
      %v1921 = vsel %vm1793, 1, 0
      %v1922 = vsel %vm1794, 1, 0
      %v1923 = vsel %vm1795, 1, 0
      %v1924 = vsel %vm1796, 1, 0
      %v1925 = vsel %vm1797, 1, 0
      %v1926 = vsel %vm1798, 1, 0
      %v1927 = vsel %vm1799, 1, 0
      %v1928 = vsel %vm1800, 1, 0
      %v1929 = vsel %vm1801, 1, 0
      %v1930 = vsel %vm1802, 1, 0
      %v1931 = vsel %vm1803, 1, 0
      %v1932 = vsel %vm1804, 1, 0
      %v1933 = vsel %vm1805, 1, 0
      %v1934 = vsel %vm1806, 1, 0
      %v1935 = vsel %vm1807, 1, 0
      %v1936 = vsel %vm1808, 1, 0
      %v1937 = vsel %vm1809, 1, 0
      %v1938 = vsel %vm1810, 1, 0
      %v1939 = vsel %vm1811, 1, 0
      %v1940 = vsel %vm1812, 1, 0
      %v1941 = vsel %vm1813, 1, 0
      %v1942 = vsel %vm1814, 1, 0
      %v1943 = vsel %vm1815, 1, 0
      %v1944 = vsel %vm1816, 1, 0
      %v1945 = vsel %vm1817, 1, 0
      %v1946 = vsel %vm1818, 1, 0
      %v1947 = vsel %vm1819, 1, 0
      %v1948 = vsel %vm1820, 1, 0
      %v1949 = vsel %vm1821, 1, 0
      %v1950 = vsel %vm1822, 1, 0
      %v1951 = vsel %vm1823, 1, 0
      %v1952 = vsel %vm1824, 1, 0
      %v1953 = vsel %vm1825, 1, 0
      %v1954 = vsel %vm1826, 1, 0
      %v1955 = vsel %vm1827, 1, 0
      %v1956 = vsel %vm1828, 1, 0
      %v1957 = vsel %vm1829, 1, 0
      %v1958 = vsel %vm1830, 1, 0
      %v1959 = vsel %vm1831, 1, 0
      %v1960 = vsel %vm1832, 1, 0
      %v1961 = vsel %vm1833, 1, 0
      %v1962 = vsel %vm1834, 1, 0
      %v1963 = vsel %vm1835, 1, 0
      %v1964 = vsel %vm1836, 1, 0
      %v1965 = vsel %vm1837, 1, 0
      %v1966 = vsel %vm1838, 1, 0
      %v1967 = vsel %vm1839, 1, 0
      %v1968 = vsel %vm1840, 1, 0
      %v1969 = vsel %vm1841, 1, 0
      %v1970 = vsel %vm1842, 1, 0
      %v1971 = vcvt.s32.f32 %v1843
      %v1972 = vcvt.s32.f32 %v1844
      %v1973 = vcvt.s32.f32 %v1845
      %v1974 = vcvt.s32.f32 %v1846
      %v1975 = vcvt.s32.f32 %v1847
      %v1976 = vcvt.s32.f32 %v1848
      %v1977 = vcvt.s32.f32 %v1849
      %v1978 = vcvt.s32.f32 %v1850
      %v1979 = vcvt.s32.f32 %v1851
      %v1980 = vcvt.s32.f32 %v1852
      %v1981 = vcvt.s32.f32 %v1853
      %v1982 = vcvt.s32.f32 %v1854
      %v1983 = vcvt.s32.f32 %v1855
      %v1984 = vcvt.s32.f32 %v1856
      %v1985 = vcvt.s32.f32 %v1857
      %v1986 = vcvt.s32.f32 %v1858
      %v1987 = vcvt.s32.f32 %v1859
      %v1988 = vcvt.s32.f32 %v1860
      %v1989 = vcvt.s32.f32 %v1861
      %v1990 = vcvt.s32.f32 %v1862
      %v1991 = vcvt.s32.f32 %v1863
      %v1992 = vcvt.s32.f32 %v1864
      %v1993 = vcvt.s32.f32 %v1865
      %v1994 = vcvt.s32.f32 %v1866
      %v1995 = vcvt.s32.f32 %v1867
      %v1996 = vcvt.s32.f32 %v1868
      %v1997 = vcvt.s32.f32 %v1869
      %v1998 = vcvt.s32.f32 %v1870
      %v1999 = vcvt.s32.f32 %v1871
      %v2000 = vcvt.s32.f32 %v1872
      %v2001 = vcvt.s32.f32 %v1873
      %v2002 = vcvt.s32.f32 %v1874
      %v2003 = vcvt.s32.f32 %v1875
      %v2004 = vcvt.s32.f32 %v1876
      %v2005 = vcvt.s32.f32 %v1877
      %v2006 = vcvt.s32.f32 %v1878
      %v2007 = vcvt.s32.f32 %v1879
      %v2008 = vcvt.s32.f32 %v1880
      %v2009 = vcvt.s32.f32 %v1881
      %v2010 = vcvt.s32.f32 %v1882
      %v2011 = vcvt.s32.f32 %v1883
      %v2012 = vcvt.s32.f32 %v1884
      %v2013 = vcvt.s32.f32 %v1885
      %v2014 = vcvt.s32.f32 %v1886
      %v2015 = vcvt.s32.f32 %v1887
      %v2016 = vcvt.s32.f32 %v1888
      %v2017 = vcvt.s32.f32 %v1889
      %v2018 = vcvt.s32.f32 %v1890
      %v2019 = vcvt.s32.f32 %v1891
      %v2020 = vcvt.s32.f32 %v1892
      %v2021 = vcvt.s32.f32 %v1893
      %v2022 = vcvt.s32.f32 %v1894
      %v2023 = vcvt.s32.f32 %v1895
      %v2024 = vcvt.s32.f32 %v1896
      %v2025 = vcvt.s32.f32 %v1897
      %v2026 = vcvt.s32.f32 %v1898
      %v2027 = vcvt.s32.f32 %v1899
      %v2028 = vcvt.s32.f32 %v1900
      %v2029 = vcvt.s32.f32 %v1901
      %v2030 = vcvt.s32.f32 %v1902
      %v2031 = vcvt.s32.f32 %v1903
      %v2032 = vcvt.s32.f32 %v1904
      %v2033 = vcvt.s32.f32 %v1905
      %v2034 = vcvt.s32.f32 %v1906
      %v2035 = vcvt.s32.f32 %v1907
      %v2036 = vcvt.s32.f32 %v1908
      %v2037 = vcvt.s32.f32 %v1909
      %v2038 = vcvt.s32.f32 %v1910
      %v2039 = vcvt.s32.f32 %v1911
      %v2040 = vcvt.s32.f32 %v1912
      %v2041 = vcvt.s32.f32 %v1913
      %v2042 = vcvt.s32.f32 %v1914
      %v2043 = vcvt.s32.f32 %v1915
      %v2044 = vcvt.s32.f32 %v1916
      %v2045 = vcvt.s32.f32 %v1917
      %v2046 = vcvt.s32.f32 %v1918
      %v2047 = vcvt.s32.f32 %v1919
      %v2048 = vcvt.s32.f32 %v1920
      %v2049 = vcvt.s32.f32 %v1921
      %v2050 = vcvt.s32.f32 %v1922
      %v2051 = vcvt.s32.f32 %v1923
      %v2052 = vcvt.s32.f32 %v1924
      %v2053 = vcvt.s32.f32 %v1925
      %v2054 = vcvt.s32.f32 %v1926
      %v2055 = vcvt.s32.f32 %v1927
      %v2056 = vcvt.s32.f32 %v1928
      %v2057 = vcvt.s32.f32 %v1929
      %v2058 = vcvt.s32.f32 %v1930
      %v2059 = vcvt.s32.f32 %v1931
      %v2060 = vcvt.s32.f32 %v1932
      %v2061 = vcvt.s32.f32 %v1933
      %v2062 = vcvt.s32.f32 %v1934
      %v2063 = vcvt.s32.f32 %v1935
      %v2064 = vcvt.s32.f32 %v1936
      %v2065 = vcvt.s32.f32 %v1937
      %v2066 = vcvt.s32.f32 %v1938
      %v2067 = vcvt.s32.f32 %v1939
      %v2068 = vcvt.s32.f32 %v1940
      %v2069 = vcvt.s32.f32 %v1941
      %v2070 = vcvt.s32.f32 %v1942
      %v2071 = vcvt.s32.f32 %v1943
      %v2072 = vcvt.s32.f32 %v1944
      %v2073 = vcvt.s32.f32 %v1945
      %v2074 = vcvt.s32.f32 %v1946
      %v2075 = vcvt.s32.f32 %v1947
      %v2076 = vcvt.s32.f32 %v1948
      %v2077 = vcvt.s32.f32 %v1949
      %v2078 = vcvt.s32.f32 %v1950
      %v2079 = vcvt.s32.f32 %v1951
      %v2080 = vcvt.s32.f32 %v1952
      %v2081 = vcvt.s32.f32 %v1953
      %v2082 = vcvt.s32.f32 %v1954
      %v2083 = vcvt.s32.f32 %v1955
      %v2084 = vcvt.s32.f32 %v1956
      %v2085 = vcvt.s32.f32 %v1957
      %v2086 = vcvt.s32.f32 %v1958
      %v2087 = vcvt.s32.f32 %v1959
      %v2088 = vcvt.s32.f32 %v1960
      %v2089 = vcvt.s32.f32 %v1961
      %v2090 = vcvt.s32.f32 %v1962
      %v2091 = vcvt.s32.f32 %v1963
      %v2092 = vcvt.s32.f32 %v1964
      %v2093 = vcvt.s32.f32 %v1965
      %v2094 = vcvt.s32.f32 %v1966
      %v2095 = vcvt.s32.f32 %v1967
      %v2096 = vcvt.s32.f32 %v1968
      %v2097 = vcvt.s32.f32 %v1969
      %v2098 = vcvt.s32.f32 %v1970
      %v2099 = vpack.c.bf16 %v1975, %v1971
      %v2100 = vpack.c.bf16 %v1976, %v1972
      %v2101 = vpack.c.bf16 %v1977, %v1973
      %v2102 = vpack.c.bf16 %v1978, %v1974
      %v2103 = vpack.c.bf16 %v1983, %v1979
      %v2104 = vpack.c.bf16 %v1984, %v1980
      %v2105 = vpack.c.bf16 %v1985, %v1981
      %v2106 = vpack.c.bf16 %v1986, %v1982
      %v2107 = vpack.c.bf16 %v1991, %v1987
      %v2108 = vpack.c.bf16 %v1992, %v1988
      %v2109 = vpack.c.bf16 %v1993, %v1989
      %v2110 = vpack.c.bf16 %v1994, %v1990
      %v2111 = vpack.c.bf16 %v1999, %v1995
      %v2112 = vpack.c.bf16 %v2000, %v1996
      %v2113 = vpack.c.bf16 %v2001, %v1997
      %v2114 = vpack.c.bf16 %v2002, %v1998
      %v2115 = vpack.c.bf16 %v2007, %v2003
      %v2116 = vpack.c.bf16 %v2008, %v2004
      %v2117 = vpack.c.bf16 %v2009, %v2005
      %v2118 = vpack.c.bf16 %v2010, %v2006
      %v2119 = vpack.c.bf16 %v2015, %v2011
      %v2120 = vpack.c.bf16 %v2016, %v2012
      %v2121 = vpack.c.bf16 %v2017, %v2013
      %v2122 = vpack.c.bf16 %v2018, %v2014
      %v2123 = vpack.c.bf16 %v2023, %v2019
      %v2124 = vpack.c.bf16 %v2024, %v2020
      %v2125 = vpack.c.bf16 %v2025, %v2021
      %v2126 = vpack.c.bf16 %v2026, %v2022
      %v2127 = vpack.c.bf16 %v2031, %v2027
      %v2128 = vpack.c.bf16 %v2032, %v2028
      %v2129 = vpack.c.bf16 %v2033, %v2029
      %v2130 = vpack.c.bf16 %v2034, %v2030
      %v2131 = vpack.c.bf16 %v2039, %v2035
      %v2132 = vpack.c.bf16 %v2040, %v2036
      %v2133 = vpack.c.bf16 %v2041, %v2037
      %v2134 = vpack.c.bf16 %v2042, %v2038
      %v2135 = vpack.c.bf16 %v2047, %v2043
      %v2136 = vpack.c.bf16 %v2048, %v2044
      %v2137 = vpack.c.bf16 %v2049, %v2045
      %v2138 = vpack.c.bf16 %v2050, %v2046
      %v2139 = vpack.c.bf16 %v2055, %v2051
      %v2140 = vpack.c.bf16 %v2056, %v2052
      %v2141 = vpack.c.bf16 %v2057, %v2053
      %v2142 = vpack.c.bf16 %v2058, %v2054
      %v2143 = vpack.c.bf16 %v2063, %v2059
      %v2144 = vpack.c.bf16 %v2064, %v2060
      %v2145 = vpack.c.bf16 %v2065, %v2061
      %v2146 = vpack.c.bf16 %v2066, %v2062
      %v2147 = vpack.c.bf16 %v2071, %v2067
      %v2148 = vpack.c.bf16 %v2072, %v2068
      %v2149 = vpack.c.bf16 %v2073, %v2069
      %v2150 = vpack.c.bf16 %v2074, %v2070
      %v2151 = vpack.c.bf16 %v2079, %v2075
      %v2152 = vpack.c.bf16 %v2080, %v2076
      %v2153 = vpack.c.bf16 %v2081, %v2077
      %v2154 = vpack.c.bf16 %v2082, %v2078
      %v2155 = vpack.c.bf16 %v2087, %v2083
      %v2156 = vpack.c.bf16 %v2088, %v2084
      %v2157 = vpack.c.bf16 %v2089, %v2085
      %v2158 = vpack.c.bf16 %v2090, %v2086
      %v2159 = vpack.c.bf16 %v2095, %v2091
      %v2160 = vpack.c.bf16 %v2096, %v2092
      %v2161 = vpack.c.bf16 %v2097, %v2093
      %v2162 = vpack.c.bf16 %v2098, %v2094
      %v2163 = vld [vmem:[%s7] sm:$0xff]
      %v2164 = vld [vmem:[%s7 + $0x8] sm:$0xff]
      %v2165 = vld [vmem:[%s7 + $0x10] sm:$0xff]
      %v2166 = vld [vmem:[%s7 + $0x18] sm:$0xff]
      %v2167 = vld [vmem:[%s7 + $0x20] sm:$0xff]
      %v2168 = vld [vmem:[%s7 + $0x28] sm:$0xff]
      %v2169 = vld [vmem:[%s7 + $0x30] sm:$0xff]
      %v2170 = vld [vmem:[%s7 + $0x38] sm:$0xff]
      %v2171 = vld [vmem:[%s7 + $0x40] sm:$0xff]
      %v2172 = vld [vmem:[%s7 + $0x48] sm:$0xff]
      %v2173 = vld [vmem:[%s7 + $0x50] sm:$0xff]
      %v2174 = vld [vmem:[%s7 + $0x58] sm:$0xff]
      %v2175 = vld [vmem:[%s7 + $0x60] sm:$0xff]
      %v2176 = vld [vmem:[%s7 + $0x68] sm:$0xff]
      %v2177 = vld [vmem:[%s7 + $0x70] sm:$0xff]
      %v2178 = vld [vmem:[%s7 + $0x78] sm:$0xff]
      %v2179 = vld [vmem:[%s7 + $0x80] sm:$0xff]
      %v2180 = vld [vmem:[%s7 + $0x88] sm:$0xff]
      %v2181 = vld [vmem:[%s7 + $0x90] sm:$0xff]
      %v2182 = vld [vmem:[%s7 + $0x98] sm:$0xff]
      %v2183 = vld [vmem:[%s7 + $0xa0] sm:$0xff]
      %v2184 = vld [vmem:[%s7 + $0xa8] sm:$0xff]
      %v2185 = vld [vmem:[%s7 + $0xb0] sm:$0xff]
      %v2186 = vld [vmem:[%s7 + $0xb8] sm:$0xff]
      %v2187 = vld [vmem:[%s7 + $0xc0] sm:$0xff]
      %v2188 = vld [vmem:[%s7 + $0xc8] sm:$0xff]
      %v2189 = vld [vmem:[%s7 + $0xd0] sm:$0xff]
      %v2190 = vld [vmem:[%s7 + $0xd8] sm:$0xff]
      %v2191 = vld [vmem:[%s7 + $0xe0] sm:$0xff]
      %v2192 = vld [vmem:[%s7 + $0xe8] sm:$0xff]
      %v2193 = vld [vmem:[%s7 + $0xf0] sm:$0xff]
      %v2194 = vld [vmem:[%s7 + $0xf8] sm:$0xff]
      %v2195 = vpack.c.bf16 %v1614, %v1613
      %v2196 = vpack.c.bf16 %v1616, %v1615
      %v2197 = vpack.c.bf16 %v1618, %v1617
      %v2198 = vpack.c.bf16 %v1620, %v1619
      %v2199 = vpack.c.bf16 %v1622, %v1621
      %v2200 = vpack.c.bf16 %v1624, %v1623
      %v2201 = vpack.c.bf16 %v1626, %v1625
      %v2202 = vpack.c.bf16 %v1628, %v1627
      %v2203 = vpack.c.bf16 %v1630, %v1629
      %v2204 = vpack.c.bf16 %v1632, %v1631
      %v2205 = vpack.c.bf16 %v1634, %v1633
      %v2206 = vpack.c.bf16 %v1636, %v1635
      %v2207 = vpack.c.bf16 %v1638, %v1637
      %v2208 = vpack.c.bf16 %v1640, %v1639
      %v2209 = vpack.c.bf16 %v1642, %v1641
      %v2210 = vpack.c.bf16 %v1644, %v1643
      %v2211 = vpack.c.bf16 %v1646, %v1645
      %v2212 = vpack.c.bf16 %v1648, %v1647
      %v2213 = vpack.c.bf16 %v1650, %v1649
      %v2214 = vpack.c.bf16 %v1652, %v1651
      %v2215 = vpack.c.bf16 %v1654, %v1653
      %v2216 = vpack.c.bf16 %v1656, %v1655
      %v2217 = vpack.c.bf16 %v1658, %v1657
      %v2218 = vpack.c.bf16 %v1660, %v1659
      %v2219 = vpack.c.bf16 %v1662, %v1661
      %v2220 = vpack.c.bf16 %v1664, %v1663
      %v2221 = vpack.c.bf16 %v1666, %v1665
      %v2222 = vpack.c.bf16 %v1668, %v1667
      %v2223 = vpack.c.bf16 %v1670, %v1669
      %v2224 = vpack.c.bf16 %v1672, %v1671
      %v2225 = vpack.c.bf16 %v1674, %v1673
      %v2226 = vpack.c.bf16 %v1676, %v1675
      %2227 = vmatpush.bf16.msra.mxu0 %v2202
      %2228 = vmatpush.bf16.msra.mxu0 %v2201
      %2229 = vmatpush.bf16.msra.mxu0 %v2200
      %2230 = vmatpush.bf16.msra.mxu0 %v2199
      %2231 = vmatpush.bf16.msra.mxu0 %v2198
      %2232 = vmatpush.bf16.msra.mxu0 %v2197
      %2233 = vmatpush.bf16.msra.mxu0 %v2196
      %2234 = vmatpush.bf16.msra.mxu0 %v2195
      %2235 = vmatmul.bf16.gmra.mxu0 %v2099
      %v2236 = vpop.f32.mrf.mxu0
      %v2237 = vadd.f32 0.0, %v2236
      %v2238 = vpop.f32.mrf.mxu0
      %v2239 = vadd.f32 0.0, %v2238
      %2240 = vmatmul.bf16.gmra.mxu0 %v2103
      %v2241 = vpop.f32.mrf.mxu0
      %v2242 = vadd.f32 0.0, %v2241
      %v2243 = vpop.f32.mrf.mxu0
      %v2244 = vadd.f32 0.0, %v2243
      %2245 = vmatmul.bf16.gmra.mxu0 %v2107
      %v2246 = vpop.f32.mrf.mxu0
      %v2247 = vadd.f32 0.0, %v2246
      %v2248 = vpop.f32.mrf.mxu0
      %v2249 = vadd.f32 0.0, %v2248
      %2250 = vmatmul.bf16.gmra.mxu0 %v2111
      %v2251 = vpop.f32.mrf.mxu0
      %v2252 = vadd.f32 0.0, %v2251
      %v2253 = vpop.f32.mrf.mxu0
      %v2254 = vadd.f32 0.0, %v2253
      %2255 = vmatmul.bf16.gmra.mxu0 %v2115
      %v2256 = vpop.f32.mrf.mxu0
      %v2257 = vadd.f32 0.0, %v2256
      %v2258 = vpop.f32.mrf.mxu0
      %v2259 = vadd.f32 0.0, %v2258
      %2260 = vmatmul.bf16.gmra.mxu0 %v2119
      %v2261 = vpop.f32.mrf.mxu0
      %v2262 = vadd.f32 0.0, %v2261
      %v2263 = vpop.f32.mrf.mxu0
      %v2264 = vadd.f32 0.0, %v2263
      %2265 = vmatmul.bf16.gmra.mxu0 %v2123
      %v2266 = vpop.f32.mrf.mxu0
      %v2267 = vadd.f32 0.0, %v2266
      %v2268 = vpop.f32.mrf.mxu0
      %v2269 = vadd.f32 0.0, %v2268
      %2270 = vmatmul.bf16.gmra.mxu0 %v2127
      %v2271 = vpop.f32.mrf.mxu0
      %v2272 = vadd.f32 0.0, %v2271
      %v2273 = vpop.f32.mrf.mxu0
      %v2274 = vadd.f32 0.0, %v2273
      %2275 = vmatmul.bf16.gmra.mxu0 %v2131
      %v2276 = vpop.f32.mrf.mxu0
      %v2277 = vadd.f32 0.0, %v2276
      %v2278 = vpop.f32.mrf.mxu0
      %v2279 = vadd.f32 0.0, %v2278
      %2280 = vmatmul.bf16.gmra.mxu0 %v2135
      %v2281 = vpop.f32.mrf.mxu0
      %v2282 = vadd.f32 0.0, %v2281
      %v2283 = vpop.f32.mrf.mxu0
      %v2284 = vadd.f32 0.0, %v2283
      %2285 = vmatmul.bf16.gmra.mxu0 %v2139
      %v2286 = vpop.f32.mrf.mxu0
      %v2287 = vadd.f32 0.0, %v2286
      %v2288 = vpop.f32.mrf.mxu0
      %v2289 = vadd.f32 0.0, %v2288
      %2290 = vmatmul.bf16.gmra.mxu0 %v2143
      %v2291 = vpop.f32.mrf.mxu0
      %v2292 = vadd.f32 0.0, %v2291
      %v2293 = vpop.f32.mrf.mxu0
      %v2294 = vadd.f32 0.0, %v2293
      %2295 = vmatmul.bf16.gmra.mxu0 %v2147
      %v2296 = vpop.f32.mrf.mxu0
      %v2297 = vadd.f32 0.0, %v2296
      %v2298 = vpop.f32.mrf.mxu0
      %v2299 = vadd.f32 0.0, %v2298
      %2300 = vmatmul.bf16.gmra.mxu0 %v2151
      %v2301 = vpop.f32.mrf.mxu0
      %v2302 = vadd.f32 0.0, %v2301
      %v2303 = vpop.f32.mrf.mxu0
      %v2304 = vadd.f32 0.0, %v2303
      %2305 = vmatmul.bf16.gmra.mxu0 %v2155
      %v2306 = vpop.f32.mrf.mxu0
      %v2307 = vadd.f32 0.0, %v2306
      %v2308 = vpop.f32.mrf.mxu0
      %v2309 = vadd.f32 0.0, %v2308
      %2310 = vmatmul.bf16.gmra.mxu0 %v2159
      %v2311 = vpop.f32.mrf.mxu0
      %v2312 = vadd.f32 0.0, %v2311
      %v2313 = vpop.f32.mrf.mxu0
      %v2314 = vadd.f32 0.0, %v2313
      %2315 = vdwg.mxu0
      %2316 = vmatpush.bf16.msra.mxu0 %v2210
      %2317 = vmatpush.bf16.msra.mxu0 %v2209
      %2318 = vmatpush.bf16.msra.mxu0 %v2208
      %2319 = vmatpush.bf16.msra.mxu0 %v2207
      %2320 = vmatpush.bf16.msra.mxu0 %v2206
      %2321 = vmatpush.bf16.msra.mxu0 %v2205
      %2322 = vmatpush.bf16.msra.mxu0 %v2204
      %2323 = vmatpush.bf16.msra.mxu0 %v2203
      %2324 = vmatmul.bf16.gmra.mxu0 %v2100
      %v2325 = vpop.f32.mrf.mxu0
      %v2326 = vadd.f32 %v2237, %v2325
      %v2327 = vpop.f32.mrf.mxu0
      %v2328 = vadd.f32 %v2239, %v2327
      %2329 = vmatmul.bf16.gmra.mxu0 %v2104
      %v2330 = vpop.f32.mrf.mxu0
      %v2331 = vadd.f32 %v2242, %v2330
      %v2332 = vpop.f32.mrf.mxu0
      %v2333 = vadd.f32 %v2244, %v2332
      %2334 = vmatmul.bf16.gmra.mxu0 %v2108
      %v2335 = vpop.f32.mrf.mxu0
      %v2336 = vadd.f32 %v2247, %v2335
      %v2337 = vpop.f32.mrf.mxu0
      %v2338 = vadd.f32 %v2249, %v2337
      %2339 = vmatmul.bf16.gmra.mxu0 %v2112
      %v2340 = vpop.f32.mrf.mxu0
      %v2341 = vadd.f32 %v2252, %v2340
      %v2342 = vpop.f32.mrf.mxu0
      %v2343 = vadd.f32 %v2254, %v2342
      %2344 = vmatmul.bf16.gmra.mxu0 %v2116
      %v2345 = vpop.f32.mrf.mxu0
      %v2346 = vadd.f32 %v2257, %v2345
      %v2347 = vpop.f32.mrf.mxu0
      %v2348 = vadd.f32 %v2259, %v2347
      %2349 = vmatmul.bf16.gmra.mxu0 %v2120
      %v2350 = vpop.f32.mrf.mxu0
      %v2351 = vadd.f32 %v2262, %v2350
      %v2352 = vpop.f32.mrf.mxu0
      %v2353 = vadd.f32 %v2264, %v2352
      %2354 = vmatmul.bf16.gmra.mxu0 %v2124
      %v2355 = vpop.f32.mrf.mxu0
      %v2356 = vadd.f32 %v2267, %v2355
      %v2357 = vpop.f32.mrf.mxu0
      %v2358 = vadd.f32 %v2269, %v2357
      %2359 = vmatmul.bf16.gmra.mxu0 %v2128
      %v2360 = vpop.f32.mrf.mxu0
      %v2361 = vadd.f32 %v2272, %v2360
      %v2362 = vpop.f32.mrf.mxu0
      %v2363 = vadd.f32 %v2274, %v2362
      %2364 = vmatmul.bf16.gmra.mxu0 %v2132
      %v2365 = vpop.f32.mrf.mxu0
      %v2366 = vadd.f32 %v2277, %v2365
      %v2367 = vpop.f32.mrf.mxu0
      %v2368 = vadd.f32 %v2279, %v2367
      %2369 = vmatmul.bf16.gmra.mxu0 %v2136
      %v2370 = vpop.f32.mrf.mxu0
      %v2371 = vadd.f32 %v2282, %v2370
      %v2372 = vpop.f32.mrf.mxu0
      %v2373 = vadd.f32 %v2284, %v2372
      %2374 = vmatmul.bf16.gmra.mxu0 %v2140
      %v2375 = vpop.f32.mrf.mxu0
      %v2376 = vadd.f32 %v2287, %v2375
      %v2377 = vpop.f32.mrf.mxu0
      %v2378 = vadd.f32 %v2289, %v2377
      %2379 = vmatmul.bf16.gmra.mxu0 %v2144
      %v2380 = vpop.f32.mrf.mxu0
      %v2381 = vadd.f32 %v2292, %v2380
      %v2382 = vpop.f32.mrf.mxu0
      %v2383 = vadd.f32 %v2294, %v2382
      %2384 = vmatmul.bf16.gmra.mxu0 %v2148
      %v2385 = vpop.f32.mrf.mxu0
      %v2386 = vadd.f32 %v2297, %v2385
      %v2387 = vpop.f32.mrf.mxu0
      %v2388 = vadd.f32 %v2299, %v2387
      %2389 = vmatmul.bf16.gmra.mxu0 %v2152
      %v2390 = vpop.f32.mrf.mxu0
      %v2391 = vadd.f32 %v2302, %v2390
      %v2392 = vpop.f32.mrf.mxu0
      %v2393 = vadd.f32 %v2304, %v2392
      %2394 = vmatmul.bf16.gmra.mxu0 %v2156
      %v2395 = vpop.f32.mrf.mxu0
      %v2396 = vadd.f32 %v2307, %v2395
      %v2397 = vpop.f32.mrf.mxu0
      %v2398 = vadd.f32 %v2309, %v2397
      %2399 = vmatmul.bf16.gmra.mxu0 %v2160
      %v2400 = vpop.f32.mrf.mxu0
      %v2401 = vadd.f32 %v2312, %v2400
      %v2402 = vpop.f32.mrf.mxu0
      %v2403 = vadd.f32 %v2314, %v2402
      %2404 = vdwg.mxu0
      %2405 = vmatpush.bf16.msra.mxu0 %v2218
      %2406 = vmatpush.bf16.msra.mxu0 %v2217
      %2407 = vmatpush.bf16.msra.mxu0 %v2216
      %2408 = vmatpush.bf16.msra.mxu0 %v2215
      %2409 = vmatpush.bf16.msra.mxu0 %v2214
      %2410 = vmatpush.bf16.msra.mxu0 %v2213
      %2411 = vmatpush.bf16.msra.mxu0 %v2212
      %2412 = vmatpush.bf16.msra.mxu0 %v2211
      %2413 = vmatmul.bf16.gmra.mxu0 %v2101
      %v2414 = vpop.f32.mrf.mxu0
      %v2415 = vadd.f32 %v2326, %v2414
      %v2416 = vpop.f32.mrf.mxu0
      %v2417 = vadd.f32 %v2328, %v2416
      %2418 = vmatmul.bf16.gmra.mxu0 %v2105
      %v2419 = vpop.f32.mrf.mxu0
      %v2420 = vadd.f32 %v2331, %v2419
      %v2421 = vpop.f32.mrf.mxu0
      %v2422 = vadd.f32 %v2333, %v2421
      %2423 = vmatmul.bf16.gmra.mxu0 %v2109
      %v2424 = vpop.f32.mrf.mxu0
      %v2425 = vadd.f32 %v2336, %v2424
      %v2426 = vpop.f32.mrf.mxu0
      %v2427 = vadd.f32 %v2338, %v2426
      %2428 = vmatmul.bf16.gmra.mxu0 %v2113
      %v2429 = vpop.f32.mrf.mxu0
      %v2430 = vadd.f32 %v2341, %v2429
      %v2431 = vpop.f32.mrf.mxu0
      %v2432 = vadd.f32 %v2343, %v2431
      %2433 = vmatmul.bf16.gmra.mxu0 %v2117
      %v2434 = vpop.f32.mrf.mxu0
      %v2435 = vadd.f32 %v2346, %v2434
      %v2436 = vpop.f32.mrf.mxu0
      %v2437 = vadd.f32 %v2348, %v2436
      %2438 = vmatmul.bf16.gmra.mxu0 %v2121
      %v2439 = vpop.f32.mrf.mxu0
      %v2440 = vadd.f32 %v2351, %v2439
      %v2441 = vpop.f32.mrf.mxu0
      %v2442 = vadd.f32 %v2353, %v2441
      %2443 = vmatmul.bf16.gmra.mxu0 %v2125
      %v2444 = vpop.f32.mrf.mxu0
      %v2445 = vadd.f32 %v2356, %v2444
      %v2446 = vpop.f32.mrf.mxu0
      %v2447 = vadd.f32 %v2358, %v2446
      %2448 = vmatmul.bf16.gmra.mxu0 %v2129
      %v2449 = vpop.f32.mrf.mxu0
      %v2450 = vadd.f32 %v2361, %v2449
      %v2451 = vpop.f32.mrf.mxu0
      %v2452 = vadd.f32 %v2363, %v2451
      %2453 = vmatmul.bf16.gmra.mxu0 %v2133
      %v2454 = vpop.f32.mrf.mxu0
      %v2455 = vadd.f32 %v2366, %v2454
      %v2456 = vpop.f32.mrf.mxu0
      %v2457 = vadd.f32 %v2368, %v2456
      %2458 = vmatmul.bf16.gmra.mxu0 %v2137
      %v2459 = vpop.f32.mrf.mxu0
      %v2460 = vadd.f32 %v2371, %v2459
      %v2461 = vpop.f32.mrf.mxu0
      %v2462 = vadd.f32 %v2373, %v2461
      %2463 = vmatmul.bf16.gmra.mxu0 %v2141
      %v2464 = vpop.f32.mrf.mxu0
      %v2465 = vadd.f32 %v2376, %v2464
      %v2466 = vpop.f32.mrf.mxu0
      %v2467 = vadd.f32 %v2378, %v2466
      %2468 = vmatmul.bf16.gmra.mxu0 %v2145
      %v2469 = vpop.f32.mrf.mxu0
      %v2470 = vadd.f32 %v2381, %v2469
      %v2471 = vpop.f32.mrf.mxu0
      %v2472 = vadd.f32 %v2383, %v2471
      %2473 = vmatmul.bf16.gmra.mxu0 %v2149
      %v2474 = vpop.f32.mrf.mxu0
      %v2475 = vadd.f32 %v2386, %v2474
      %v2476 = vpop.f32.mrf.mxu0
      %v2477 = vadd.f32 %v2388, %v2476
      %2478 = vmatmul.bf16.gmra.mxu0 %v2153
      %v2479 = vpop.f32.mrf.mxu0
      %v2480 = vadd.f32 %v2391, %v2479
      %v2481 = vpop.f32.mrf.mxu0
      %v2482 = vadd.f32 %v2393, %v2481
      %2483 = vmatmul.bf16.gmra.mxu0 %v2157
      %v2484 = vpop.f32.mrf.mxu0
      %v2485 = vadd.f32 %v2396, %v2484
      %v2486 = vpop.f32.mrf.mxu0
      %v2487 = vadd.f32 %v2398, %v2486
      %2488 = vmatmul.bf16.gmra.mxu0 %v2161
      %v2489 = vpop.f32.mrf.mxu0
      %v2490 = vadd.f32 %v2401, %v2489
      %v2491 = vpop.f32.mrf.mxu0
      %v2492 = vadd.f32 %v2403, %v2491
      %2493 = vdwg.mxu0
      %2494 = vmatpush.bf16.msra.mxu0 %v2226
      %2495 = vmatpush.bf16.msra.mxu0 %v2225
      %2496 = vmatpush.bf16.msra.mxu0 %v2224
      %2497 = vmatpush.bf16.msra.mxu0 %v2223
      %2498 = vmatpush.bf16.msra.mxu0 %v2222
      %2499 = vmatpush.bf16.msra.mxu0 %v2221
      %2500 = vmatpush.bf16.msra.mxu0 %v2220
      %2501 = vmatpush.bf16.msra.mxu0 %v2219
      %2502 = vmatmul.bf16.gmra.mxu0 %v2102
      %v2503 = vpop.f32.mrf.mxu0
      %v2504 = vadd.f32 %v2415, %v2503
      %v2505 = vpop.f32.mrf.mxu0
      %v2506 = vadd.f32 %v2417, %v2505
      %2507 = vmatmul.bf16.gmra.mxu0 %v2106
      %v2508 = vpop.f32.mrf.mxu0
      %v2509 = vadd.f32 %v2420, %v2508
      %v2510 = vpop.f32.mrf.mxu0
      %v2511 = vadd.f32 %v2422, %v2510
      %2512 = vmatmul.bf16.gmra.mxu0 %v2110
      %v2513 = vpop.f32.mrf.mxu0
      %v2514 = vadd.f32 %v2425, %v2513
      %v2515 = vpop.f32.mrf.mxu0
      %v2516 = vadd.f32 %v2427, %v2515
      %2517 = vmatmul.bf16.gmra.mxu0 %v2114
      %v2518 = vpop.f32.mrf.mxu0
      %v2519 = vadd.f32 %v2430, %v2518
      %v2520 = vpop.f32.mrf.mxu0
      %v2521 = vadd.f32 %v2432, %v2520
      %2522 = vmatmul.bf16.gmra.mxu0 %v2118
      %v2523 = vpop.f32.mrf.mxu0
      %v2524 = vadd.f32 %v2435, %v2523
      %v2525 = vpop.f32.mrf.mxu0
      %v2526 = vadd.f32 %v2437, %v2525
      %2527 = vmatmul.bf16.gmra.mxu0 %v2122
      %v2528 = vpop.f32.mrf.mxu0
      %v2529 = vadd.f32 %v2440, %v2528
      %v2530 = vpop.f32.mrf.mxu0
      %v2531 = vadd.f32 %v2442, %v2530
      %2532 = vmatmul.bf16.gmra.mxu0 %v2126
      %v2533 = vpop.f32.mrf.mxu0
      %v2534 = vadd.f32 %v2445, %v2533
      %v2535 = vpop.f32.mrf.mxu0
      %v2536 = vadd.f32 %v2447, %v2535
      %2537 = vmatmul.bf16.gmra.mxu0 %v2130
      %v2538 = vpop.f32.mrf.mxu0
      %v2539 = vadd.f32 %v2450, %v2538
      %v2540 = vpop.f32.mrf.mxu0
      %v2541 = vadd.f32 %v2452, %v2540
      %2542 = vmatmul.bf16.gmra.mxu0 %v2134
      %v2543 = vpop.f32.mrf.mxu0
      %v2544 = vadd.f32 %v2455, %v2543
      %v2545 = vpop.f32.mrf.mxu0
      %v2546 = vadd.f32 %v2457, %v2545
      %2547 = vmatmul.bf16.gmra.mxu0 %v2138
      %v2548 = vpop.f32.mrf.mxu0
      %v2549 = vadd.f32 %v2460, %v2548
      %v2550 = vpop.f32.mrf.mxu0
      %v2551 = vadd.f32 %v2462, %v2550
      %2552 = vmatmul.bf16.gmra.mxu0 %v2142
      %v2553 = vpop.f32.mrf.mxu0
      %v2554 = vadd.f32 %v2465, %v2553
      %v2555 = vpop.f32.mrf.mxu0
      %v2556 = vadd.f32 %v2467, %v2555
      %2557 = vmatmul.bf16.gmra.mxu0 %v2146
      %v2558 = vpop.f32.mrf.mxu0
      %v2559 = vadd.f32 %v2470, %v2558
      %v2560 = vpop.f32.mrf.mxu0
      %v2561 = vadd.f32 %v2472, %v2560
      %2562 = vmatmul.bf16.gmra.mxu0 %v2150
      %v2563 = vpop.f32.mrf.mxu0
      %v2564 = vadd.f32 %v2475, %v2563
      %v2565 = vpop.f32.mrf.mxu0
      %v2566 = vadd.f32 %v2477, %v2565
      %2567 = vmatmul.bf16.gmra.mxu0 %v2154
      %v2568 = vpop.f32.mrf.mxu0
      %v2569 = vadd.f32 %v2480, %v2568
      %v2570 = vpop.f32.mrf.mxu0
      %v2571 = vadd.f32 %v2482, %v2570
      %2572 = vmatmul.bf16.gmra.mxu0 %v2158
      %v2573 = vpop.f32.mrf.mxu0
      %v2574 = vadd.f32 %v2485, %v2573
      %v2575 = vpop.f32.mrf.mxu0
      %v2576 = vadd.f32 %v2487, %v2575
      %2577 = vmatmul.bf16.gmra.mxu0 %v2162
      %v2578 = vpop.f32.mrf.mxu0
      %v2579 = vadd.f32 %v2490, %v2578
      %v2580 = vpop.f32.mrf.mxu0
      %v2581 = vadd.f32 %v2492, %v2580
      %2582 = vdwg.mxu0
      %v2583 = vadd.f32 %v2163, %v2504
      %v2584 = vadd.f32 %v2164, %v2506
      %v2585 = vadd.f32 %v2165, %v2509
      %v2586 = vadd.f32 %v2166, %v2511
      %v2587 = vadd.f32 %v2167, %v2514
      %v2588 = vadd.f32 %v2168, %v2516
      %v2589 = vadd.f32 %v2169, %v2519
      %v2590 = vadd.f32 %v2170, %v2521
      %v2591 = vadd.f32 %v2171, %v2524
      %v2592 = vadd.f32 %v2172, %v2526
      %v2593 = vadd.f32 %v2173, %v2529
      %v2594 = vadd.f32 %v2174, %v2531
      %v2595 = vadd.f32 %v2175, %v2534
      %v2596 = vadd.f32 %v2176, %v2536
      %v2597 = vadd.f32 %v2177, %v2539
      %v2598 = vadd.f32 %v2178, %v2541
      %v2599 = vadd.f32 %v2179, %v2544
      %v2600 = vadd.f32 %v2180, %v2546
      %v2601 = vadd.f32 %v2181, %v2549
      %v2602 = vadd.f32 %v2182, %v2551
      %v2603 = vadd.f32 %v2183, %v2554
      %v2604 = vadd.f32 %v2184, %v2556
      %v2605 = vadd.f32 %v2185, %v2559
      %v2606 = vadd.f32 %v2186, %v2561
      %v2607 = vadd.f32 %v2187, %v2564
      %v2608 = vadd.f32 %v2188, %v2566
      %v2609 = vadd.f32 %v2189, %v2569
      %v2610 = vadd.f32 %v2190, %v2571
      %v2611 = vadd.f32 %v2191, %v2574
      %v2612 = vadd.f32 %v2192, %v2576
      %v2613 = vadd.f32 %v2193, %v2579
      %v2614 = vadd.f32 %v2194, %v2581
      %2615 = vst [vmem:[%s7] sm:$0xff] %v2583
      %2616 = vst [vmem:[%s7 + $0x8] sm:$0xff] %v2584
      %2617 = vst [vmem:[%s7 + $0x10] sm:$0xff] %v2585
      %2618 = vst [vmem:[%s7 + $0x18] sm:$0xff] %v2586
      %2619 = vst [vmem:[%s7 + $0x20] sm:$0xff] %v2587
      %2620 = vst [vmem:[%s7 + $0x28] sm:$0xff] %v2588
      %2621 = vst [vmem:[%s7 + $0x30] sm:$0xff] %v2589
      %2622 = vst [vmem:[%s7 + $0x38] sm:$0xff] %v2590
      %2623 = vst [vmem:[%s7 + $0x40] sm:$0xff] %v2591
      %2624 = vst [vmem:[%s7 + $0x48] sm:$0xff] %v2592
      %2625 = vst [vmem:[%s7 + $0x50] sm:$0xff] %v2593
      %2626 = vst [vmem:[%s7 + $0x58] sm:$0xff] %v2594
      %2627 = vst [vmem:[%s7 + $0x60] sm:$0xff] %v2595
      %2628 = vst [vmem:[%s7 + $0x68] sm:$0xff] %v2596
      %2629 = vst [vmem:[%s7 + $0x70] sm:$0xff] %v2597
      %2630 = vst [vmem:[%s7 + $0x78] sm:$0xff] %v2598
      %2631 = vst [vmem:[%s7 + $0x80] sm:$0xff] %v2599
      %2632 = vst [vmem:[%s7 + $0x88] sm:$0xff] %v2600
      %2633 = vst [vmem:[%s7 + $0x90] sm:$0xff] %v2601
      %2634 = vst [vmem:[%s7 + $0x98] sm:$0xff] %v2602
      %2635 = vst [vmem:[%s7 + $0xa0] sm:$0xff] %v2603
      %2636 = vst [vmem:[%s7 + $0xa8] sm:$0xff] %v2604
      %2637 = vst [vmem:[%s7 + $0xb0] sm:$0xff] %v2605
      %2638 = vst [vmem:[%s7 + $0xb8] sm:$0xff] %v2606
      %2639 = vst [vmem:[%s7 + $0xc0] sm:$0xff] %v2607
      %2640 = vst [vmem:[%s7 + $0xc8] sm:$0xff] %v2608
      %2641 = vst [vmem:[%s7 + $0xd0] sm:$0xff] %v2609
      %2642 = vst [vmem:[%s7 + $0xd8] sm:$0xff] %v2610
      %2643 = vst [vmem:[%s7 + $0xe0] sm:$0xff] %v2611
      %2644 = vst [vmem:[%s7 + $0xe8] sm:$0xff] %v2612
      %2645 = vst [vmem:[%s7 + $0xf0] sm:$0xff] %v2613
      %2646 = vst [vmem:[%s7 + $0xf8] sm:$0xff] %v2614
      // Predicated region
      $region53: #{conv_forward.2} parent=47 // pred_check
        %p2647 = pneg %p198
      $region54: #{conv_forward.2} parent=47 // pred_check_branch
        %2649 = sbr.rel (%p2647) target = $region56
      $region55: #{conv_forward.2} parent=47 // pred_region
        _
      $region56: #{conv_forward.2} parent=47 // pred_fallthru
        _
      // Predicated region
      $region57: #{conv_forward.2} parent=47 // pred_check
        %p2650 = pneg %p198
      $region58: #{conv_forward.2} parent=47 // pred_check_branch
        %2652 = sbr.rel (%p2650) target = $region60
      $region59: #{conv_forward.2} parent=47 // pred_region
        _
      $region60: #{conv_forward.2} parent=47 // pred_fallthru
        _
    $region48: #{conv_forward.2} parent=5 // pred_fallthru
      _
    %p2653 = scmp.le.s32.totalorder 2, %s13
    // Predicated region
    $region61: #{conv_forward.2} parent=5 // pred_check
      %p2654 = pneg %p2653
    $region62: #{conv_forward.2} parent=5 // pred_check_branch
      %2656 = sbr.rel (%p2654) target = $region64
    $region63: #{conv_forward.2} parent=5 // pred_region
      %s2657 = ssub.s32 %s13, 2
    $region64: #{conv_forward.2} parent=5 // pred_fallthru
      _
  $region6: #{conv_forward.2} parent=0 // loop_footer
    %s17 = sadd.s32 1, %s13
  $region7: #{conv_forward.2} parent=0 // loop_footer_branch
    %12 = sbr.rel target = $region3
  $region8: #{conv_forward.2} parent=0 // loop_exit
    _

</llo_original>
